<compile_context>
chip_gen: v5e
topology: v5e:2x2
jax: 0.10.0
libtpu: 0.0.40
codegen_flags: <defaults>
</compile_context>

<pallas_src>
import functools

import jax
import jax.numpy as jnp
from jax.experimental import pallas as pl
from jax.experimental.pallas import tpu as pltpu


C1 = 128          # stage-1 output channels (lane-dense, MXU-friendly)
C2 = 128          # stage-2 output channels
_PADL = 16        # left pad of the stage-2 halo scratch (bf16 sublane tile)
_VMEM_LIMIT = 48 * 1024 * 1024


def _pick_rows_per_tile(h):
    """~64 input rows per stage-1 tile bounds VMEM; whole image if small."""
    for rows in (64, 32, 16, 8):
        if rows < h and h % rows == 0:
            return rows
    return h


# ----------------------------------------------------------------------------
# Stage 1: im2col matmul (K=27) + bias + ReLU + 2x2 maxpool, row-tiled grid
# ----------------------------------------------------------------------------
def _stage1_kernel(pe_ref, po_ref, w_ref, b_ref, o_ref):
    """pe/po: (1, rows, W/2, 27) bf16 patches of even / odd output columns.

    w_ref: (27, C1) bf16, b_ref: (1, C1) f32, o_ref: (1, rows/2, W/2, C1) bf16.
    """
    _, rows_in, wp, k = pe_ref.shape
    c1 = w_ref.shape[-1]
    tr = rows_in // 2
    m = rows_in * wp

    lhs_e = pe_ref[0].reshape(m, k)
    lhs_o = po_ref[0].reshape(m, k)
    acc_e = jnp.dot(lhs_e, w_ref[...], preferred_element_type=jnp.float32)
    acc_o = jnp.dot(lhs_o, w_ref[...], preferred_element_type=jnp.float32)

    # W-direction of the 2x2 pool: the two matmuls *are* the even / odd output
    # columns, so it's an elementwise max (bias+ReLU commute with max).
    act = jnp.maximum(jnp.maximum(acc_e, acc_o) + b_ref[...], 0.0)   # (m, c1)

    # H-direction: contiguous slab max (rows ordered (h, pooled_w)).
    r3 = act.reshape(tr, 2 * wp, c1)
    pooled = jnp.maximum(r3[:, :wp, :], r3[:, wp:, :])               # (tr, wp, c1)
    o_ref[0] = pooled.astype(o_ref.dtype)


def _stage1(p_even, p_odd, w1, b1, *, rows_per_tile):
    nb, h, wp, k = p_even.shape
    hp = h // 2
    tr = rows_per_tile // 2
    n_tiles = h // rows_per_tile
    return pl.pallas_call(
        _stage1_kernel,
        out_shape=jax.ShapeDtypeStruct((nb, hp, wp, C1), jnp.bfloat16),
        grid_spec=pltpu.PrefetchScalarGridSpec(
            num_scalar_prefetch=0,
            grid=(nb, n_tiles),
            in_specs=[
                pl.BlockSpec((1, rows_per_tile, wp, k), lambda b, r: (b, r, 0, 0)),
                pl.BlockSpec((1, rows_per_tile, wp, k), lambda b, r: (b, r, 0, 0)),
                pl.BlockSpec((k, C1), lambda b, r: (0, 0)),       # resident weights
                pl.BlockSpec((1, C1), lambda b, r: (0, 0)),
            ],
            out_specs=pl.BlockSpec((1, tr, wp, C1), lambda b, r: (b, r, 0, 0)),
        ),
        compiler_params=pltpu.CompilerParams(
            dimension_semantics=("parallel", "parallel"),
            vmem_limit_bytes=_VMEM_LIMIT),
    )(p_even, p_odd, w1, b1)


# ----------------------------------------------------------------------------
# Stage 2: 3x3 conv (9 x K=128 matmuls) + bias + ReLU + 2x2 maxpool, per image
# ----------------------------------------------------------------------------
def _stage2_kernel(x_ref, w_ref, b_ref, o_ref, xpad_ref, pool_ref):
    """x_ref: (1, Hp, Wp, C1) bf16 stage-1 features of one image.

    w_ref: (9, C1, C2) bf16, b_ref: (1, C2) f32, o_ref: (1, Hp/2, Wp/2, C2) f32.
    xpad_ref: (Hp+2, Wp+_PADL+16, C1) bf16 zero-halo scratch.
    pool_ref: ((Hp/2)*Wp, C2) f32 scratch for the W-direction pool.
    """
    _, hp, wp, c1 = x_ref.shape
    c2 = w_ref.shape[-1]
    ho, wo = hp // 2, wp // 2
    m = hp * wp
    cols = xpad_ref.shape[1]

    # Build the 1-pixel zero halo in VMEM (no inter-stage HBM pad copy).
    # Interior lives at rows [1, hp+1), cols [_PADL, _PADL+wp): every store
    # below is sublane-aligned (bf16 tile = 16 rows of the col axis).
    z16 = jnp.zeros((hp + 2, 16, c1), xpad_ref.dtype)
    xpad_ref[:, _PADL - 16:_PADL, :] = z16                    # covers left halo col
    xpad_ref[:, _PADL + wp:_PADL + wp + 16, :] = z16          # covers right halo col
    zrow = jnp.zeros((cols, c1), xpad_ref.dtype)
    xpad_ref[0, :, :] = zrow                                  # top halo row
    xpad_ref[hp + 1, :, :] = zrow                             # bottom halo row
    xpad_ref[1:hp + 1, _PADL:_PADL + wp, :] = x_ref[0]

    # 3x3 conv as 9 accumulated (M, 128) @ (128, 128) MXU matmuls (K = C1).
    acc = jnp.zeros((m, c2), jnp.float32)
    for kh in range(3):
        for kw in range(3):
            win = xpad_ref[kh:kh + hp, _PADL - 1 + kw:_PADL - 1 + kw + wp, :]
            acc = acc + jnp.dot(win.reshape(m, c1), w_ref[kh * 3 + kw],
                                preferred_element_type=jnp.float32)

    act = jnp.maximum(acc + b_ref[...], 0.0)                  # (m, c2), rows (h, w)

    # 2x2 max pool: H direction as a contiguous slab max on the value,
    # W direction via stride-2 sublane reads from a half-size scratch.
    r3 = act.reshape(ho, 2 * wp, c2)
    pool_ref[...] = jnp.maximum(r3[:, :wp, :], r3[:, wp:, :]).reshape(ho * wp, c2)
    pooled = jnp.maximum(pool_ref[pl.ds(0, ho * wo, stride=2), :],
                         pool_ref[pl.ds(1, ho * wo, stride=2), :])
    o_ref[0] = pooled.reshape(ho, wo, c2).astype(o_ref.dtype)


def _stage2(y1, w2, b2):
    nb, hp, wp, c1 = y1.shape
    ho, wo = hp // 2, wp // 2
    return pl.pallas_call(
        _stage2_kernel,
        out_shape=jax.ShapeDtypeStruct((nb, ho, wo, C2), jnp.float32),
        grid_spec=pltpu.PrefetchScalarGridSpec(
            num_scalar_prefetch=0,
            grid=(nb,),
            in_specs=[
                pl.BlockSpec((1, hp, wp, c1), lambda b: (b, 0, 0, 0)),
                pl.BlockSpec((9, c1, C2), lambda b: (0, 0, 0)),   # resident weights
                pl.BlockSpec((1, C2), lambda b: (0, 0)),
            ],
            out_specs=pl.BlockSpec((1, ho, wo, C2), lambda b: (b, 0, 0, 0)),
            scratch_shapes=[
                pltpu.VMEM((hp + 2, wp + _PADL + 16, c1), jnp.bfloat16),
                pltpu.VMEM((ho * wp, C2), jnp.float32),
            ],
        ),
        compiler_params=pltpu.CompilerParams(
            dimension_semantics=("parallel",),
            vmem_limit_bytes=_VMEM_LIMIT),
    )(y1, w2, b2)


# ----------------------------------------------------------------------------
# Encoder (siamese) forward — mirrors Encoder.forward
# ----------------------------------------------------------------------------
def encoder_forward(imgA, imgB, params):
    """Returns (flat enc for imgA, flat enc for imgB); weights are shared, so
    both images are concatenated on the batch axis and encoded in one pass."""
    b = imgA.shape[0]
    x = jnp.concatenate([imgA, imgB], axis=0)                  # (2B, 3, H, W)
    x = jnp.transpose(x, (0, 2, 3, 1)).astype(jnp.bfloat16)    # NHWC, bf16
    nb, h, w, cin = x.shape
    assert h % 4 == 0 and w % 32 == 0, "need H % 4 == 0 and W % 32 == 0"

    # Host-side (cheap XLA) prep for stage 1: lane-packed 3x3 im2col (27 taps)
    # so the kernel contracts over K=27 instead of nine K=3 matmuls and the
    # C=3 input never sits lane-padded 3->128 in VMEM.  Patches are split by
    # output-column parity so the W pool is an elementwise max in-kernel.
    xp = jnp.pad(x, ((0, 0), (1, 1), (1, 1), (0, 0)))
    taps = jnp.concatenate(
        [xp[:, kh:kh + h, kw:kw + w, :] for kh in range(3) for kw in range(3)],
        axis=-1)                                               # (2B, H, W, 27)
    t5 = taps.reshape(nb, h, w // 2, 2, 9 * cin)
    p_even = t5[:, :, :, 0, :]                                 # (2B, H, W/2, 27)
    p_odd = t5[:, :, :, 1, :]

    w1 = params["w1"].reshape(9 * cin, -1).astype(jnp.bfloat16)   # (27, C1)
    b1 = params["b1"].reshape(1, -1).astype(jnp.float32)
    w2 = params["w2"].reshape(9, C1, C2).astype(jnp.bfloat16)     # (9, C1, C2)
    b2 = params["b2"].reshape(1, -1).astype(jnp.float32)

    rows = _pick_rows_per_tile(h)
    y1 = _stage1(p_even, p_odd, w1, b1, rows_per_tile=rows)    # (2B, H/2, W/2, C1) bf16
    y2 = _stage2(y1, w2, b2)                                   # (2B, H/4, W/4, C2) f32

    # NCHW flatten order (batch dim included), matching torch.flatten.
    y = jnp.transpose(y2, (0, 3, 1, 2))                        # (2B, C2, H/4, W/4)
    enc1 = y[:b].reshape(-1)
    enc2 = y[b:].reshape(-1)
    return enc1, enc2


def init_params(key, cin=3, c1=C1, c2=C2):
    k1, k2, k3, k4 = jax.random.split(key, 4)
    s1 = 1.0 / jnp.sqrt(9.0 * cin)
    s2 = 1.0 / jnp.sqrt(9.0 * c1)
    return {
        "w1": s1 * jax.random.normal(k1, (3, 3, cin, c1), jnp.float32),
        "b1": 0.01 * jax.random.normal(k2, (c1,), jnp.float32),
        "w2": s2 * jax.random.normal(k3, (3, 3, c1, c2), jnp.float32),
        "b2": 0.01 * jax.random.normal(k4, (c2,), jnp.float32),
    }


# ----------------------------------------------------------------------------
# Pure-JAX reference (same bf16 casts) for a tolerance check
# ----------------------------------------------------------------------------
def _reference_forward(imgA, imgB, params):
    def stage(x_nhwc, w, bias, out_dtype):
        y = jax.lax.conv_general_dilated(
            x_nhwc.astype(jnp.bfloat16), w.astype(jnp.bfloat16),
            window_strides=(1, 1), padding="SAME",
            dimension_numbers=("NHWC", "HWIO", "NHWC"),
            preferred_element_type=jnp.float32)
        y = jnp.maximum(y + bias.astype(jnp.float32), 0.0)
        y = jax.lax.reduce_window(y, -jnp.inf, jax.lax.max,
                                  (1, 2, 2, 1), (1, 2, 2, 1), "VALID")
        return y.astype(out_dtype)

    b = imgA.shape[0]
    x = jnp.transpose(jnp.concatenate([imgA, imgB], axis=0), (0, 2, 3, 1))
    y = stage(x.astype(jnp.float32), params["w1"], params["b1"], jnp.bfloat16)
    y = stage(y, params["w2"], params["b2"], jnp.float32)
    y = jnp.transpose(y, (0, 3, 1, 2))
    return y[:b].reshape(-1), y[b:].reshape(-1)


if __name__ == "__main__":
    key = jax.random.PRNGKey(0)
    k_params, k_a, k_b = jax.random.split(key, 3)

    params = init_params(k_params)

    # Small stand-ins for the 3x256x256 inputs: batch=2, 3 channels, 32x32
    # (32 keeps every tile/alignment constraint of the real-size layout).
    imgA = jax.random.normal(k_a, (2, 3, 32, 32), jnp.float32)   # NCHW
    imgB = jax.random.normal(k_b, (2, 3, 32, 32), jnp.float32)   # NCHW

    enc1, enc2 = jax.block_until_ready(
        jax.jit(encoder_forward)(imgA, imgB, params))

    # flattened encodings: B * C2 * (H/4) * (W/4) = 2 * 128 * 8 * 8 = 16384
    assert enc1.shape == (16384,) and enc2.shape == (16384,)
    assert enc1.ndim == 1 and enc2.ndim == 1

    ref1, ref2 = _reference_forward(imgA, imgB, params)
    assert bool(jnp.allclose(enc1, ref1, atol=2e-2, rtol=2e-2))
    assert bool(jnp.allclose(enc2, ref2, atol=2e-2, rtol=2e-2))

    print("KERNEL_OK")
</pallas_src>

<mosaic_0001>
module attributes {stable_mosaic.version = 11 : i64} {
  func.func @_stage1_kernel(%arg0: i32, %arg1: i32, %arg2: memref<1x16x16x27xbf16, #tpu.memory_space<vmem>>, %arg3: memref<1x16x16x27xbf16, #tpu.memory_space<vmem>>, %arg4: memref<27x128xbf16, #tpu.memory_space<vmem>>, %arg5: memref<1x128xf32, #tpu.memory_space<vmem>>, %arg6: memref<1x8x16x128xbf16, #tpu.memory_space<vmem>>) attributes {dimension_semantics = [#tpu.dimension_semantics<parallel>, #tpu.dimension_semantics<parallel>], iteration_bounds = array<i64: 4, 2>, scalar_prefetch = 0 : i64, scratch_operands = 0 : i64, tpu.core_type = #tpu.core_type<tc>, window_params = [{transform_indices = @transform_0, window_bounds = array<i64: 1, 16, 16, 27>}, {transform_indices = @transform_1, window_bounds = array<i64: 1, 16, 16, 27>}, {pipeline_mode = #tpu.pipeline_mode<synchronous>, transform_indices = @transform_2, window_bounds = array<i64: 27, 128>}, {pipeline_mode = #tpu.pipeline_mode<synchronous>, transform_indices = @transform_3, window_bounds = array<i64: 1, 128>}, {transform_indices = @transform_4, window_bounds = array<i64: 1, 8, 16, 128>}]} {
    %c0 = arith.constant 0 : index
    %c0_0 = arith.constant 0 : index
    %c0_1 = arith.constant 0 : index
    %c0_2 = arith.constant 0 : index
    %0 = vector.load %arg2[%c0, %c0_0, %c0_1, %c0_2] : memref<1x16x16x27xbf16, #tpu.memory_space<vmem>>, vector<1x16x16x27xbf16>
    %1 = vector.shape_cast %0 : vector<1x16x16x27xbf16> to vector<16x16x27xbf16>
    %2 = vector.shape_cast %1 : vector<16x16x27xbf16> to vector<256x27xbf16>
    %c0_3 = arith.constant 0 : index
    %c0_4 = arith.constant 0 : index
    %c0_5 = arith.constant 0 : index
    %c0_6 = arith.constant 0 : index
    %3 = vector.load %arg3[%c0_3, %c0_4, %c0_5, %c0_6] : memref<1x16x16x27xbf16, #tpu.memory_space<vmem>>, vector<1x16x16x27xbf16>
    %4 = vector.shape_cast %3 : vector<1x16x16x27xbf16> to vector<16x16x27xbf16>
    %5 = vector.shape_cast %4 : vector<16x16x27xbf16> to vector<256x27xbf16>
    %c0_7 = arith.constant 0 : index
    %c0_8 = arith.constant 0 : index
    %6 = vector.load %arg4[%c0_7, %c0_8] : memref<27x128xbf16, #tpu.memory_space<vmem>>, vector<27x128xbf16>
    %cst = arith.constant dense<0.000000e+00> : vector<256x128xf32>
    %7 = tpu.matmul %2, %6, %cst {dimension_numbers = #tpu.dot_dimension_numbers<[1], [0], [0], [1], [0, 0, 1, 1], [], []>} : vector<256x27xbf16>, vector<27x128xbf16>, vector<256x128xf32> -> vector<256x128xf32>
    %c0_9 = arith.constant 0 : index
    %c0_10 = arith.constant 0 : index
    %8 = vector.load %arg4[%c0_9, %c0_10] : memref<27x128xbf16, #tpu.memory_space<vmem>>, vector<27x128xbf16>
    %cst_11 = arith.constant dense<0.000000e+00> : vector<256x128xf32>
    %9 = tpu.matmul %5, %8, %cst_11 {dimension_numbers = #tpu.dot_dimension_numbers<[1], [0], [0], [1], [0, 0, 1, 1], [], []>} : vector<256x27xbf16>, vector<27x128xbf16>, vector<256x128xf32> -> vector<256x128xf32>
    %10 = arith.maximumf %7, %9 : vector<256x128xf32>
    %c0_12 = arith.constant 0 : index
    %c0_13 = arith.constant 0 : index
    %11 = vector.load %arg5[%c0_12, %c0_13] : memref<1x128xf32, #tpu.memory_space<vmem>>, vector<1x128xf32>
    %12 = vector.broadcast %11 : vector<1x128xf32> to vector<256x128xf32>
    %13 = arith.addf %10, %12 : vector<256x128xf32>
    %cst_14 = arith.constant 0.000000e+00 : f32
    %14 = vector.broadcast %cst_14 : f32 to vector<256x128xf32>
    %15 = arith.maximumf %13, %14 : vector<256x128xf32>
    %16 = vector.shape_cast %15 : vector<256x128xf32> to vector<8x32x128xf32>
    %17 = vector.extract_strided_slice %16 {offsets = [0, 0, 0], sizes = [8, 16, 128], strides = [1, 1, 1]} : vector<8x32x128xf32> to vector<8x16x128xf32>
    %18 = vector.extract_strided_slice %16 {offsets = [0, 16, 0], sizes = [8, 16, 128], strides = [1, 1, 1]} : vector<8x32x128xf32> to vector<8x16x128xf32>
    %19 = arith.maximumf %17, %18 : vector<8x16x128xf32>
    %20 = arith.truncf %19 : vector<8x16x128xf32> to vector<8x16x128xbf16>
    %c0_15 = arith.constant 0 : index
    %c0_16 = arith.constant 0 : index
    %c0_17 = arith.constant 0 : index
    %c0_18 = arith.constant 0 : index
    %21 = vector.load %arg6[%c0_15, %c0_16, %c0_17, %c0_18] : memref<1x8x16x128xbf16, #tpu.memory_space<vmem>>, vector<1x8x16x128xbf16>
    %22 = vector.shape_cast %21 : vector<1x8x16x128xbf16> to vector<8x16x128xbf16>
    %23 = vector.shape_cast %20 : vector<8x16x128xbf16> to vector<1x8x16x128xbf16>
    tpu.vector_store %arg6[%c0_15, %c0_16, %c0_17, %c0_18], %23 {strides = array<i32>} : memref<1x8x16x128xbf16, #tpu.memory_space<vmem>>, vector<1x8x16x128xbf16>,
    return
  }
  func.func @transform_0(%arg0: i32, %arg1: i32) -> (i32, i32, i32, i32) {
    %c0_i32 = arith.constant 0 : i32
    %c0_i32_0 = arith.constant 0 : i32
    %c0_i32_1 = arith.constant 0 : i32
    return %arg0, %arg1, %c0_i32, %c0_i32_0 : i32, i32, i32, i32
  }
  func.func @transform_1(%arg0: i32, %arg1: i32) -> (i32, i32, i32, i32) {
    %c0_i32 = arith.constant 0 : i32
    %c0_i32_0 = arith.constant 0 : i32
    %c0_i32_1 = arith.constant 0 : i32
    return %arg0, %arg1, %c0_i32, %c0_i32_0 : i32, i32, i32, i32
  }
  func.func @transform_2(%arg0: i32, %arg1: i32) -> (i32, i32) {
    %c0_i32 = arith.constant 0 : i32
    %c0_i32_0 = arith.constant 0 : i32
    %c0_i32_1 = arith.constant 0 : i32
    return %c0_i32, %c0_i32_0 : i32, i32
  }
  func.func @transform_3(%arg0: i32, %arg1: i32) -> (i32, i32) {
    %c0_i32 = arith.constant 0 : i32
    %c0_i32_0 = arith.constant 0 : i32
    %c0_i32_1 = arith.constant 0 : i32
    return %c0_i32, %c0_i32_0 : i32, i32
  }
  func.func @transform_4(%arg0: i32, %arg1: i32) -> (i32, i32, i32, i32) {
    %c0_i32 = arith.constant 0 : i32
    %c0_i32_0 = arith.constant 0 : i32
    %c0_i32_1 = arith.constant 0 : i32
    return %arg0, %arg1, %c0_i32, %c0_i32_0 : i32, i32, i32, i32
  }
}

module attributes {stable_mosaic.version = 11 : i64} {
  func.func @_stage2_kernel(%arg0: i32, %arg1: memref<1x16x16x128xbf16, #tpu.memory_space<vmem>>, %arg2: memref<9x128x128xbf16, #tpu.memory_space<vmem>>, %arg3: memref<1x128xf32, #tpu.memory_space<vmem>>, %arg4: memref<1x8x8x128xf32, #tpu.memory_space<vmem>>, %arg5: memref<18x48x128xbf16, #tpu.memory_space<vmem>>, %arg6: memref<128x128xf32, #tpu.memory_space<vmem>>) attributes {dimension_semantics = [#tpu.dimension_semantics<parallel>], iteration_bounds = array<i64: 4>, scalar_prefetch = 0 : i64, scratch_operands = 2 : i64, tpu.core_type = #tpu.core_type<tc>, window_params = [{transform_indices = @transform_0, window_bounds = array<i64: 1, 16, 16, 128>}, {pipeline_mode = #tpu.pipeline_mode<synchronous>, transform_indices = @transform_1, window_bounds = array<i64: 9, 128, 128>}, {pipeline_mode = #tpu.pipeline_mode<synchronous>, transform_indices = @transform_2, window_bounds = array<i64: 1, 128>}, {transform_indices = @transform_3, window_bounds = array<i64: 1, 8, 8, 128>}]} {
    %cst = arith.constant 0.000000e+00 : bf16
    %0 = vector.broadcast %cst : bf16 to vector<18x16x128xbf16>
    %c0 = arith.constant 0 : index
    %c0_0 = arith.constant 0 : index
    %c0_1 = arith.constant 0 : index
    %1 = vector.load %arg5[%c0, %c0_0, %c0_1] : memref<18x48x128xbf16, #tpu.memory_space<vmem>>, vector<18x16x128xbf16>
    tpu.vector_store %arg5[%c0, %c0_0, %c0_1], %0 {strides = array<i32>} : memref<18x48x128xbf16, #tpu.memory_space<vmem>>, vector<18x16x128xbf16>,
    %c0_2 = arith.constant 0 : index
    %c32 = arith.constant 32 : index
    %c0_3 = arith.constant 0 : index
    %2 = vector.load %arg5[%c0_2, %c32, %c0_3] : memref<18x48x128xbf16, #tpu.memory_space<vmem>>, vector<18x16x128xbf16>
    tpu.vector_store %arg5[%c0_2, %c32, %c0_3], %0 {strides = array<i32>} : memref<18x48x128xbf16, #tpu.memory_space<vmem>>, vector<18x16x128xbf16>,
    %cst_4 = arith.constant 0.000000e+00 : bf16
    %3 = vector.broadcast %cst_4 : bf16 to vector<48x128xbf16>
    %c0_5 = arith.constant 0 : index
    %c0_6 = arith.constant 0 : index
    %c0_7 = arith.constant 0 : index
    %4 = vector.load %arg5[%c0_5, %c0_6, %c0_7] : memref<18x48x128xbf16, #tpu.memory_space<vmem>>, vector<1x48x128xbf16>
    %5 = vector.shape_cast %4 : vector<1x48x128xbf16> to vector<48x128xbf16>
    %6 = vector.shape_cast %3 : vector<48x128xbf16> to vector<1x48x128xbf16>
    tpu.vector_store %arg5[%c0_5, %c0_6, %c0_7], %6 {strides = array<i32>} : memref<18x48x128xbf16, #tpu.memory_space<vmem>>, vector<1x48x128xbf16>,
    %c17 = arith.constant 17 : index
    %c0_8 = arith.constant 0 : index
    %c0_9 = arith.constant 0 : index
    %7 = vector.load %arg5[%c17, %c0_8, %c0_9] : memref<18x48x128xbf16, #tpu.memory_space<vmem>>, vector<1x48x128xbf16>
    %8 = vector.shape_cast %7 : vector<1x48x128xbf16> to vector<48x128xbf16>
    %9 = vector.shape_cast %3 : vector<48x128xbf16> to vector<1x48x128xbf16>
    tpu.vector_store %arg5[%c17, %c0_8, %c0_9], %9 {strides = array<i32>} : memref<18x48x128xbf16, #tpu.memory_space<vmem>>, vector<1x48x128xbf16>,
    %c0_10 = arith.constant 0 : index
    %c0_11 = arith.constant 0 : index
    %c0_12 = arith.constant 0 : index
    %c0_13 = arith.constant 0 : index
    %10 = vector.load %arg1[%c0_10, %c0_11, %c0_12, %c0_13] : memref<1x16x16x128xbf16, #tpu.memory_space<vmem>>, vector<1x16x16x128xbf16>
    %11 = vector.shape_cast %10 : vector<1x16x16x128xbf16> to vector<16x16x128xbf16>
    %c1 = arith.constant 1 : index
    %c16 = arith.constant 16 : index
    %c0_14 = arith.constant 0 : index
    %12 = vector.load %arg5[%c1, %c16, %c0_14] : memref<18x48x128xbf16, #tpu.memory_space<vmem>>, vector<16x16x128xbf16>
    tpu.vector_store %arg5[%c1, %c16, %c0_14], %11 {strides = array<i32>} : memref<18x48x128xbf16, #tpu.memory_space<vmem>>, vector<16x16x128xbf16>,
    %cst_15 = arith.constant 0.000000e+00 : f32
    %13 = vector.broadcast %cst_15 : f32 to vector<256x128xf32>
    %c0_16 = arith.constant 0 : index
    %c15 = arith.constant 15 : index
    %c0_17 = arith.constant 0 : index
    %14 = vector.load %arg5[%c0_16, %c15, %c0_17] : memref<18x48x128xbf16, #tpu.memory_space<vmem>>, vector<16x16x128xbf16>
    %15 = vector.shape_cast %14 : vector<16x16x128xbf16> to vector<256x128xbf16>
    %c0_18 = arith.constant 0 : index
    %c0_19 = arith.constant 0 : index
    %c0_20 = arith.constant 0 : index
    %16 = vector.load %arg2[%c0_18, %c0_19, %c0_20] : memref<9x128x128xbf16, #tpu.memory_space<vmem>>, vector<1x128x128xbf16>
    %17 = vector.shape_cast %16 : vector<1x128x128xbf16> to vector<128x128xbf16>
    %cst_21 = arith.constant dense<0.000000e+00> : vector<256x128xf32>
    %18 = tpu.matmul %15, %17, %cst_21 {dimension_numbers = #tpu.dot_dimension_numbers<[1], [0], [0], [1], [0, 0, 1, 1], [], []>} : vector<256x128xbf16>, vector<128x128xbf16>, vector<256x128xf32> -> vector<256x128xf32>
    %19 = arith.addf %13, %18 : vector<256x128xf32>
    %c0_22 = arith.constant 0 : index
    %c16_23 = arith.constant 16 : index
    %c0_24 = arith.constant 0 : index
    %20 = vector.load %arg5[%c0_22, %c16_23, %c0_24] : memref<18x48x128xbf16, #tpu.memory_space<vmem>>, vector<16x16x128xbf16>
    %21 = vector.shape_cast %20 : vector<16x16x128xbf16> to vector<256x128xbf16>
    %c1_25 = arith.constant 1 : index
    %c0_26 = arith.constant 0 : index
    %c0_27 = arith.constant 0 : index
    %22 = vector.load %arg2[%c1_25, %c0_26, %c0_27] : memref<9x128x128xbf16, #tpu.memory_space<vmem>>, vector<1x128x128xbf16>
    %23 = vector.shape_cast %22 : vector<1x128x128xbf16> to vector<128x128xbf16>
    %cst_28 = arith.constant dense<0.000000e+00> : vector<256x128xf32>
    %24 = tpu.matmul %21, %23, %cst_28 {dimension_numbers = #tpu.dot_dimension_numbers<[1], [0], [0], [1], [0, 0, 1, 1], [], []>} : vector<256x128xbf16>, vector<128x128xbf16>, vector<256x128xf32> -> vector<256x128xf32>
    %25 = arith.addf %19, %24 : vector<256x128xf32>
    %c0_29 = arith.constant 0 : index
    %c17_30 = arith.constant 17 : index
    %c0_31 = arith.constant 0 : index
    %26 = vector.load %arg5[%c0_29, %c17_30, %c0_31] : memref<18x48x128xbf16, #tpu.memory_space<vmem>>, vector<16x16x128xbf16>
    %27 = vector.shape_cast %26 : vector<16x16x128xbf16> to vector<256x128xbf16>
    %c2 = arith.constant 2 : index
    %c0_32 = arith.constant 0 : index
    %c0_33 = arith.constant 0 : index
    %28 = vector.load %arg2[%c2, %c0_32, %c0_33] : memref<9x128x128xbf16, #tpu.memory_space<vmem>>, vector<1x128x128xbf16>
    %29 = vector.shape_cast %28 : vector<1x128x128xbf16> to vector<128x128xbf16>
    %cst_34 = arith.constant dense<0.000000e+00> : vector<256x128xf32>
    %30 = tpu.matmul %27, %29, %cst_34 {dimension_numbers = #tpu.dot_dimension_numbers<[1], [0], [0], [1], [0, 0, 1, 1], [], []>} : vector<256x128xbf16>, vector<128x128xbf16>, vector<256x128xf32> -> vector<256x128xf32>
    %31 = arith.addf %25, %30 : vector<256x128xf32>
    %c1_35 = arith.constant 1 : index
    %c15_36 = arith.constant 15 : index
    %c0_37 = arith.constant 0 : index
    %32 = vector.load %arg5[%c1_35, %c15_36, %c0_37] : memref<18x48x128xbf16, #tpu.memory_space<vmem>>, vector<16x16x128xbf16>
    %33 = vector.shape_cast %32 : vector<16x16x128xbf16> to vector<256x128xbf16>
    %c3 = arith.constant 3 : index
    %c0_38 = arith.constant 0 : index
    %c0_39 = arith.constant 0 : index
    %34 = vector.load %arg2[%c3, %c0_38, %c0_39] : memref<9x128x128xbf16, #tpu.memory_space<vmem>>, vector<1x128x128xbf16>
    %35 = vector.shape_cast %34 : vector<1x128x128xbf16> to vector<128x128xbf16>
    %cst_40 = arith.constant dense<0.000000e+00> : vector<256x128xf32>
    %36 = tpu.matmul %33, %35, %cst_40 {dimension_numbers = #tpu.dot_dimension_numbers<[1], [0], [0], [1], [0, 0, 1, 1], [], []>} : vector<256x128xbf16>, vector<128x128xbf16>, vector<256x128xf32> -> vector<256x128xf32>
    %37 = arith.addf %31, %36 : vector<256x128xf32>
    %c1_41 = arith.constant 1 : index
    %c16_42 = arith.constant 16 : index
    %c0_43 = arith.constant 0 : index
    %38 = vector.load %arg5[%c1_41, %c16_42, %c0_43] : memref<18x48x128xbf16, #tpu.memory_space<vmem>>, vector<16x16x128xbf16>
    %39 = vector.shape_cast %38 : vector<16x16x128xbf16> to vector<256x128xbf16>
    %c4 = arith.constant 4 : index
    %c0_44 = arith.constant 0 : index
    %c0_45 = arith.constant 0 : index
    %40 = vector.load %arg2[%c4, %c0_44, %c0_45] : memref<9x128x128xbf16, #tpu.memory_space<vmem>>, vector<1x128x128xbf16>
    %41 = vector.shape_cast %40 : vector<1x128x128xbf16> to vector<128x128xbf16>
    %cst_46 = arith.constant dense<0.000000e+00> : vector<256x128xf32>
    %42 = tpu.matmul %39, %41, %cst_46 {dimension_numbers = #tpu.dot_dimension_numbers<[1], [0], [0], [1], [0, 0, 1, 1], [], []>} : vector<256x128xbf16>, vector<128x128xbf16>, vector<256x128xf32> -> vector<256x128xf32>
    %43 = arith.addf %37, %42 : vector<256x128xf32>
    %c1_47 = arith.constant 1 : index
    %c17_48 = arith.constant 17 : index
    %c0_49 = arith.constant 0 : index
    %44 = vector.load %arg5[%c1_47, %c17_48, %c0_49] : memref<18x48x128xbf16, #tpu.memory_space<vmem>>, vector<16x16x128xbf16>
    %45 = vector.shape_cast %44 : vector<16x16x128xbf16> to vector<256x128xbf16>
    %c5 = arith.constant 5 : index
    %c0_50 = arith.constant 0 : index
    %c0_51 = arith.constant 0 : index
    %46 = vector.load %arg2[%c5, %c0_50, %c0_51] : memref<9x128x128xbf16, #tpu.memory_space<vmem>>, vector<1x128x128xbf16>
    %47 = vector.shape_cast %46 : vector<1x128x128xbf16> to vector<128x128xbf16>
    %cst_52 = arith.constant dense<0.000000e+00> : vector<256x128xf32>
    %48 = tpu.matmul %45, %47, %cst_52 {dimension_numbers = #tpu.dot_dimension_numbers<[1], [0], [0], [1], [0, 0, 1, 1], [], []>} : vector<256x128xbf16>, vector<128x128xbf16>, vector<256x128xf32> -> vector<256x128xf32>
    %49 = arith.addf %43, %48 : vector<256x128xf32>
    %c2_53 = arith.constant 2 : index
    %c15_54 = arith.constant 15 : index
    %c0_55 = arith.constant 0 : index
    %50 = vector.load %arg5[%c2_53, %c15_54, %c0_55] : memref<18x48x128xbf16, #tpu.memory_space<vmem>>, vector<16x16x128xbf16>
    %51 = vector.shape_cast %50 : vector<16x16x128xbf16> to vector<256x128xbf16>
    %c6 = arith.constant 6 : index
    %c0_56 = arith.constant 0 : index
    %c0_57 = arith.constant 0 : index
    %52 = vector.load %arg2[%c6, %c0_56, %c0_57] : memref<9x128x128xbf16, #tpu.memory_space<vmem>>, vector<1x128x128xbf16>
    %53 = vector.shape_cast %52 : vector<1x128x128xbf16> to vector<128x128xbf16>
    %cst_58 = arith.constant dense<0.000000e+00> : vector<256x128xf32>
    %54 = tpu.matmul %51, %53, %cst_58 {dimension_numbers = #tpu.dot_dimension_numbers<[1], [0], [0], [1], [0, 0, 1, 1], [], []>} : vector<256x128xbf16>, vector<128x128xbf16>, vector<256x128xf32> -> vector<256x128xf32>
    %55 = arith.addf %49, %54 : vector<256x128xf32>
    %c2_59 = arith.constant 2 : index
    %c16_60 = arith.constant 16 : index
    %c0_61 = arith.constant 0 : index
    %56 = vector.load %arg5[%c2_59, %c16_60, %c0_61] : memref<18x48x128xbf16, #tpu.memory_space<vmem>>, vector<16x16x128xbf16>
    %57 = vector.shape_cast %56 : vector<16x16x128xbf16> to vector<256x128xbf16>
    %c7 = arith.constant 7 : index
    %c0_62 = arith.constant 0 : index
    %c0_63 = arith.constant 0 : index
    %58 = vector.load %arg2[%c7, %c0_62, %c0_63] : memref<9x128x128xbf16, #tpu.memory_space<vmem>>, vector<1x128x128xbf16>
    %59 = vector.shape_cast %58 : vector<1x128x128xbf16> to vector<128x128xbf16>
    %cst_64 = arith.constant dense<0.000000e+00> : vector<256x128xf32>
    %60 = tpu.matmul %57, %59, %cst_64 {dimension_numbers = #tpu.dot_dimension_numbers<[1], [0], [0], [1], [0, 0, 1, 1], [], []>} : vector<256x128xbf16>, vector<128x128xbf16>, vector<256x128xf32> -> vector<256x128xf32>
    %61 = arith.addf %55, %60 : vector<256x128xf32>
    %c2_65 = arith.constant 2 : index
    %c17_66 = arith.constant 17 : index
    %c0_67 = arith.constant 0 : index
    %62 = vector.load %arg5[%c2_65, %c17_66, %c0_67] : memref<18x48x128xbf16, #tpu.memory_space<vmem>>, vector<16x16x128xbf16>
    %63 = vector.shape_cast %62 : vector<16x16x128xbf16> to vector<256x128xbf16>
    %c8 = arith.constant 8 : index
    %c0_68 = arith.constant 0 : index
    %c0_69 = arith.constant 0 : index
    %64 = vector.load %arg2[%c8, %c0_68, %c0_69] : memref<9x128x128xbf16, #tpu.memory_space<vmem>>, vector<1x128x128xbf16>
    %65 = vector.shape_cast %64 : vector<1x128x128xbf16> to vector<128x128xbf16>
    %cst_70 = arith.constant dense<0.000000e+00> : vector<256x128xf32>
    %66 = tpu.matmul %63, %65, %cst_70 {dimension_numbers = #tpu.dot_dimension_numbers<[1], [0], [0], [1], [0, 0, 1, 1], [], []>} : vector<256x128xbf16>, vector<128x128xbf16>, vector<256x128xf32> -> vector<256x128xf32>
    %67 = arith.addf %61, %66 : vector<256x128xf32>
    %c0_71 = arith.constant 0 : index
    %c0_72 = arith.constant 0 : index
    %68 = vector.load %arg3[%c0_71, %c0_72] : memref<1x128xf32, #tpu.memory_space<vmem>>, vector<1x128xf32>
    %69 = vector.broadcast %68 : vector<1x128xf32> to vector<256x128xf32>
    %70 = arith.addf %67, %69 : vector<256x128xf32>
    %cst_73 = arith.constant 0.000000e+00 : f32
    %71 = vector.broadcast %cst_73 : f32 to vector<256x128xf32>
    %72 = arith.maximumf %70, %71 : vector<256x128xf32>
    %73 = vector.shape_cast %72 : vector<256x128xf32> to vector<8x32x128xf32>
    %74 = vector.extract_strided_slice %73 {offsets = [0, 0, 0], sizes = [8, 16, 128], strides = [1, 1, 1]} : vector<8x32x128xf32> to vector<8x16x128xf32>
    %75 = vector.extract_strided_slice %73 {offsets = [0, 16, 0], sizes = [8, 16, 128], strides = [1, 1, 1]} : vector<8x32x128xf32> to vector<8x16x128xf32>
    %76 = arith.maximumf %74, %75 : vector<8x16x128xf32>
    %77 = vector.shape_cast %76 : vector<8x16x128xf32> to vector<128x128xf32>
    %c0_74 = arith.constant 0 : index
    %c0_75 = arith.constant 0 : index
    %78 = vector.load %arg6[%c0_74, %c0_75] : memref<128x128xf32, #tpu.memory_space<vmem>>, vector<128x128xf32>
    tpu.vector_store %arg6[%c0_74, %c0_75], %77 {strides = array<i32>} : memref<128x128xf32, #tpu.memory_space<vmem>>, vector<128x128xf32>,
    %c0_76 = arith.constant 0 : index
    %c0_77 = arith.constant 0 : index
    %79 = tpu.strided_load %arg6[%c0_76, %c0_77] {strides = array<i32: 2, 1>} : memref<128x128xf32, #tpu.memory_space<vmem>>, vector<64x128xf32>
    %c1_78 = arith.constant 1 : index
    %c0_79 = arith.constant 0 : index
    %80 = tpu.strided_load %arg6[%c1_78, %c0_79] {strides = array<i32: 2, 1>} : memref<128x128xf32, #tpu.memory_space<vmem>>, vector<64x128xf32>
    %81 = arith.maximumf %79, %80 : vector<64x128xf32>
    %82 = vector.shape_cast %81 : vector<64x128xf32> to vector<8x8x128xf32>
    %c0_80 = arith.constant 0 : index
    %c0_81 = arith.constant 0 : index
    %c0_82 = arith.constant 0 : index
    %c0_83 = arith.constant 0 : index
    %83 = vector.load %arg4[%c0_80, %c0_81, %c0_82, %c0_83] : memref<1x8x8x128xf32, #tpu.memory_space<vmem>>, vector<1x8x8x128xf32>
    %84 = vector.shape_cast %83 : vector<1x8x8x128xf32> to vector<8x8x128xf32>
    %85 = vector.shape_cast %82 : vector<8x8x128xf32> to vector<1x8x8x128xf32>
    tpu.vector_store %arg4[%c0_80, %c0_81, %c0_82, %c0_83], %85 {strides = array<i32>} : memref<1x8x8x128xf32, #tpu.memory_space<vmem>>, vector<1x8x8x128xf32>,
    return
  }
  func.func @transform_0(%arg0: i32) -> (i32, i32, i32, i32) {
    %c0_i32 = arith.constant 0 : i32
    %c0_i32_0 = arith.constant 0 : i32
    %c0_i32_1 = arith.constant 0 : i32
    %c0_i32_2 = arith.constant 0 : i32
    return %arg0, %c0_i32, %c0_i32_0, %c0_i32_1 : i32, i32, i32, i32
  }
  func.func @transform_1(%arg0: i32) -> (i32, i32, i32) {
    %c0_i32 = arith.constant 0 : i32
    %c0_i32_0 = arith.constant 0 : i32
    %c0_i32_1 = arith.constant 0 : i32
    %c0_i32_2 = arith.constant 0 : i32
    return %c0_i32, %c0_i32_0, %c0_i32_1 : i32, i32, i32
  }
  func.func @transform_2(%arg0: i32) -> (i32, i32) {
    %c0_i32 = arith.constant 0 : i32
    %c0_i32_0 = arith.constant 0 : i32
    %c0_i32_1 = arith.constant 0 : i32
    return %c0_i32, %c0_i32_0 : i32, i32
  }
  func.func @transform_3(%arg0: i32) -> (i32, i32, i32, i32) {
    %c0_i32 = arith.constant 0 : i32
    %c0_i32_0 = arith.constant 0 : i32
    %c0_i32_1 = arith.constant 0 : i32
    %c0_i32_2 = arith.constant 0 : i32
    return %arg0, %c0_i32, %c0_i32_0, %c0_i32_1 : i32, i32, i32, i32
  }
}

</mosaic_0001>

<llo_original>
// kernel: encoder_forward.2
$region0: #{encoder_forward.2}
  #allocation0 [shape = 'u32[]', space=smem, size = 0x4, offset = 0x4, fixed_abs, tag = 'smem constant byte address 0x4 - core index']
  #allocation1 [shape = 'u32[72,128]{1,0:T(1,128)}', space=vmem, size = 0x9000, scoped, tag = 'internal scratch']
  %s0 = inlined_call_operand.vmem [shape: bf16[4,32,16,27], index: 0, kind: input, shape index: {}]
  %s1 = inlined_call_operand.vmem [shape: bf16[4,32,16,27], index: 1, kind: input, shape index: {}]
  %s2 = inlined_call_operand.vmem [shape: bf16[27,128], index: 2, kind: input, shape index: {}]
  %s3 = inlined_call_operand.vmem [shape: f32[1,128], index: 3, kind: input, shape index: {}]
  %s4 = inlined_call_operand.vmem [shape: bf16[4,16,16,128], index: 4, kind: output, shape index: {}]
  %s5 = sld [smem:[#allocation0]]
  $region49: #{encoder_forward.2} parent=0
    _
  %s7 = ssub.s32 1, %s5
  %s8 = scalar_select 0, %s7, %s5
  loop: start=0, step=1, limit=10
  $region2: #{encoder_forward.2} parent=0 // loop_pre_header
    _
  $region3: #{encoder_forward.2} parent=0 // loop_header
    %s10 = sphi 0, %s14
    %p11 = scmp.ge.s32.totalorder %s10, 10
    %s17 = sphi 0, %s29
    %s18 = sphi 0, %s25
    %s19 = sphi 0, %s17
    %s20 = sphi 0, %s18
    %s21 = sphi 0, %s19
    %s22 = sphi 0, %s20
    %s34 = sphi 0, %s36
    %s37 = sphi 0, %s34
    %s38 = sphi 0, %s37
    %s54 = sphi 0, %s38
    %s62 = sphi 0, %s64
    %s65 = sphi 0, %s62
    %s66 = sphi 0, %s65
    %s82 = sphi 0, %s66
    %s86 = sphi 0, %s86
    %s88 = sphi 0, %s86
    %s89 = sphi 0, %s88
    %s103 = sphi 0, %s89
    %s107 = sphi 0, %s107
    %s109 = sphi 0, %s107
    %s110 = sphi 0, %s109
    %s124 = sphi 0, %s110
    %s132 = sphi 0, %s134
    %s135 = sphi 0, %s132
    %s136 = sphi 0, %s135
    %s152 = sphi 0, %s136
  $region4: #{encoder_forward.2} parent=0 // loop_header_branch
    %13 = sbr.rel (%p11) target = $region8
  $region5: #{encoder_forward.2} parent=0 // loop_body
    %s15 = ssub.s32 %s10, 1
    %s16 = ssub.s32 %s10, 2
    %s23 = sadd.s32 1, %s18
    %p24 = scmp.ge.s32.totalorder %s23, 2
    %s25 = scalar_select %p24, 0, %s23
    %s26 = sadd.s32 1, %s17
    %s27 = scalar_select %p24, %s26, %s17
    %p28 = scmp.ge.s32.totalorder %s27, 4
    %s29 = scalar_select %p28, 0, %s27
    %s30 = ssub.s32 %s17, %s29
    %s31 = ssub.s32 %s18, %s25
    %s32 = sor.u32 %s30, %s31
    %p33 = scmp.eq.s32.totalorder %s32, 0
    %s35 = sadd.s32 %s34, 1
    %s36 = scalar_select %p33, %s34, %s35
    %p39 = pneg %p33
    %p40 = scmp.eq.s32.totalorder %s10, 7
    %p41 = por %p39, %p40
    %p42 = scmp.ne.s32.totalorder %s34, %s37
    %p43 = scmp.eq.s32.totalorder %s10, 0
    %p44 = por %p42, %p43
    %p45 = scmp.ne.s32.totalorder %s34, %s37
    %p46 = scmp.eq.s32.totalorder %s15, 7
    %p47 = por %p45, %p46
    %p48 = scmp.ne.s32.totalorder %s37, %s38
    %p49 = scmp.eq.s32.totalorder %s15, 0
    %p50 = por %p48, %p49
    %p51 = scmp.ne.s32.totalorder %s37, %s38
    %p52 = scmp.eq.s32.totalorder %s16, 7
    %p53 = por %p51, %p52
    %p55 = scmp.ne.s32.totalorder %s38, %s54
    %p56 = scmp.eq.s32.totalorder %s16, 0
    %p57 = por %p55, %p56
    %s58 = ssub.s32 %s17, %s29
    %s59 = ssub.s32 %s18, %s25
    %s60 = sor.u32 %s58, %s59
    %p61 = scmp.eq.s32.totalorder %s60, 0
    %s63 = sadd.s32 %s62, 1
    %s64 = scalar_select %p61, %s62, %s63
    %p67 = pneg %p61
    %p68 = scmp.eq.s32.totalorder %s10, 7
    %p69 = por %p67, %p68
    %p70 = scmp.ne.s32.totalorder %s62, %s65
    %p71 = scmp.eq.s32.totalorder %s10, 0
    %p72 = por %p70, %p71
    %p73 = scmp.ne.s32.totalorder %s62, %s65
    %p74 = scmp.eq.s32.totalorder %s15, 7
    %p75 = por %p73, %p74
    %p76 = scmp.ne.s32.totalorder %s65, %s66
    %p77 = scmp.eq.s32.totalorder %s15, 0
    %p78 = por %p76, %p77
    %p79 = scmp.ne.s32.totalorder %s65, %s66
    %p80 = scmp.eq.s32.totalorder %s16, 7
    %p81 = por %p79, %p80
    %p83 = scmp.ne.s32.totalorder %s66, %s82
    %p84 = scmp.eq.s32.totalorder %s16, 0
    %p85 = por %p83, %p84
    %s87 = sadd.s32 %s86, 1
    %p90 = scmp.eq.s32.totalorder %s10, 7
    %p91 = scmp.ne.s32.totalorder %s86, %s88
    %p92 = scmp.eq.s32.totalorder %s10, 0
    %p93 = por %p91, %p92
    %p94 = scmp.ne.s32.totalorder %s86, %s88
    %p95 = scmp.eq.s32.totalorder %s15, 7
    %p96 = por %p94, %p95
    %p97 = scmp.ne.s32.totalorder %s88, %s89
    %p98 = scmp.eq.s32.totalorder %s15, 0
    %p99 = por %p97, %p98
    %p100 = scmp.ne.s32.totalorder %s88, %s89
    %p101 = scmp.eq.s32.totalorder %s16, 7
    %p102 = por %p100, %p101
    %p104 = scmp.ne.s32.totalorder %s89, %s103
    %p105 = scmp.eq.s32.totalorder %s16, 0
    %p106 = por %p104, %p105
    %s108 = sadd.s32 %s107, 1
    %p111 = scmp.eq.s32.totalorder %s10, 7
    %p112 = scmp.ne.s32.totalorder %s107, %s109
    %p113 = scmp.eq.s32.totalorder %s10, 0
    %p114 = por %p112, %p113
    %p115 = scmp.ne.s32.totalorder %s107, %s109
    %p116 = scmp.eq.s32.totalorder %s15, 7
    %p117 = por %p115, %p116
    %p118 = scmp.ne.s32.totalorder %s109, %s110
    %p119 = scmp.eq.s32.totalorder %s15, 0
    %p120 = por %p118, %p119
    %p121 = scmp.ne.s32.totalorder %s109, %s110
    %p122 = scmp.eq.s32.totalorder %s16, 7
    %p123 = por %p121, %p122
    %p125 = scmp.ne.s32.totalorder %s110, %s124
    %p126 = scmp.eq.s32.totalorder %s16, 0
    %p127 = por %p125, %p126
    %s128 = ssub.s32 %s17, %s29
    %s129 = ssub.s32 %s18, %s25
    %s130 = sor.u32 %s128, %s129
    %p131 = scmp.eq.s32.totalorder %s130, 0
    %s133 = sadd.s32 %s132, 1
    %s134 = scalar_select %p131, %s132, %s133
    %p137 = pneg %p131
    %p138 = scmp.eq.s32.totalorder %s10, 7
    %p139 = por %p137, %p138
    %p140 = scmp.ne.s32.totalorder %s132, %s135
    %p141 = scmp.eq.s32.totalorder %s10, 0
    %p142 = por %p140, %p141
    %p143 = scmp.ne.s32.totalorder %s132, %s135
    %p144 = scmp.eq.s32.totalorder %s15, 7
    %p145 = por %p143, %p144
    %p146 = scmp.ne.s32.totalorder %s135, %s136
    %p147 = scmp.eq.s32.totalorder %s15, 0
    %p148 = por %p146, %p147
    %p149 = scmp.ne.s32.totalorder %s135, %s136
    %p150 = scmp.eq.s32.totalorder %s16, 7
    %p151 = por %p149, %p150
    %p153 = scmp.ne.s32.totalorder %s136, %s152
    %p154 = scmp.eq.s32.totalorder %s16, 0
    %p155 = por %p153, %p154
    %p156 = scmp.le.s32.totalorder 1, %s10
    %p157 = scmp.lt.s32.totalorder %s10, 9
    %p158 = pnand %p156, %p157
    %p159 = pneg %p158
    // Predicated region
    $region9: #{encoder_forward.2} parent=5 // pred_check
      _
    $region10: #{encoder_forward.2} parent=5 // pred_check_branch
      %161 = sbr.rel (%p158) target = $region12
    $region11: #{encoder_forward.2} parent=5 // pred_region
      %s162 = ssub.s32 %s10, 1
      // Predicated region
      $region13: #{encoder_forward.2} parent=11 // pred_check
        %p163 = pneg %p99
      $region14: #{encoder_forward.2} parent=11 // pred_check_branch
        %165 = sbr.rel (%p163) target = $region16
      $region15: #{encoder_forward.2} parent=11 // pred_region
        _
      $region16: #{encoder_forward.2} parent=11 // pred_fallthru
        _
      // Predicated region
      $region17: #{encoder_forward.2} parent=11 // pred_check
        %p166 = pneg %p120
      $region18: #{encoder_forward.2} parent=11 // pred_check_branch
        %168 = sbr.rel (%p166) target = $region20
      $region19: #{encoder_forward.2} parent=11 // pred_region
        _
      $region20: #{encoder_forward.2} parent=11 // pred_fallthru
        _
    $region12: #{encoder_forward.2} parent=5 // pred_fallthru
      _
    %p169 = scmp.lt.s32.totalorder %s10, 8
    // Predicated region
    $region21: #{encoder_forward.2} parent=5 // pred_check
      %p170 = pneg %p169
    $region22: #{encoder_forward.2} parent=5 // pred_check_branch
      %172 = sbr.rel (%p170) target = $region24
    $region23: #{encoder_forward.2} parent=5 // pred_region
      // Predicated region
      $region25: #{encoder_forward.2} parent=23 // pred_check
        %p173 = pneg %p44
      $region26: #{encoder_forward.2} parent=23 // pred_check_branch
        %175 = sbr.rel (%p173) target = $region28
      $region27: #{encoder_forward.2} parent=23 // pred_region
        %s176 = smul.u32 16, %s18
        %p177 = scmp.lt.s32.totalorder %s17, 3
        %s178 = scalar_select %p177, %s17, 3
        %p179 = scmp.lt.s32.totalorder %s176, 31
        %s180 = scalar_select %p179, %s176, 31
        %s181 = smul.addr %s180, 2
        %s182 = smul.addr %s178, 64
        %s183 = sadd.s32 %s181, %s182
        %s184 = smul.addr %s183, 4
        %s185 = scalar_lea.vmem %s0, %s184
        %s186 = smul.u32 16, %s18
      $region28: #{encoder_forward.2} parent=23 // pred_fallthru
        _
      // Predicated region
      $region29: #{encoder_forward.2} parent=23 // pred_check
        %p187 = pneg %p72
      $region30: #{encoder_forward.2} parent=23 // pred_check_branch
        %189 = sbr.rel (%p187) target = $region32
      $region31: #{encoder_forward.2} parent=23 // pred_region
        %s190 = smul.u32 16, %s18
        %p191 = scmp.lt.s32.totalorder %s17, 3
        %s192 = scalar_select %p191, %s17, 3
        %p193 = scmp.lt.s32.totalorder %s190, 31
        %s194 = scalar_select %p193, %s190, 31
        %s195 = smul.addr %s194, 2
        %s196 = smul.addr %s192, 64
        %s197 = sadd.s32 %s195, %s196
        %s198 = smul.addr %s197, 4
        %s199 = scalar_lea.vmem %s1, %s198
        %s200 = smul.u32 16, %s18
      $region32: #{encoder_forward.2} parent=23 // pred_fallthru
        _
    $region24: #{encoder_forward.2} parent=5 // pred_fallthru
      _
    %p201 = scmp.le.s32.totalorder 1, %s10
    %p202 = scmp.lt.s32.totalorder %s10, 9
    %p203 = pnand %p201, %p202
    %p204 = pneg %p203
    // Predicated region
    $region33: #{encoder_forward.2} parent=5 // pred_check
      _
    $region34: #{encoder_forward.2} parent=5 // pred_check_branch
      %206 = sbr.rel (%p203) target = $region36
    $region35: #{encoder_forward.2} parent=5 // pred_region
      %s207 = ssub.s32 %s10, 1
      %s208 = smul.u32 16, %s20
      %p209 = scmp.lt.s32.totalorder %s19, 3
      %s210 = scalar_select %p209, %s19, 3
      %p211 = scmp.lt.s32.totalorder %s208, 31
      %s212 = scalar_select %p211, %s208, 31
      %s213 = smul.addr %s212, 2
      %s214 = smul.addr %s210, 64
      %s215 = sadd.s32 %s213, %s214
      %s216 = smul.addr %s215, 4
      %s217 = scalar_lea.vmem %s0, %s216
      %p218 = pneg %p50
      %p219 = pneg %p47
      %s220 = smul.u32 16, %s20
      %p221 = scmp.lt.s32.totalorder %s19, 3
      %s222 = scalar_select %p221, %s19, 3
      %p223 = scmp.lt.s32.totalorder %s220, 31
      %s224 = scalar_select %p223, %s220, 31
      %s225 = smul.addr %s224, 2
      %s226 = smul.addr %s222, 64
      %s227 = sadd.s32 %s225, %s226
      %s228 = smul.addr %s227, 4
      %s229 = scalar_lea.vmem %s1, %s228
      %p230 = pneg %p78
      %p231 = pneg %p75
      %p232 = pneg %p99
      %p233 = pneg %p96
      %p234 = pneg %p120
      %p235 = pneg %p117
      %p236 = pneg %p148
      %p237 = pneg %p145
      %s238 = smul.u32 8, %s20
      %p239 = scmp.lt.s32.totalorder %s19, 3
      %s240 = scalar_select %p239, %s19, 3
      %p241 = scmp.lt.s32.totalorder %s238, 15
      %s242 = scalar_select %p241, %s238, 15
      %s243 = smul.addr %s242, 2
      %s244 = smul.addr %s240, 32
      %s245 = sadd.s32 %s243, %s244
      %s246 = smul.addr %s245, 4
      %s247 = scalar_lea.vmem %s4, %s246
      %s248 = smul.u32 16, %s20
      %p249 = scmp.lt.s32.totalorder %s19, 3
      %s250 = scalar_select %p249, %s19, 3
      %p251 = scmp.lt.s32.totalorder %s248, 31
      %s252 = scalar_select %p251, %s248, 31
      %s253 = smul.addr %s252, 2
      %s254 = smul.addr %s250, 64
      %s255 = sadd.s32 %s253, %s254
      %s256 = smul.addr %s255, 4
      %s257 = scalar_lea.vmem %s0, %s256
      %s258 = smul.u32 16, %s20
      %s259 = smul.u32 16, %s20
      %p260 = scmp.lt.s32.totalorder %s19, 3
      %s261 = scalar_select %p260, %s19, 3
      %p262 = scmp.lt.s32.totalorder %s259, 31
      %s263 = scalar_select %p262, %s259, 31
      %s264 = smul.addr %s263, 2
      %s265 = smul.addr %s261, 64
      %s266 = sadd.s32 %s264, %s265
      %s267 = smul.addr %s266, 4
      %s268 = scalar_lea.vmem %s1, %s267
      %s269 = smul.u32 16, %s20
      %s270 = smul.u32 8, %s20
      %p271 = scmp.lt.s32.totalorder %s19, 3
      %s272 = scalar_select %p271, %s19, 3
      %p273 = scmp.lt.s32.totalorder %s270, 15
      %s274 = scalar_select %p273, %s270, 15
      %s275 = smul.addr %s274, 2
      %s276 = smul.addr %s272, 32
      %s277 = sadd.s32 %s275, %s276
      %s278 = smul.addr %s277, 4
      %s279 = scalar_lea.vmem %s4, %s278
      %s280 = smul.u32 8, %s20
      %v282 = vld [vmem:[%s257] sm:$0xf]
      %v283 = vld [vmem:[%s257 + $0x4] sm:$0xf]
      %v284 = vld [vmem:[%s257 + $0x8] sm:$0xf]
      %v285 = vld [vmem:[%s257 + $0xc] sm:$0xf]
      %v286 = vld [vmem:[%s257 + $0x10] sm:$0xf]
      %v287 = vld [vmem:[%s257 + $0x14] sm:$0xf]
      %v288 = vld [vmem:[%s257 + $0x18] sm:$0xf]
      %v289 = vld [vmem:[%s257 + $0x1c] sm:$0xf]
      %v290 = vld [vmem:[%s257 + $0x20] sm:$0xf]
      %v291 = vld [vmem:[%s257 + $0x24] sm:$0xf]
      %v292 = vld [vmem:[%s257 + $0x28] sm:$0xf]
      %v293 = vld [vmem:[%s257 + $0x2c] sm:$0xf]
      %v294 = vld [vmem:[%s257 + $0x30] sm:$0xf]
      %v295 = vld [vmem:[%s257 + $0x34] sm:$0xf]
      %v296 = vld [vmem:[%s257 + $0x38] sm:$0xf]
      %v297 = vld [vmem:[%s257 + $0x3c] sm:$0xf]
      %v298 = vld [vmem:[%s257 + $0x40] sm:$0xf]
      %v299 = vld [vmem:[%s257 + $0x44] sm:$0xf]
      %v300 = vld [vmem:[%s257 + $0x48] sm:$0xf]
      %v301 = vld [vmem:[%s257 + $0x4c] sm:$0xf]
      %v302 = vld [vmem:[%s257 + $0x50] sm:$0xf]
      %v303 = vld [vmem:[%s257 + $0x54] sm:$0xf]
      %v304 = vld [vmem:[%s257 + $0x58] sm:$0xf]
      %v305 = vld [vmem:[%s257 + $0x5c] sm:$0xf]
      %v306 = vld [vmem:[%s257 + $0x60] sm:$0xf]
      %v307 = vld [vmem:[%s257 + $0x64] sm:$0xf]
      %v308 = vld [vmem:[%s257 + $0x68] sm:$0xf]
      %v309 = vld [vmem:[%s257 + $0x6c] sm:$0xf]
      %v310 = vld [vmem:[%s257 + $0x70] sm:$0xf]
      %v311 = vld [vmem:[%s257 + $0x74] sm:$0xf]
      %v312 = vld [vmem:[%s257 + $0x78] sm:$0xf]
      %v313 = vld [vmem:[%s257 + $0x7c] sm:$0xf]
      %v314 = vld [vmem:[%s268] sm:$0xf]
      %v315 = vld [vmem:[%s268 + $0x4] sm:$0xf]
      %v316 = vld [vmem:[%s268 + $0x8] sm:$0xf]
      %v317 = vld [vmem:[%s268 + $0xc] sm:$0xf]
      %v318 = vld [vmem:[%s268 + $0x10] sm:$0xf]
      %v319 = vld [vmem:[%s268 + $0x14] sm:$0xf]
      %v320 = vld [vmem:[%s268 + $0x18] sm:$0xf]
      %v321 = vld [vmem:[%s268 + $0x1c] sm:$0xf]
      %v322 = vld [vmem:[%s268 + $0x20] sm:$0xf]
      %v323 = vld [vmem:[%s268 + $0x24] sm:$0xf]
      %v324 = vld [vmem:[%s268 + $0x28] sm:$0xf]
      %v325 = vld [vmem:[%s268 + $0x2c] sm:$0xf]
      %v326 = vld [vmem:[%s268 + $0x30] sm:$0xf]
      %v327 = vld [vmem:[%s268 + $0x34] sm:$0xf]
      %v328 = vld [vmem:[%s268 + $0x38] sm:$0xf]
      %v329 = vld [vmem:[%s268 + $0x3c] sm:$0xf]
      %v330 = vld [vmem:[%s268 + $0x40] sm:$0xf]
      %v331 = vld [vmem:[%s268 + $0x44] sm:$0xf]
      %v332 = vld [vmem:[%s268 + $0x48] sm:$0xf]
      %v333 = vld [vmem:[%s268 + $0x4c] sm:$0xf]
      %v334 = vld [vmem:[%s268 + $0x50] sm:$0xf]
      %v335 = vld [vmem:[%s268 + $0x54] sm:$0xf]
      %v336 = vld [vmem:[%s268 + $0x58] sm:$0xf]
      %v337 = vld [vmem:[%s268 + $0x5c] sm:$0xf]
      %v338 = vld [vmem:[%s268 + $0x60] sm:$0xf]
      %v339 = vld [vmem:[%s268 + $0x64] sm:$0xf]
      %v340 = vld [vmem:[%s268 + $0x68] sm:$0xf]
      %v341 = vld [vmem:[%s268 + $0x6c] sm:$0xf]
      %v342 = vld [vmem:[%s268 + $0x70] sm:$0xf]
      %v343 = vld [vmem:[%s268 + $0x74] sm:$0xf]
      %v344 = vld [vmem:[%s268 + $0x78] sm:$0xf]
      %v345 = vld [vmem:[%s268 + $0x7c] sm:$0xf]
      %v346 = vld [vmem:[%s2] sm:$0xf]
      %v347 = vld [vmem:[%s2 + $0x4] sm:$0xf]
      %v348 = vld [vmem:[%s2 + $0x8] sm:$0xf]
      %v349 = vld [vmem:[%s2 + $0xc] sm:$0x3]
      %v382 = vunpack.c.l.b16 %v282
      %v383 = vunpack.c.l.b16 %v283
      %v384 = vunpack.c.l.b16 %v284
      %v385 = vunpack.c.l.b16 %v285
      %v386 = vunpack.c.l.b16 %v286
      %v387 = vunpack.c.l.b16 %v287
      %v388 = vunpack.c.l.b16 %v288
      %v389 = vunpack.c.l.b16 %v289
      %v390 = vunpack.c.l.b16 %v290
      %v391 = vunpack.c.l.b16 %v291
      %v392 = vunpack.c.l.b16 %v292
      %v393 = vunpack.c.l.b16 %v293
      %v394 = vunpack.c.l.b16 %v294
      %v395 = vunpack.c.l.b16 %v295
      %v396 = vunpack.c.l.b16 %v296
      %v397 = vunpack.c.l.b16 %v297
      %v398 = vunpack.c.l.b16 %v298
      %v399 = vunpack.c.l.b16 %v299
      %v400 = vunpack.c.l.b16 %v300
      %v401 = vunpack.c.l.b16 %v301
      %v402 = vunpack.c.l.b16 %v302
      %v403 = vunpack.c.l.b16 %v303
      %v404 = vunpack.c.l.b16 %v304
      %v405 = vunpack.c.l.b16 %v305
      %v406 = vunpack.c.l.b16 %v306
      %v407 = vunpack.c.l.b16 %v307
      %v408 = vunpack.c.l.b16 %v308
      %v409 = vunpack.c.l.b16 %v309
      %v410 = vunpack.c.l.b16 %v310
      %v411 = vunpack.c.l.b16 %v311
      %v412 = vunpack.c.l.b16 %v312
      %v413 = vunpack.c.l.b16 %v313
      %v414 = vpack.c.b16 %v383, %v382
      %v415 = vpack.c.b16 %v385, %v384
      %v416 = vpack.c.b16 %v387, %v386
      %v417 = vpack.c.b16 %v389, %v388
      %v418 = vpack.c.b16 %v391, %v390
      %v419 = vpack.c.b16 %v393, %v392
      %v420 = vpack.c.b16 %v395, %v394
      %v421 = vpack.c.b16 %v397, %v396
      %v422 = vpack.c.b16 %v399, %v398
      %v423 = vpack.c.b16 %v401, %v400
      %v424 = vpack.c.b16 %v403, %v402
      %v425 = vpack.c.b16 %v405, %v404
      %v426 = vpack.c.b16 %v407, %v406
      %v427 = vpack.c.b16 %v409, %v408
      %v428 = vpack.c.b16 %v411, %v410
      %v429 = vpack.c.b16 %v413, %v412
      %v434 = vunpack.c.l.b16 %v346
      %v435 = vunpack.c.l.b16 %v347
      %v436 = vunpack.c.l.b16 %v348
      %v437 = vunpack.c.l.b16 %v349
      %v438 = vpack.c.b16 %v435, %v434
      %v439 = vpack.c.b16 %v437, %v436
      %vm441 = vcmask 220160
      %v443 = vsel %vm441, %v414, 0
      %v446 = vsel %vm441, %v415, 0
      %v449 = vsel %vm441, %v416, 0
      %v452 = vsel %vm441, %v417, 0
      %v455 = vsel %vm441, %v418, 0
      %v458 = vsel %vm441, %v419, 0
      %v461 = vsel %vm441, %v420, 0
      %v464 = vsel %vm441, %v421, 0
      %v467 = vsel %vm441, %v422, 0
      %v470 = vsel %vm441, %v423, 0
      %v473 = vsel %vm441, %v424, 0
      %v476 = vsel %vm441, %v425, 0
      %v479 = vsel %vm441, %v426, 0
      %v482 = vsel %vm441, %v427, 0
      %v485 = vsel %vm441, %v428, 0
      %v488 = vsel %vm441, %v429, 0
      %vm490 = vcmask 1044480
      %vm491 = vcmask 1045504
      %v492 = vsel %vm490, 4294967295, 65535
      %v493 = vsel %vm491, %v492, 0
      %v495 = vand.u32 %v439, %v493
      %497 = vmatpush.bf16.msra.mxu0 0
      %498 = vmatpush.bf16.msra.mxu0 0
      %499 = vmatpush.bf16.msra.mxu0 0
      %500 = vmatpush.bf16.msra.mxu0 0
      %501 = vmatpush.bf16.msra.mxu0 0
      %502 = vmatpush.bf16.msra.mxu0 0
      %503 = vmatpush.bf16.msra.mxu0 %v495
      %504 = vmatpush.bf16.msra.mxu0 %v438
      %505 = vmatmul.bf16.gmra.mxu0 %v443
      %v506 = vpop.f32.mrf.mxu0
      %v507 = vadd.f32 0.0, %v506
      %v508 = vpop.f32.mrf.mxu0
      %v509 = vadd.f32 0.0, %v508
      %510 = vmatmul.bf16.gmra.mxu0 %v446
      %v511 = vpop.f32.mrf.mxu0
      %v512 = vadd.f32 0.0, %v511
      %v513 = vpop.f32.mrf.mxu0
      %v514 = vadd.f32 0.0, %v513
      %515 = vmatmul.bf16.gmra.mxu0 %v449
      %v516 = vpop.f32.mrf.mxu0
      %v517 = vadd.f32 0.0, %v516
      %v518 = vpop.f32.mrf.mxu0
      %v519 = vadd.f32 0.0, %v518
      %520 = vmatmul.bf16.gmra.mxu0 %v452
      %v521 = vpop.f32.mrf.mxu0
      %v522 = vadd.f32 0.0, %v521
      %v523 = vpop.f32.mrf.mxu0
      %v524 = vadd.f32 0.0, %v523
      %525 = vmatmul.bf16.gmra.mxu0 %v455
      %v526 = vpop.f32.mrf.mxu0
      %v527 = vadd.f32 0.0, %v526
      %v528 = vpop.f32.mrf.mxu0
      %v529 = vadd.f32 0.0, %v528
      %530 = vmatmul.bf16.gmra.mxu0 %v458
      %v531 = vpop.f32.mrf.mxu0
      %v532 = vadd.f32 0.0, %v531
      %v533 = vpop.f32.mrf.mxu0
      %v534 = vadd.f32 0.0, %v533
      %535 = vmatmul.bf16.gmra.mxu0 %v461
      %v536 = vpop.f32.mrf.mxu0
      %v537 = vadd.f32 0.0, %v536
      %v538 = vpop.f32.mrf.mxu0
      %v539 = vadd.f32 0.0, %v538
      %540 = vmatmul.bf16.gmra.mxu0 %v464
      %v541 = vpop.f32.mrf.mxu0
      %v542 = vadd.f32 0.0, %v541
      %v543 = vpop.f32.mrf.mxu0
      %v544 = vadd.f32 0.0, %v543
      %545 = vmatmul.bf16.gmra.mxu0 %v467
      %v546 = vpop.f32.mrf.mxu0
      %v547 = vadd.f32 0.0, %v546
      %v548 = vpop.f32.mrf.mxu0
      %v549 = vadd.f32 0.0, %v548
      %550 = vmatmul.bf16.gmra.mxu0 %v470
      %v551 = vpop.f32.mrf.mxu0
      %v552 = vadd.f32 0.0, %v551
      %v553 = vpop.f32.mrf.mxu0
      %v554 = vadd.f32 0.0, %v553
      %555 = vmatmul.bf16.gmra.mxu0 %v473
      %v556 = vpop.f32.mrf.mxu0
      %v557 = vadd.f32 0.0, %v556
      %v558 = vpop.f32.mrf.mxu0
      %v559 = vadd.f32 0.0, %v558
      %560 = vmatmul.bf16.gmra.mxu0 %v476
      %v561 = vpop.f32.mrf.mxu0
      %v562 = vadd.f32 0.0, %v561
      %v563 = vpop.f32.mrf.mxu0
      %v564 = vadd.f32 0.0, %v563
      %565 = vmatmul.bf16.gmra.mxu0 %v479
      %v566 = vpop.f32.mrf.mxu0
      %v567 = vadd.f32 0.0, %v566
      %v568 = vpop.f32.mrf.mxu0
      %v569 = vadd.f32 0.0, %v568
      %570 = vmatmul.bf16.gmra.mxu0 %v482
      %v571 = vpop.f32.mrf.mxu0
      %v572 = vadd.f32 0.0, %v571
      %v573 = vpop.f32.mrf.mxu0
      %v574 = vadd.f32 0.0, %v573
      %575 = vmatmul.bf16.gmra.mxu0 %v485
      %v576 = vpop.f32.mrf.mxu0
      %v577 = vadd.f32 0.0, %v576
      %v578 = vpop.f32.mrf.mxu0
      %v579 = vadd.f32 0.0, %v578
      %580 = vmatmul.bf16.gmra.mxu0 %v488
      %v581 = vpop.f32.mrf.mxu0
      %v582 = vadd.f32 0.0, %v581
      %v583 = vpop.f32.mrf.mxu0
      %v584 = vadd.f32 0.0, %v583
      %585 = vdwg.mxu0
      %v618 = vunpack.c.l.b16 %v314
      %v619 = vunpack.c.l.b16 %v315
      %v620 = vunpack.c.l.b16 %v316
      %v621 = vunpack.c.l.b16 %v317
      %v622 = vunpack.c.l.b16 %v318
      %v623 = vunpack.c.l.b16 %v319
      %v624 = vunpack.c.l.b16 %v320
      %v625 = vunpack.c.l.b16 %v321
      %v626 = vunpack.c.l.b16 %v322
      %v627 = vunpack.c.l.b16 %v323
      %v628 = vunpack.c.l.b16 %v324
      %v629 = vunpack.c.l.b16 %v325
      %v630 = vunpack.c.l.b16 %v326
      %v631 = vunpack.c.l.b16 %v327
      %v632 = vunpack.c.l.b16 %v328
      %v633 = vunpack.c.l.b16 %v329
      %v634 = vunpack.c.l.b16 %v330
      %v635 = vunpack.c.l.b16 %v331
      %v636 = vunpack.c.l.b16 %v332
      %v637 = vunpack.c.l.b16 %v333
      %v638 = vunpack.c.l.b16 %v334
      %v639 = vunpack.c.l.b16 %v335
      %v640 = vunpack.c.l.b16 %v336
      %v641 = vunpack.c.l.b16 %v337
      %v642 = vunpack.c.l.b16 %v338
      %v643 = vunpack.c.l.b16 %v339
      %v644 = vunpack.c.l.b16 %v340
      %v645 = vunpack.c.l.b16 %v341
      %v646 = vunpack.c.l.b16 %v342
      %v647 = vunpack.c.l.b16 %v343
      %v648 = vunpack.c.l.b16 %v344
      %v649 = vunpack.c.l.b16 %v345
      %v650 = vpack.c.b16 %v619, %v618
      %v651 = vpack.c.b16 %v621, %v620
      %v652 = vpack.c.b16 %v623, %v622
      %v653 = vpack.c.b16 %v625, %v624
      %v654 = vpack.c.b16 %v627, %v626
      %v655 = vpack.c.b16 %v629, %v628
      %v656 = vpack.c.b16 %v631, %v630
      %v657 = vpack.c.b16 %v633, %v632
      %v658 = vpack.c.b16 %v635, %v634
      %v659 = vpack.c.b16 %v637, %v636
      %v660 = vpack.c.b16 %v639, %v638
      %v661 = vpack.c.b16 %v641, %v640
      %v662 = vpack.c.b16 %v643, %v642
      %v663 = vpack.c.b16 %v645, %v644
      %v664 = vpack.c.b16 %v647, %v646
      %v665 = vpack.c.b16 %v649, %v648
      %v667 = vsel %vm441, %v650, 0
      %v670 = vsel %vm441, %v651, 0
      %v673 = vsel %vm441, %v652, 0
      %v676 = vsel %vm441, %v653, 0
      %v679 = vsel %vm441, %v654, 0
      %v682 = vsel %vm441, %v655, 0
      %v685 = vsel %vm441, %v656, 0
      %v688 = vsel %vm441, %v657, 0
      %v691 = vsel %vm441, %v658, 0
      %v694 = vsel %vm441, %v659, 0
      %v697 = vsel %vm441, %v660, 0
      %v700 = vsel %vm441, %v661, 0
      %v703 = vsel %vm441, %v662, 0
      %v706 = vsel %vm441, %v663, 0
      %v709 = vsel %vm441, %v664, 0
      %v712 = vsel %vm441, %v665, 0
      %714 = vmatpush.bf16.msra.mxu0 0
      %715 = vmatpush.bf16.msra.mxu0 0
      %716 = vmatpush.bf16.msra.mxu0 0
      %717 = vmatpush.bf16.msra.mxu0 0
      %718 = vmatpush.bf16.msra.mxu0 0
      %719 = vmatpush.bf16.msra.mxu0 0
      %720 = vmatpush.bf16.msra.mxu0 %v495
      %721 = vmatpush.bf16.msra.mxu0 %v438
      %722 = vmatmul.bf16.gmra.mxu0 %v667
      %v723 = vpop.f32.mrf.mxu0
      %v724 = vadd.f32 0.0, %v723
      %v725 = vpop.f32.mrf.mxu0
      %v726 = vadd.f32 0.0, %v725
      %727 = vmatmul.bf16.gmra.mxu0 %v670
      %v728 = vpop.f32.mrf.mxu0
      %v729 = vadd.f32 0.0, %v728
      %v730 = vpop.f32.mrf.mxu0
      %v731 = vadd.f32 0.0, %v730
      %732 = vmatmul.bf16.gmra.mxu0 %v673
      %v733 = vpop.f32.mrf.mxu0
      %v734 = vadd.f32 0.0, %v733
      %v735 = vpop.f32.mrf.mxu0
      %v736 = vadd.f32 0.0, %v735
      %737 = vmatmul.bf16.gmra.mxu0 %v676
      %v738 = vpop.f32.mrf.mxu0
      %v739 = vadd.f32 0.0, %v738
      %v740 = vpop.f32.mrf.mxu0
      %v741 = vadd.f32 0.0, %v740
      %742 = vmatmul.bf16.gmra.mxu0 %v679
      %v743 = vpop.f32.mrf.mxu0
      %v744 = vadd.f32 0.0, %v743
      %v745 = vpop.f32.mrf.mxu0
      %v746 = vadd.f32 0.0, %v745
      %747 = vmatmul.bf16.gmra.mxu0 %v682
      %v748 = vpop.f32.mrf.mxu0
      %v749 = vadd.f32 0.0, %v748
      %v750 = vpop.f32.mrf.mxu0
      %v751 = vadd.f32 0.0, %v750
      %752 = vmatmul.bf16.gmra.mxu0 %v685
      %v753 = vpop.f32.mrf.mxu0
      %v754 = vadd.f32 0.0, %v753
      %v755 = vpop.f32.mrf.mxu0
      %v756 = vadd.f32 0.0, %v755
      %757 = vmatmul.bf16.gmra.mxu0 %v688
      %v758 = vpop.f32.mrf.mxu0
      %v759 = vadd.f32 0.0, %v758
      %v760 = vpop.f32.mrf.mxu0
      %v761 = vadd.f32 0.0, %v760
      %762 = vmatmul.bf16.gmra.mxu0 %v691
      %v763 = vpop.f32.mrf.mxu0
      %v764 = vadd.f32 0.0, %v763
      %v765 = vpop.f32.mrf.mxu0
      %v766 = vadd.f32 0.0, %v765
      %767 = vmatmul.bf16.gmra.mxu0 %v694
      %v768 = vpop.f32.mrf.mxu0
      %v769 = vadd.f32 0.0, %v768
      %v770 = vpop.f32.mrf.mxu0
      %v771 = vadd.f32 0.0, %v770
      %772 = vmatmul.bf16.gmra.mxu0 %v697
      %v773 = vpop.f32.mrf.mxu0
      %v774 = vadd.f32 0.0, %v773
      %v775 = vpop.f32.mrf.mxu0
      %v776 = vadd.f32 0.0, %v775
      %777 = vmatmul.bf16.gmra.mxu0 %v700
      %v778 = vpop.f32.mrf.mxu0
      %v779 = vadd.f32 0.0, %v778
      %v780 = vpop.f32.mrf.mxu0
      %v781 = vadd.f32 0.0, %v780
      %782 = vmatmul.bf16.gmra.mxu0 %v703
      %v783 = vpop.f32.mrf.mxu0
      %v784 = vadd.f32 0.0, %v783
      %v785 = vpop.f32.mrf.mxu0
      %v786 = vadd.f32 0.0, %v785
      %787 = vmatmul.bf16.gmra.mxu0 %v706
      %v788 = vpop.f32.mrf.mxu0
      %v789 = vadd.f32 0.0, %v788
      %v790 = vpop.f32.mrf.mxu0
      %v791 = vadd.f32 0.0, %v790
      %792 = vmatmul.bf16.gmra.mxu0 %v709
      %v793 = vpop.f32.mrf.mxu0
      %v794 = vadd.f32 0.0, %v793
      %v795 = vpop.f32.mrf.mxu0
      %v796 = vadd.f32 0.0, %v795
      %797 = vmatmul.bf16.gmra.mxu0 %v712
      %v798 = vpop.f32.mrf.mxu0
      %v799 = vadd.f32 0.0, %v798
      %v800 = vpop.f32.mrf.mxu0
      %v801 = vadd.f32 0.0, %v800
      %802 = vdwg.mxu0
      %v803 = vmax.f32 %v507, %v724
      %v804 = vmax.f32 %v509, %v726
      %v805 = vmax.f32 %v512, %v729
      %v806 = vmax.f32 %v514, %v731
      %v807 = vmax.f32 %v517, %v734
      %v808 = vmax.f32 %v519, %v736
      %v809 = vmax.f32 %v522, %v739
      %v810 = vmax.f32 %v524, %v741
      %v811 = vmax.f32 %v527, %v744
      %v812 = vmax.f32 %v529, %v746
      %v813 = vmax.f32 %v532, %v749
      %v814 = vmax.f32 %v534, %v751
      %v815 = vmax.f32 %v537, %v754
      %v816 = vmax.f32 %v539, %v756
      %v817 = vmax.f32 %v542, %v759
      %v818 = vmax.f32 %v544, %v761
      %v819 = vmax.f32 %v547, %v764
      %v820 = vmax.f32 %v549, %v766
      %v821 = vmax.f32 %v552, %v769
      %v822 = vmax.f32 %v554, %v771
      %v823 = vmax.f32 %v557, %v774
      %v824 = vmax.f32 %v559, %v776
      %v825 = vmax.f32 %v562, %v779
      %v826 = vmax.f32 %v564, %v781
      %v827 = vmax.f32 %v567, %v784
      %v828 = vmax.f32 %v569, %v786
      %v829 = vmax.f32 %v572, %v789
      %v830 = vmax.f32 %v574, %v791
      %v831 = vmax.f32 %v577, %v794
      %v832 = vmax.f32 %v579, %v796
      %v833 = vmax.f32 %v582, %v799
      %v834 = vmax.f32 %v584, %v801
      %v835 = vld [vmem:[%s3] sm:$0x1]
      %v837 = vperm.slane %v835, 0
      %v839 = vadd.f32 %v803, %v837
      %v840 = vadd.f32 %v804, %v837
      %v841 = vadd.f32 %v805, %v837
      %v842 = vadd.f32 %v806, %v837
      %v843 = vadd.f32 %v807, %v837
      %v844 = vadd.f32 %v808, %v837
      %v845 = vadd.f32 %v809, %v837
      %v846 = vadd.f32 %v810, %v837
      %v847 = vadd.f32 %v811, %v837
      %v848 = vadd.f32 %v812, %v837
      %v849 = vadd.f32 %v813, %v837
      %v850 = vadd.f32 %v814, %v837
      %v851 = vadd.f32 %v815, %v837
      %v852 = vadd.f32 %v816, %v837
      %v853 = vadd.f32 %v817, %v837
      %v854 = vadd.f32 %v818, %v837
      %v855 = vadd.f32 %v819, %v837
      %v856 = vadd.f32 %v820, %v837
      %v857 = vadd.f32 %v821, %v837
      %v858 = vadd.f32 %v822, %v837
      %v859 = vadd.f32 %v823, %v837
      %v860 = vadd.f32 %v824, %v837
      %v861 = vadd.f32 %v825, %v837
      %v862 = vadd.f32 %v826, %v837
      %v863 = vadd.f32 %v827, %v837
      %v864 = vadd.f32 %v828, %v837
      %v865 = vadd.f32 %v829, %v837
      %v866 = vadd.f32 %v830, %v837
      %v867 = vadd.f32 %v831, %v837
      %v868 = vadd.f32 %v832, %v837
      %v869 = vadd.f32 %v833, %v837
      %v870 = vadd.f32 %v834, %v837
      %v871 = vmax.f32 %v839, 0.0
      %v872 = vmax.f32 %v840, 0.0
      %v873 = vmax.f32 %v841, 0.0
      %v874 = vmax.f32 %v842, 0.0
      %v875 = vmax.f32 %v843, 0.0
      %v876 = vmax.f32 %v844, 0.0
      %v877 = vmax.f32 %v845, 0.0
      %v878 = vmax.f32 %v846, 0.0
      %v879 = vmax.f32 %v847, 0.0
      %v880 = vmax.f32 %v848, 0.0
      %v881 = vmax.f32 %v849, 0.0
      %v882 = vmax.f32 %v850, 0.0
      %v883 = vmax.f32 %v851, 0.0
      %v884 = vmax.f32 %v852, 0.0
      %v885 = vmax.f32 %v853, 0.0
      %v886 = vmax.f32 %v854, 0.0
      %v887 = vmax.f32 %v855, 0.0
      %v888 = vmax.f32 %v856, 0.0
      %v889 = vmax.f32 %v857, 0.0
      %v890 = vmax.f32 %v858, 0.0
      %v891 = vmax.f32 %v859, 0.0
      %v892 = vmax.f32 %v860, 0.0
      %v893 = vmax.f32 %v861, 0.0
      %v894 = vmax.f32 %v862, 0.0
      %v895 = vmax.f32 %v863, 0.0
      %v896 = vmax.f32 %v864, 0.0
      %v897 = vmax.f32 %v865, 0.0
      %v898 = vmax.f32 %v866, 0.0
      %v899 = vmax.f32 %v867, 0.0
      %v900 = vmax.f32 %v868, 0.0
      %v901 = vmax.f32 %v869, 0.0
      %v902 = vmax.f32 %v870, 0.0
      %v903 = vmax.f32 %v871, %v873
      %v904 = vmax.f32 %v872, %v874
      %v905 = vmax.f32 %v875, %v877
      %v906 = vmax.f32 %v876, %v878
      %v907 = vmax.f32 %v879, %v881
      %v908 = vmax.f32 %v880, %v882
      %v909 = vmax.f32 %v883, %v885
      %v910 = vmax.f32 %v884, %v886
      %v911 = vmax.f32 %v887, %v889
      %v912 = vmax.f32 %v888, %v890
      %v913 = vmax.f32 %v891, %v893
      %v914 = vmax.f32 %v892, %v894
      %v915 = vmax.f32 %v895, %v897
      %v916 = vmax.f32 %v896, %v898
      %v917 = vmax.f32 %v899, %v901
      %v918 = vmax.f32 %v900, %v902
      %v919 = vpack.c.bf16 %v903, %v903
      %v920 = vpack.c.bf16 %v904, %v904
      %v921 = vpack.c.bf16 %v905, %v905
      %v922 = vpack.c.bf16 %v906, %v906
      %v923 = vpack.c.bf16 %v907, %v907
      %v924 = vpack.c.bf16 %v908, %v908
      %v925 = vpack.c.bf16 %v909, %v909
      %v926 = vpack.c.bf16 %v910, %v910
      %v927 = vpack.c.bf16 %v911, %v911
      %v928 = vpack.c.bf16 %v912, %v912
      %v929 = vpack.c.bf16 %v913, %v913
      %v930 = vpack.c.bf16 %v914, %v914
      %v931 = vpack.c.bf16 %v915, %v915
      %v932 = vpack.c.bf16 %v916, %v916
      %v933 = vpack.c.bf16 %v917, %v917
      %v934 = vpack.c.bf16 %v918, %v918
      %935 = vst [vmem:[%s279] sm:$0xf] %v919
      %936 = vst [vmem:[%s279 + $0x4] sm:$0xf] %v920
      %937 = vst [vmem:[%s279 + $0x8] sm:$0xf] %v921
      %938 = vst [vmem:[%s279 + $0xc] sm:$0xf] %v922
      %939 = vst [vmem:[%s279 + $0x10] sm:$0xf] %v923
      %940 = vst [vmem:[%s279 + $0x14] sm:$0xf] %v924
      %941 = vst [vmem:[%s279 + $0x18] sm:$0xf] %v925
      %942 = vst [vmem:[%s279 + $0x1c] sm:$0xf] %v926
      %943 = vst [vmem:[%s279 + $0x20] sm:$0xf] %v927
      %944 = vst [vmem:[%s279 + $0x24] sm:$0xf] %v928
      %945 = vst [vmem:[%s279 + $0x28] sm:$0xf] %v929
      %946 = vst [vmem:[%s279 + $0x2c] sm:$0xf] %v930
      %947 = vst [vmem:[%s279 + $0x30] sm:$0xf] %v931
      %948 = vst [vmem:[%s279 + $0x34] sm:$0xf] %v932
      %949 = vst [vmem:[%s279 + $0x38] sm:$0xf] %v933
      %950 = vst [vmem:[%s279 + $0x3c] sm:$0xf] %v934
      %s951 = smul.u32 8, %s20
      %p952 = scmp.lt.s32.totalorder %s19, 3
      %s953 = scalar_select %p952, %s19, 3
      %p954 = scmp.lt.s32.totalorder %s951, 15
      %s955 = scalar_select %p954, %s951, 15
      %s956 = smul.addr %s955, 2
      %s957 = smul.addr %s953, 32
      %s958 = sadd.s32 %s956, %s957
      %s959 = smul.addr %s958, 4
      %s960 = scalar_lea.vmem %s4, %s959
      // Predicated region
      $region37: #{encoder_forward.2} parent=35 // pred_check
        %p961 = pneg %p145
      $region38: #{encoder_forward.2} parent=35 // pred_check_branch
        %963 = sbr.rel (%p961) target = $region40
      $region39: #{encoder_forward.2} parent=35 // pred_region
        %s964 = smul.u32 8, %s20
      $region40: #{encoder_forward.2} parent=35 // pred_fallthru
        _
    $region36: #{encoder_forward.2} parent=5 // pred_fallthru
      _
    %p965 = scmp.le.s32.totalorder 2, %s10
    // Predicated region
    $region41: #{encoder_forward.2} parent=5 // pred_check
      %p966 = pneg %p965
    $region42: #{encoder_forward.2} parent=5 // pred_check_branch
      %968 = sbr.rel (%p966) target = $region44
    $region43: #{encoder_forward.2} parent=5 // pred_region
      %s969 = ssub.s32 %s10, 2
      // Predicated region
      $region45: #{encoder_forward.2} parent=43 // pred_check
        %p970 = pneg %p151
      $region46: #{encoder_forward.2} parent=43 // pred_check_branch
        %972 = sbr.rel (%p970) target = $region48
      $region47: #{encoder_forward.2} parent=43 // pred_region
        %s973 = smul.u32 8, %s22
        %p974 = scmp.lt.s32.totalorder %s21, 3
        %s975 = scalar_select %p974, %s21, 3
        %p976 = scmp.lt.s32.totalorder %s973, 15
        %s977 = scalar_select %p976, %s973, 15
        %s978 = smul.addr %s977, 2
        %s979 = smul.addr %s975, 32
        %s980 = sadd.s32 %s978, %s979
        %s981 = smul.addr %s980, 4
        %s982 = scalar_lea.vmem %s4, %s981
      $region48: #{encoder_forward.2} parent=43 // pred_fallthru
        _
    $region44: #{encoder_forward.2} parent=5 // pred_fallthru
      _
  $region6: #{encoder_forward.2} parent=0 // loop_footer
    %s14 = sadd.s32 1, %s10
  $region7: #{encoder_forward.2} parent=0 // loop_footer_branch
    %9 = sbr.rel target = $region3
  $region8: #{encoder_forward.2} parent=0 // loop_exit
    _

// kernel: encoder_forward.3
$region0: #{encoder_forward.3}
  #allocation0 [shape = 'u32[]', space=smem, size = 0x4, offset = 0x4, fixed_abs, tag = 'smem constant byte address 0x4 - core index']
  #allocation1 [shape = 'u32[72,128]{1,0:T(1,128)}', space=vmem, size = 0x9000, scoped, tag = 'internal scratch']
  #allocation2 [shape = 'bf16[18,48,128]{2,1,0:T(8,128)(2,1)}', space=vmem, size = 0x36000, scoped, tag = 'scratch operand']
  #allocation3 [shape = 'f32[128,128]{1,0:T(8,128)}', space=vmem, size = 0x10000, scoped, tag = 'scratch operand']
  %s0 = inlined_call_operand.vmem [shape: bf16[4,16,16,128], index: 0, kind: input, shape index: {}]
  %s1 = inlined_call_operand.vmem [shape: bf16[9,128,128], index: 1, kind: input, shape index: {}]
  %s2 = inlined_call_operand.vmem [shape: f32[1,128], index: 2, kind: input, shape index: {}]
  %s3 = inlined_call_operand.vmem [shape: f32[4,8,8,128], index: 3, kind: output, shape index: {}]
  %s4 = sld [smem:[#allocation0]]
  $region45: #{encoder_forward.3} parent=0
    _
  %s6 = ssub.s32 1, %s4
  %s7 = scalar_select 0, %s6, %s4
  loop: start=0, step=1, limit=6
  $region2: #{encoder_forward.3} parent=0 // loop_pre_header
    _
  $region3: #{encoder_forward.3} parent=0 // loop_header
    %s9 = sphi 0, %s13
    %p10 = scmp.ge.s32.totalorder %s9, 6
    %s19 = sphi 0, %s21
    %s22 = sphi 0, %s19
    %s23 = sphi 0, %s22
    %s39 = sphi 0, %s23
    %s43 = sphi 0, %s43
    %s45 = sphi 0, %s43
    %s46 = sphi 0, %s45
    %s60 = sphi 0, %s46
    %s64 = sphi 0, %s64
    %s66 = sphi 0, %s64
    %s67 = sphi 0, %s66
    %s81 = sphi 0, %s67
    %s87 = sphi 0, %s89
    %s90 = sphi 0, %s87
    %s91 = sphi 0, %s90
    %s107 = sphi 0, %s91
  $region4: #{encoder_forward.3} parent=0 // loop_header_branch
    %12 = sbr.rel (%p10) target = $region8
  $region5: #{encoder_forward.3} parent=0 // loop_body
    %s14 = ssub.s32 %s9, 1
    %s15 = ssub.s32 %s9, 2
    %s16 = sadd.s32 %s9, 1
    %s17 = ssub.s32 %s9, %s16
    %p18 = scmp.eq.s32.totalorder %s17, 0
    %s20 = sadd.s32 %s19, 1
    %s21 = scalar_select %p18, %s19, %s20
    %p24 = pneg %p18
    %p25 = scmp.eq.s32.totalorder %s9, 3
    %p26 = por %p24, %p25
    %p27 = scmp.ne.s32.totalorder %s19, %s22
    %p28 = scmp.eq.s32.totalorder %s9, 0
    %p29 = por %p27, %p28
    %p30 = scmp.ne.s32.totalorder %s19, %s22
    %p31 = scmp.eq.s32.totalorder %s14, 3
    %p32 = por %p30, %p31
    %p33 = scmp.ne.s32.totalorder %s22, %s23
    %p34 = scmp.eq.s32.totalorder %s14, 0
    %p35 = por %p33, %p34
    %p36 = scmp.ne.s32.totalorder %s22, %s23
    %p37 = scmp.eq.s32.totalorder %s15, 3
    %p38 = por %p36, %p37
    %p40 = scmp.ne.s32.totalorder %s23, %s39
    %p41 = scmp.eq.s32.totalorder %s15, 0
    %p42 = por %p40, %p41
    %s44 = sadd.s32 %s43, 1
    %p47 = scmp.eq.s32.totalorder %s9, 3
    %p48 = scmp.ne.s32.totalorder %s43, %s45
    %p49 = scmp.eq.s32.totalorder %s9, 0
    %p50 = por %p48, %p49
    %p51 = scmp.ne.s32.totalorder %s43, %s45
    %p52 = scmp.eq.s32.totalorder %s14, 3
    %p53 = por %p51, %p52
    %p54 = scmp.ne.s32.totalorder %s45, %s46
    %p55 = scmp.eq.s32.totalorder %s14, 0
    %p56 = por %p54, %p55
    %p57 = scmp.ne.s32.totalorder %s45, %s46
    %p58 = scmp.eq.s32.totalorder %s15, 3
    %p59 = por %p57, %p58
    %p61 = scmp.ne.s32.totalorder %s46, %s60
    %p62 = scmp.eq.s32.totalorder %s15, 0
    %p63 = por %p61, %p62
    %s65 = sadd.s32 %s64, 1
    %p68 = scmp.eq.s32.totalorder %s9, 3
    %p69 = scmp.ne.s32.totalorder %s64, %s66
    %p70 = scmp.eq.s32.totalorder %s9, 0
    %p71 = por %p69, %p70
    %p72 = scmp.ne.s32.totalorder %s64, %s66
    %p73 = scmp.eq.s32.totalorder %s14, 3
    %p74 = por %p72, %p73
    %p75 = scmp.ne.s32.totalorder %s66, %s67
    %p76 = scmp.eq.s32.totalorder %s14, 0
    %p77 = por %p75, %p76
    %p78 = scmp.ne.s32.totalorder %s66, %s67
    %p79 = scmp.eq.s32.totalorder %s15, 3
    %p80 = por %p78, %p79
    %p82 = scmp.ne.s32.totalorder %s67, %s81
    %p83 = scmp.eq.s32.totalorder %s15, 0
    %p84 = por %p82, %p83
    %s85 = ssub.s32 %s9, %s16
    %p86 = scmp.eq.s32.totalorder %s85, 0
    %s88 = sadd.s32 %s87, 1
    %s89 = scalar_select %p86, %s87, %s88
    %p92 = pneg %p86
    %p93 = scmp.eq.s32.totalorder %s9, 3
    %p94 = por %p92, %p93
    %p95 = scmp.ne.s32.totalorder %s87, %s90
    %p96 = scmp.eq.s32.totalorder %s9, 0
    %p97 = por %p95, %p96
    %p98 = scmp.ne.s32.totalorder %s87, %s90
    %p99 = scmp.eq.s32.totalorder %s14, 3
    %p100 = por %p98, %p99
    %p101 = scmp.ne.s32.totalorder %s90, %s91
    %p102 = scmp.eq.s32.totalorder %s14, 0
    %p103 = por %p101, %p102
    %p104 = scmp.ne.s32.totalorder %s90, %s91
    %p105 = scmp.eq.s32.totalorder %s15, 3
    %p106 = por %p104, %p105
    %p108 = scmp.ne.s32.totalorder %s91, %s107
    %p109 = scmp.eq.s32.totalorder %s15, 0
    %p110 = por %p108, %p109
    %p111 = scmp.le.s32.totalorder 1, %s9
    %p112 = scmp.lt.s32.totalorder %s9, 5
    %p113 = pnand %p111, %p112
    %p114 = pneg %p113
    // Predicated region
    $region9: #{encoder_forward.3} parent=5 // pred_check
      _
    $region10: #{encoder_forward.3} parent=5 // pred_check_branch
      %116 = sbr.rel (%p113) target = $region12
    $region11: #{encoder_forward.3} parent=5 // pred_region
      %s117 = ssub.s32 %s9, 1
      // Predicated region
      $region13: #{encoder_forward.3} parent=11 // pred_check
        %p118 = pneg %p56
      $region14: #{encoder_forward.3} parent=11 // pred_check_branch
        %120 = sbr.rel (%p118) target = $region16
      $region15: #{encoder_forward.3} parent=11 // pred_region
        _
      $region16: #{encoder_forward.3} parent=11 // pred_fallthru
        _
      // Predicated region
      $region17: #{encoder_forward.3} parent=11 // pred_check
        %p121 = pneg %p77
      $region18: #{encoder_forward.3} parent=11 // pred_check_branch
        %123 = sbr.rel (%p121) target = $region20
      $region19: #{encoder_forward.3} parent=11 // pred_region
        _
      $region20: #{encoder_forward.3} parent=11 // pred_fallthru
        _
    $region12: #{encoder_forward.3} parent=5 // pred_fallthru
      _
    %p124 = scmp.lt.s32.totalorder %s9, 4
    // Predicated region
    $region21: #{encoder_forward.3} parent=5 // pred_check
      %p125 = pneg %p124
    $region22: #{encoder_forward.3} parent=5 // pred_check_branch
      %127 = sbr.rel (%p125) target = $region24
    $region23: #{encoder_forward.3} parent=5 // pred_region
      // Predicated region
      $region25: #{encoder_forward.3} parent=23 // pred_check
        %p128 = pneg %p29
      $region26: #{encoder_forward.3} parent=23 // pred_check_branch
        %130 = sbr.rel (%p128) target = $region28
      $region27: #{encoder_forward.3} parent=23 // pred_region
        %p131 = scmp.lt.s32.totalorder %s9, 3
        %s132 = scalar_select %p131, %s9, 3
        %s133 = smul.addr %s132, 32
        %s134 = smul.addr %s133, 4
        %s135 = scalar_lea.vmem %s0, %s134
      $region28: #{encoder_forward.3} parent=23 // pred_fallthru
        _
    $region24: #{encoder_forward.3} parent=5 // pred_fallthru
      _
    %p136 = scmp.le.s32.totalorder 1, %s9
    %p137 = scmp.lt.s32.totalorder %s9, 5
    %p138 = pnand %p136, %p137
    %p139 = pneg %p138
    // Predicated region
    $region29: #{encoder_forward.3} parent=5 // pred_check
      _
    $region30: #{encoder_forward.3} parent=5 // pred_check_branch
      %141 = sbr.rel (%p138) target = $region32
    $region31: #{encoder_forward.3} parent=5 // pred_region
      %s142 = ssub.s32 %s9, 1
      %p143 = scmp.lt.s32.totalorder %s14, 3
      %s144 = scalar_select %p143, %s14, 3
      %s145 = smul.addr %s144, 32
      %s146 = smul.addr %s145, 4
      %s147 = scalar_lea.vmem %s0, %s146
      %p148 = pneg %p35
      %p149 = pneg %p32
      %p150 = pneg %p56
      %p151 = pneg %p53
      %p152 = pneg %p77
      %p153 = pneg %p74
      %p154 = pneg %p103
      %p155 = pneg %p100
      %p156 = scmp.lt.s32.totalorder %s14, 3
      %s157 = scalar_select %p156, %s14, 3
      %s158 = smul.addr %s157, 8
      %s159 = smul.addr %s158, 8
      %s160 = scalar_lea.vmem %s3, %s159
      %p161 = scmp.lt.s32.totalorder %s14, 3
      %s162 = scalar_select %p161, %s14, 3
      %s163 = smul.addr %s162, 32
      %s164 = smul.addr %s163, 4
      %s165 = scalar_lea.vmem %s0, %s164
      %p166 = scmp.lt.s32.totalorder %s14, 3
      %s167 = scalar_select %p166, %s14, 3
      %s168 = smul.addr %s167, 8
      %s169 = smul.addr %s168, 8
      %s170 = scalar_lea.vmem %s3, %s169
      %172 = vst [vmem:[#allocation2] sm:$0xf] 0
      %173 = vst [vmem:[#allocation2 + $0x4] sm:$0xf] 0
      %174 = vst [vmem:[#allocation2 + $0x18] sm:$0xf] 0
      %175 = vst [vmem:[#allocation2 + $0x1c] sm:$0xf] 0
      %176 = vst [vmem:[#allocation2 + $0x30] sm:$0xf] 0
      %177 = vst [vmem:[#allocation2 + $0x34] sm:$0xf] 0
      %178 = vst [vmem:[#allocation2 + $0x48] sm:$0xf] 0
      %179 = vst [vmem:[#allocation2 + $0x4c] sm:$0xf] 0
      %180 = vst [vmem:[#allocation2 + $0x60] sm:$0xf] 0
      %181 = vst [vmem:[#allocation2 + $0x64] sm:$0xf] 0
      %182 = vst [vmem:[#allocation2 + $0x78] sm:$0xf] 0
      %183 = vst [vmem:[#allocation2 + $0x7c] sm:$0xf] 0
      %184 = vst [vmem:[#allocation2 + $0x90] sm:$0xf] 0
      %185 = vst [vmem:[#allocation2 + $0x94] sm:$0xf] 0
      %186 = vst [vmem:[#allocation2 + $0xa8] sm:$0xf] 0
      %187 = vst [vmem:[#allocation2 + $0xac] sm:$0xf] 0
      %188 = vst [vmem:[#allocation2 + $0xc0] sm:$0xf] 0
      %189 = vst [vmem:[#allocation2 + $0xc4] sm:$0xf] 0
      %190 = vst [vmem:[#allocation2 + $0xd8] sm:$0xf] 0
      %191 = vst [vmem:[#allocation2 + $0xdc] sm:$0xf] 0
      %192 = vst [vmem:[#allocation2 + $0xf0] sm:$0xf] 0
      %193 = vst [vmem:[#allocation2 + $0xf4] sm:$0xf] 0
      %194 = vst [vmem:[#allocation2 + $0x108] sm:$0xf] 0
      %195 = vst [vmem:[#allocation2 + $0x10c] sm:$0xf] 0
      %196 = vst [vmem:[#allocation2 + $0x120] sm:$0xf] 0
      %197 = vst [vmem:[#allocation2 + $0x124] sm:$0xf] 0
      %198 = vst [vmem:[#allocation2 + $0x138] sm:$0xf] 0
      %199 = vst [vmem:[#allocation2 + $0x13c] sm:$0xf] 0
      %200 = vst [vmem:[#allocation2 + $0x150] sm:$0xf] 0
      %201 = vst [vmem:[#allocation2 + $0x154] sm:$0xf] 0
      %202 = vst [vmem:[#allocation2 + $0x168] sm:$0xf] 0
      %203 = vst [vmem:[#allocation2 + $0x16c] sm:$0xf] 0
      %204 = vst [vmem:[#allocation2 + $0x180] sm:$0xf] 0
      %205 = vst [vmem:[#allocation2 + $0x184] sm:$0xf] 0
      %206 = vst [vmem:[#allocation2 + $0x198] sm:$0xf] 0
      %207 = vst [vmem:[#allocation2 + $0x19c] sm:$0xf] 0
      %208 = vst [vmem:[#allocation2 + $0x10] sm:$0xf] 0
      %209 = vst [vmem:[#allocation2 + $0x14] sm:$0xf] 0
      %210 = vst [vmem:[#allocation2 + $0x28] sm:$0xf] 0
      %211 = vst [vmem:[#allocation2 + $0x2c] sm:$0xf] 0
      %212 = vst [vmem:[#allocation2 + $0x40] sm:$0xf] 0
      %213 = vst [vmem:[#allocation2 + $0x44] sm:$0xf] 0
      %214 = vst [vmem:[#allocation2 + $0x58] sm:$0xf] 0
      %215 = vst [vmem:[#allocation2 + $0x5c] sm:$0xf] 0
      %216 = vst [vmem:[#allocation2 + $0x70] sm:$0xf] 0
      %217 = vst [vmem:[#allocation2 + $0x74] sm:$0xf] 0
      %218 = vst [vmem:[#allocation2 + $0x88] sm:$0xf] 0
      %219 = vst [vmem:[#allocation2 + $0x8c] sm:$0xf] 0
      %220 = vst [vmem:[#allocation2 + $0xa0] sm:$0xf] 0
      %221 = vst [vmem:[#allocation2 + $0xa4] sm:$0xf] 0
      %222 = vst [vmem:[#allocation2 + $0xb8] sm:$0xf] 0
      %223 = vst [vmem:[#allocation2 + $0xbc] sm:$0xf] 0
      %224 = vst [vmem:[#allocation2 + $0xd0] sm:$0xf] 0
      %225 = vst [vmem:[#allocation2 + $0xd4] sm:$0xf] 0
      %226 = vst [vmem:[#allocation2 + $0xe8] sm:$0xf] 0
      %227 = vst [vmem:[#allocation2 + $0xec] sm:$0xf] 0
      %228 = vst [vmem:[#allocation2 + $0x100] sm:$0xf] 0
      %229 = vst [vmem:[#allocation2 + $0x104] sm:$0xf] 0
      %230 = vst [vmem:[#allocation2 + $0x118] sm:$0xf] 0
      %231 = vst [vmem:[#allocation2 + $0x11c] sm:$0xf] 0
      %232 = vst [vmem:[#allocation2 + $0x130] sm:$0xf] 0
      %233 = vst [vmem:[#allocation2 + $0x134] sm:$0xf] 0
      %234 = vst [vmem:[#allocation2 + $0x148] sm:$0xf] 0
      %235 = vst [vmem:[#allocation2 + $0x14c] sm:$0xf] 0
      %236 = vst [vmem:[#allocation2 + $0x160] sm:$0xf] 0
      %237 = vst [vmem:[#allocation2 + $0x164] sm:$0xf] 0
      %238 = vst [vmem:[#allocation2 + $0x178] sm:$0xf] 0
      %239 = vst [vmem:[#allocation2 + $0x17c] sm:$0xf] 0
      %240 = vst [vmem:[#allocation2 + $0x190] sm:$0xf] 0
      %241 = vst [vmem:[#allocation2 + $0x194] sm:$0xf] 0
      %242 = vst [vmem:[#allocation2 + $0x1a8] sm:$0xf] 0
      %243 = vst [vmem:[#allocation2 + $0x1ac] sm:$0xf] 0
      %244 = vst [vmem:[#allocation2] sm:$0xf] 0
      %245 = vst [vmem:[#allocation2 + $0x4] sm:$0xf] 0
      %246 = vst [vmem:[#allocation2 + $0x8] sm:$0xf] 0
      %247 = vst [vmem:[#allocation2 + $0xc] sm:$0xf] 0
      %248 = vst [vmem:[#allocation2 + $0x10] sm:$0xf] 0
      %249 = vst [vmem:[#allocation2 + $0x14] sm:$0xf] 0
      %s250 = scalar_lea.vmem [#allocation2], 408
      %251 = vst [vmem:[%s250] sm:$0xf] 0
      %252 = vst [vmem:[%s250 + $0x4] sm:$0xf] 0
      %253 = vst [vmem:[%s250 + $0x8] sm:$0xf] 0
      %254 = vst [vmem:[%s250 + $0xc] sm:$0xf] 0
      %255 = vst [vmem:[%s250 + $0x10] sm:$0xf] 0
      %256 = vst [vmem:[%s250 + $0x14] sm:$0xf] 0
      %v257 = vld [vmem:[%s165] sm:$0xf]
      %v258 = vld [vmem:[%s165 + $0x4] sm:$0xf]
      %v259 = vld [vmem:[%s165 + $0x8] sm:$0xf]
      %v260 = vld [vmem:[%s165 + $0xc] sm:$0xf]
      %v261 = vld [vmem:[%s165 + $0x10] sm:$0xf]
      %v262 = vld [vmem:[%s165 + $0x14] sm:$0xf]
      %v263 = vld [vmem:[%s165 + $0x18] sm:$0xf]
      %v264 = vld [vmem:[%s165 + $0x1c] sm:$0xf]
      %v265 = vld [vmem:[%s165 + $0x20] sm:$0xf]
      %v266 = vld [vmem:[%s165 + $0x24] sm:$0xf]
      %v267 = vld [vmem:[%s165 + $0x28] sm:$0xf]
      %v268 = vld [vmem:[%s165 + $0x2c] sm:$0xf]
      %v269 = vld [vmem:[%s165 + $0x30] sm:$0xf]
      %v270 = vld [vmem:[%s165 + $0x34] sm:$0xf]
      %v271 = vld [vmem:[%s165 + $0x38] sm:$0xf]
      %v272 = vld [vmem:[%s165 + $0x3c] sm:$0xf]
      %v273 = vld [vmem:[%s165 + $0x40] sm:$0xf]
      %v274 = vld [vmem:[%s165 + $0x44] sm:$0xf]
      %v275 = vld [vmem:[%s165 + $0x48] sm:$0xf]
      %v276 = vld [vmem:[%s165 + $0x4c] sm:$0xf]
      %v277 = vld [vmem:[%s165 + $0x50] sm:$0xf]
      %v278 = vld [vmem:[%s165 + $0x54] sm:$0xf]
      %v279 = vld [vmem:[%s165 + $0x58] sm:$0xf]
      %v280 = vld [vmem:[%s165 + $0x5c] sm:$0xf]
      %v281 = vld [vmem:[%s165 + $0x60] sm:$0xf]
      %v282 = vld [vmem:[%s165 + $0x64] sm:$0xf]
      %v283 = vld [vmem:[%s165 + $0x68] sm:$0xf]
      %v284 = vld [vmem:[%s165 + $0x6c] sm:$0xf]
      %v285 = vld [vmem:[%s165 + $0x70] sm:$0xf]
      %v286 = vld [vmem:[%s165 + $0x74] sm:$0xf]
      %v287 = vld [vmem:[%s165 + $0x78] sm:$0xf]
      %v288 = vld [vmem:[%s165 + $0x7c] sm:$0xf]
      %s289 = scalar_lea.vmem [#allocation2], 24
      %290 = vst [vmem:[%s289 + $0x8] sm:$0xf] %v257
      %291 = vst [vmem:[%s289 + $0xc] sm:$0xf] %v258
      %292 = vst [vmem:[%s289 + $0x20] sm:$0xf] %v259
      %293 = vst [vmem:[%s289 + $0x24] sm:$0xf] %v260
      %294 = vst [vmem:[%s289 + $0x38] sm:$0xf] %v261
      %295 = vst [vmem:[%s289 + $0x3c] sm:$0xf] %v262
      %296 = vst [vmem:[%s289 + $0x50] sm:$0xf] %v263
      %297 = vst [vmem:[%s289 + $0x54] sm:$0xf] %v264
      %298 = vst [vmem:[%s289 + $0x68] sm:$0xf] %v265
      %299 = vst [vmem:[%s289 + $0x6c] sm:$0xf] %v266
      %300 = vst [vmem:[%s289 + $0x80] sm:$0xf] %v267
      %301 = vst [vmem:[%s289 + $0x84] sm:$0xf] %v268
      %302 = vst [vmem:[%s289 + $0x98] sm:$0xf] %v269
      %303 = vst [vmem:[%s289 + $0x9c] sm:$0xf] %v270
      %304 = vst [vmem:[%s289 + $0xb0] sm:$0xf] %v271
      %305 = vst [vmem:[%s289 + $0xb4] sm:$0xf] %v272
      %306 = vst [vmem:[%s289 + $0xc8] sm:$0xf] %v273
      %307 = vst [vmem:[%s289 + $0xcc] sm:$0xf] %v274
      %308 = vst [vmem:[%s289 + $0xe0] sm:$0xf] %v275
      %309 = vst [vmem:[%s289 + $0xe4] sm:$0xf] %v276
      %310 = vst [vmem:[%s289 + $0xf8] sm:$0xf] %v277
      %311 = vst [vmem:[%s289 + $0xfc] sm:$0xf] %v278
      %312 = vst [vmem:[%s289 + $0x110] sm:$0xf] %v279
      %313 = vst [vmem:[%s289 + $0x114] sm:$0xf] %v280
      %314 = vst [vmem:[%s289 + $0x128] sm:$0xf] %v281
      %315 = vst [vmem:[%s289 + $0x12c] sm:$0xf] %v282
      %316 = vst [vmem:[%s289 + $0x140] sm:$0xf] %v283
      %317 = vst [vmem:[%s289 + $0x144] sm:$0xf] %v284
      %318 = vst [vmem:[%s289 + $0x158] sm:$0xf] %v285
      %319 = vst [vmem:[%s289 + $0x15c] sm:$0xf] %v286
      %320 = vst [vmem:[%s289 + $0x170] sm:$0xf] %v287
      %321 = vst [vmem:[%s289 + $0x174] sm:$0xf] %v288
      %v322 = vld [vmem:[#allocation2 + $0x4] sm:$0x8]
      %v323 = vld [vmem:[#allocation2 + $0x8] sm:$0xf]
      %v324 = vld [vmem:[#allocation2 + $0xc] sm:$0xf]
      %v325 = vld [vmem:[#allocation2 + $0x1c] sm:$0x8]
      %v326 = vld [vmem:[#allocation2 + $0x20] sm:$0xf]
      %v327 = vld [vmem:[#allocation2 + $0x24] sm:$0xf]
      %v328 = vld [vmem:[#allocation2 + $0x34] sm:$0x8]
      %v329 = vld [vmem:[#allocation2 + $0x38] sm:$0xf]
      %v330 = vld [vmem:[#allocation2 + $0x3c] sm:$0xf]
      %v331 = vld [vmem:[#allocation2 + $0x4c] sm:$0x8]
      %v332 = vld [vmem:[#allocation2 + $0x50] sm:$0xf]
      %v333 = vld [vmem:[#allocation2 + $0x54] sm:$0xf]
      %v334 = vld [vmem:[#allocation2 + $0x64] sm:$0x8]
      %v335 = vld [vmem:[#allocation2 + $0x68] sm:$0xf]
      %v336 = vld [vmem:[#allocation2 + $0x6c] sm:$0xf]
      %v337 = vld [vmem:[#allocation2 + $0x7c] sm:$0x8]
      %v338 = vld [vmem:[#allocation2 + $0x80] sm:$0xf]
      %v339 = vld [vmem:[#allocation2 + $0x84] sm:$0xf]
      %v340 = vld [vmem:[#allocation2 + $0x94] sm:$0x8]
      %v341 = vld [vmem:[#allocation2 + $0x98] sm:$0xf]
      %v342 = vld [vmem:[#allocation2 + $0x9c] sm:$0xf]
      %v343 = vld [vmem:[#allocation2 + $0xac] sm:$0x8]
      %v344 = vld [vmem:[#allocation2 + $0xb0] sm:$0xf]
      %v345 = vld [vmem:[#allocation2 + $0xb4] sm:$0xf]
      %v346 = vld [vmem:[#allocation2 + $0xc4] sm:$0x8]
      %v347 = vld [vmem:[#allocation2 + $0xc8] sm:$0xf]
      %v348 = vld [vmem:[#allocation2 + $0xcc] sm:$0xf]
      %v349 = vld [vmem:[#allocation2 + $0xdc] sm:$0x8]
      %v350 = vld [vmem:[#allocation2 + $0xe0] sm:$0xf]
      %v351 = vld [vmem:[#allocation2 + $0xe4] sm:$0xf]
      %v352 = vld [vmem:[#allocation2 + $0xf4] sm:$0x8]
      %v353 = vld [vmem:[#allocation2 + $0xf8] sm:$0xf]
      %v354 = vld [vmem:[#allocation2 + $0xfc] sm:$0xf]
      %v355 = vld [vmem:[#allocation2 + $0x10c] sm:$0x8]
      %v356 = vld [vmem:[#allocation2 + $0x110] sm:$0xf]
      %v357 = vld [vmem:[#allocation2 + $0x114] sm:$0xf]
      %v358 = vld [vmem:[#allocation2 + $0x124] sm:$0x8]
      %v359 = vld [vmem:[#allocation2 + $0x128] sm:$0xf]
      %v360 = vld [vmem:[#allocation2 + $0x12c] sm:$0xf]
      %v361 = vld [vmem:[#allocation2 + $0x13c] sm:$0x8]
      %v362 = vld [vmem:[#allocation2 + $0x140] sm:$0xf]
      %v363 = vld [vmem:[#allocation2 + $0x144] sm:$0xf]
      %v364 = vld [vmem:[#allocation2 + $0x154] sm:$0x8]
      %v365 = vld [vmem:[#allocation2 + $0x158] sm:$0xf]
      %v366 = vld [vmem:[#allocation2 + $0x15c] sm:$0xf]
      %v367 = vld [vmem:[#allocation2 + $0x16c] sm:$0x8]
      %v368 = vld [vmem:[#allocation2 + $0x170] sm:$0xf]
      %v369 = vld [vmem:[#allocation2 + $0x174] sm:$0xf]
      %vm370 = vsmask.f32 256
      %vm371 = vsmask.f32 4368
      %vm372 = vmor %vm370, %vm371
      %v374 = vshrl.u32 %v322, 16
      %v376 = vrot.slane %v374, 7
      %v377 = vrot.slane %v376, 4
      %v379 = vshrl.u32 %v323, 16
      %v381 = vrot.slane %v379, 7
      %v382 = vshll.u32 %v323, 16
      %v384 = vor.u32 %v381, %v382
      %v385 = vsel %vm372, %v377, %v384
      %v386 = vrot.slane %v381, 4
      %v388 = vshrl.u32 %v324, 16
      %v390 = vrot.slane %v388, 7
      %v391 = vshll.u32 %v324, 16
      %v393 = vor.u32 %v390, %v391
      %v394 = vsel %vm372, %v386, %v393
      %v396 = vshrl.u32 %v325, 16
      %v398 = vrot.slane %v396, 7
      %v399 = vrot.slane %v398, 4
      %v401 = vshrl.u32 %v326, 16
      %v403 = vrot.slane %v401, 7
      %v404 = vshll.u32 %v326, 16
      %v406 = vor.u32 %v403, %v404
      %v407 = vsel %vm372, %v399, %v406
      %v408 = vrot.slane %v403, 4
      %v410 = vshrl.u32 %v327, 16
      %v412 = vrot.slane %v410, 7
      %v413 = vshll.u32 %v327, 16
      %v415 = vor.u32 %v412, %v413
      %v416 = vsel %vm372, %v408, %v415
      %v418 = vshrl.u32 %v328, 16
      %v420 = vrot.slane %v418, 7
      %v421 = vrot.slane %v420, 4
      %v423 = vshrl.u32 %v329, 16
      %v425 = vrot.slane %v423, 7
      %v426 = vshll.u32 %v329, 16
      %v428 = vor.u32 %v425, %v426
      %v429 = vsel %vm372, %v421, %v428
      %v430 = vrot.slane %v425, 4
      %v432 = vshrl.u32 %v330, 16
      %v434 = vrot.slane %v432, 7
      %v435 = vshll.u32 %v330, 16
      %v437 = vor.u32 %v434, %v435
      %v438 = vsel %vm372, %v430, %v437
      %v440 = vshrl.u32 %v331, 16
      %v442 = vrot.slane %v440, 7
      %v443 = vrot.slane %v442, 4
      %v445 = vshrl.u32 %v332, 16
      %v447 = vrot.slane %v445, 7
      %v448 = vshll.u32 %v332, 16
      %v450 = vor.u32 %v447, %v448
      %v451 = vsel %vm372, %v443, %v450
      %v452 = vrot.slane %v447, 4
      %v454 = vshrl.u32 %v333, 16
      %v456 = vrot.slane %v454, 7
      %v457 = vshll.u32 %v333, 16
      %v459 = vor.u32 %v456, %v457
      %v460 = vsel %vm372, %v452, %v459
      %v462 = vshrl.u32 %v334, 16
      %v464 = vrot.slane %v462, 7
      %v465 = vrot.slane %v464, 4
      %v467 = vshrl.u32 %v335, 16
      %v469 = vrot.slane %v467, 7
      %v470 = vshll.u32 %v335, 16
      %v472 = vor.u32 %v469, %v470
      %v473 = vsel %vm372, %v465, %v472
      %v474 = vrot.slane %v469, 4
      %v476 = vshrl.u32 %v336, 16
      %v478 = vrot.slane %v476, 7
      %v479 = vshll.u32 %v336, 16
      %v481 = vor.u32 %v478, %v479
      %v482 = vsel %vm372, %v474, %v481
      %v484 = vshrl.u32 %v337, 16
      %v486 = vrot.slane %v484, 7
      %v487 = vrot.slane %v486, 4
      %v489 = vshrl.u32 %v338, 16
      %v491 = vrot.slane %v489, 7
      %v492 = vshll.u32 %v338, 16
      %v494 = vor.u32 %v491, %v492
      %v495 = vsel %vm372, %v487, %v494
      %v496 = vrot.slane %v491, 4
      %v498 = vshrl.u32 %v339, 16
      %v500 = vrot.slane %v498, 7
      %v501 = vshll.u32 %v339, 16
      %v503 = vor.u32 %v500, %v501
      %v504 = vsel %vm372, %v496, %v503
      %v506 = vshrl.u32 %v340, 16
      %v508 = vrot.slane %v506, 7
      %v509 = vrot.slane %v508, 4
      %v511 = vshrl.u32 %v341, 16
      %v513 = vrot.slane %v511, 7
      %v514 = vshll.u32 %v341, 16
      %v516 = vor.u32 %v513, %v514
      %v517 = vsel %vm372, %v509, %v516
      %v518 = vrot.slane %v513, 4
      %v520 = vshrl.u32 %v342, 16
      %v522 = vrot.slane %v520, 7
      %v523 = vshll.u32 %v342, 16
      %v525 = vor.u32 %v522, %v523
      %v526 = vsel %vm372, %v518, %v525
      %v528 = vshrl.u32 %v343, 16
      %v530 = vrot.slane %v528, 7
      %v531 = vrot.slane %v530, 4
      %v533 = vshrl.u32 %v344, 16
      %v535 = vrot.slane %v533, 7
      %v536 = vshll.u32 %v344, 16
      %v538 = vor.u32 %v535, %v536
      %v539 = vsel %vm372, %v531, %v538
      %v540 = vrot.slane %v535, 4
      %v542 = vshrl.u32 %v345, 16
      %v544 = vrot.slane %v542, 7
      %v545 = vshll.u32 %v345, 16
      %v547 = vor.u32 %v544, %v545
      %v548 = vsel %vm372, %v540, %v547
      %v550 = vshrl.u32 %v346, 16
      %v552 = vrot.slane %v550, 7
      %v553 = vrot.slane %v552, 4
      %v555 = vshrl.u32 %v347, 16
      %v557 = vrot.slane %v555, 7
      %v558 = vshll.u32 %v347, 16
      %v560 = vor.u32 %v557, %v558
      %v561 = vsel %vm372, %v553, %v560
      %v562 = vrot.slane %v557, 4
      %v564 = vshrl.u32 %v348, 16
      %v566 = vrot.slane %v564, 7
      %v567 = vshll.u32 %v348, 16
      %v569 = vor.u32 %v566, %v567
      %v570 = vsel %vm372, %v562, %v569
      %v572 = vshrl.u32 %v349, 16
      %v574 = vrot.slane %v572, 7
      %v575 = vrot.slane %v574, 4
      %v577 = vshrl.u32 %v350, 16
      %v579 = vrot.slane %v577, 7
      %v580 = vshll.u32 %v350, 16
      %v582 = vor.u32 %v579, %v580
      %v583 = vsel %vm372, %v575, %v582
      %v584 = vrot.slane %v579, 4
      %v586 = vshrl.u32 %v351, 16
      %v588 = vrot.slane %v586, 7
      %v589 = vshll.u32 %v351, 16
      %v591 = vor.u32 %v588, %v589
      %v592 = vsel %vm372, %v584, %v591
      %v594 = vshrl.u32 %v352, 16
      %v596 = vrot.slane %v594, 7
      %v597 = vrot.slane %v596, 4
      %v599 = vshrl.u32 %v353, 16
      %v601 = vrot.slane %v599, 7
      %v602 = vshll.u32 %v353, 16
      %v604 = vor.u32 %v601, %v602
      %v605 = vsel %vm372, %v597, %v604
      %v606 = vrot.slane %v601, 4
      %v608 = vshrl.u32 %v354, 16
      %v610 = vrot.slane %v608, 7
      %v611 = vshll.u32 %v354, 16
      %v613 = vor.u32 %v610, %v611
      %v614 = vsel %vm372, %v606, %v613
      %v616 = vshrl.u32 %v355, 16
      %v618 = vrot.slane %v616, 7
      %v619 = vrot.slane %v618, 4
      %v621 = vshrl.u32 %v356, 16
      %v623 = vrot.slane %v621, 7
      %v624 = vshll.u32 %v356, 16
      %v626 = vor.u32 %v623, %v624
      %v627 = vsel %vm372, %v619, %v626
      %v628 = vrot.slane %v623, 4
      %v630 = vshrl.u32 %v357, 16
      %v632 = vrot.slane %v630, 7
      %v633 = vshll.u32 %v357, 16
      %v635 = vor.u32 %v632, %v633
      %v636 = vsel %vm372, %v628, %v635
      %v638 = vshrl.u32 %v358, 16
      %v640 = vrot.slane %v638, 7
      %v641 = vrot.slane %v640, 4
      %v643 = vshrl.u32 %v359, 16
      %v645 = vrot.slane %v643, 7
      %v646 = vshll.u32 %v359, 16
      %v648 = vor.u32 %v645, %v646
      %v649 = vsel %vm372, %v641, %v648
      %v650 = vrot.slane %v645, 4
      %v652 = vshrl.u32 %v360, 16
      %v654 = vrot.slane %v652, 7
      %v655 = vshll.u32 %v360, 16
      %v657 = vor.u32 %v654, %v655
      %v658 = vsel %vm372, %v650, %v657
      %v660 = vshrl.u32 %v361, 16
      %v662 = vrot.slane %v660, 7
      %v663 = vrot.slane %v662, 4
      %v665 = vshrl.u32 %v362, 16
      %v667 = vrot.slane %v665, 7
      %v668 = vshll.u32 %v362, 16
      %v670 = vor.u32 %v667, %v668
      %v671 = vsel %vm372, %v663, %v670
      %v672 = vrot.slane %v667, 4
      %v674 = vshrl.u32 %v363, 16
      %v676 = vrot.slane %v674, 7
      %v677 = vshll.u32 %v363, 16
      %v679 = vor.u32 %v676, %v677
      %v680 = vsel %vm372, %v672, %v679
      %v682 = vshrl.u32 %v364, 16
      %v684 = vrot.slane %v682, 7
      %v685 = vrot.slane %v684, 4
      %v687 = vshrl.u32 %v365, 16
      %v689 = vrot.slane %v687, 7
      %v690 = vshll.u32 %v365, 16
      %v692 = vor.u32 %v689, %v690
      %v693 = vsel %vm372, %v685, %v692
      %v694 = vrot.slane %v689, 4
      %v696 = vshrl.u32 %v366, 16
      %v698 = vrot.slane %v696, 7
      %v699 = vshll.u32 %v366, 16
      %v701 = vor.u32 %v698, %v699
      %v702 = vsel %vm372, %v694, %v701
      %v704 = vshrl.u32 %v367, 16
      %v706 = vrot.slane %v704, 7
      %v707 = vrot.slane %v706, 4
      %v709 = vshrl.u32 %v368, 16
      %v711 = vrot.slane %v709, 7
      %v712 = vshll.u32 %v368, 16
      %v714 = vor.u32 %v711, %v712
      %v715 = vsel %vm372, %v707, %v714
      %v716 = vrot.slane %v711, 4
      %v718 = vshrl.u32 %v369, 16
      %v720 = vrot.slane %v718, 7
      %v721 = vshll.u32 %v369, 16
      %v723 = vor.u32 %v720, %v721
      %v724 = vsel %vm372, %v716, %v723
      %v725 = vld [vmem:[%s1] sm:$0xf]
      %v726 = vld [vmem:[%s1 + $0x4] sm:$0xf]
      %v727 = vld [vmem:[%s1 + $0x8] sm:$0xf]
      %v728 = vld [vmem:[%s1 + $0xc] sm:$0xf]
      %v729 = vld [vmem:[%s1 + $0x10] sm:$0xf]
      %v730 = vld [vmem:[%s1 + $0x14] sm:$0xf]
      %v731 = vld [vmem:[%s1 + $0x18] sm:$0xf]
      %v732 = vld [vmem:[%s1 + $0x1c] sm:$0xf]
      %v733 = vld [vmem:[%s1 + $0x20] sm:$0xf]
      %v734 = vld [vmem:[%s1 + $0x24] sm:$0xf]
      %v735 = vld [vmem:[%s1 + $0x28] sm:$0xf]
      %v736 = vld [vmem:[%s1 + $0x2c] sm:$0xf]
      %v737 = vld [vmem:[%s1 + $0x30] sm:$0xf]
      %v738 = vld [vmem:[%s1 + $0x34] sm:$0xf]
      %v739 = vld [vmem:[%s1 + $0x38] sm:$0xf]
      %v740 = vld [vmem:[%s1 + $0x3c] sm:$0xf]
      %s741 = scalar_lea.vmem %s1, 64
      %v742 = vld [vmem:[%s741] sm:$0xf]
      %v743 = vld [vmem:[%s741 + $0x4] sm:$0xf]
      %v744 = vld [vmem:[%s741 + $0x8] sm:$0xf]
      %v745 = vld [vmem:[%s741 + $0xc] sm:$0xf]
      %v746 = vld [vmem:[%s741 + $0x10] sm:$0xf]
      %v747 = vld [vmem:[%s741 + $0x14] sm:$0xf]
      %v748 = vld [vmem:[%s741 + $0x18] sm:$0xf]
      %v749 = vld [vmem:[%s741 + $0x1c] sm:$0xf]
      %v750 = vld [vmem:[%s741 + $0x20] sm:$0xf]
      %v751 = vld [vmem:[%s741 + $0x24] sm:$0xf]
      %v752 = vld [vmem:[%s741 + $0x28] sm:$0xf]
      %v753 = vld [vmem:[%s741 + $0x2c] sm:$0xf]
      %v754 = vld [vmem:[%s741 + $0x30] sm:$0xf]
      %v755 = vld [vmem:[%s741 + $0x34] sm:$0xf]
      %v756 = vld [vmem:[%s741 + $0x38] sm:$0xf]
      %v757 = vld [vmem:[%s741 + $0x3c] sm:$0xf]
      %v790 = vunpack.c.l.b16 %v323
      %v791 = vunpack.c.l.b16 %v324
      %v792 = vunpack.c.l.b16 %v326
      %v793 = vunpack.c.l.b16 %v327
      %v794 = vunpack.c.l.b16 %v329
      %v795 = vunpack.c.l.b16 %v330
      %v796 = vunpack.c.l.b16 %v332
      %v797 = vunpack.c.l.b16 %v333
      %v798 = vunpack.c.l.b16 %v335
      %v799 = vunpack.c.l.b16 %v336
      %v800 = vunpack.c.l.b16 %v338
      %v801 = vunpack.c.l.b16 %v339
      %v802 = vunpack.c.l.b16 %v341
      %v803 = vunpack.c.l.b16 %v342
      %v804 = vunpack.c.l.b16 %v344
      %v805 = vunpack.c.l.b16 %v345
      %v806 = vunpack.c.l.b16 %v347
      %v807 = vunpack.c.l.b16 %v348
      %v808 = vunpack.c.l.b16 %v350
      %v809 = vunpack.c.l.b16 %v351
      %v810 = vunpack.c.l.b16 %v353
      %v811 = vunpack.c.l.b16 %v354
      %v812 = vunpack.c.l.b16 %v356
      %v813 = vunpack.c.l.b16 %v357
      %v814 = vunpack.c.l.b16 %v359
      %v815 = vunpack.c.l.b16 %v360
      %v816 = vunpack.c.l.b16 %v362
      %v817 = vunpack.c.l.b16 %v363
      %v818 = vunpack.c.l.b16 %v365
      %v819 = vunpack.c.l.b16 %v366
      %v820 = vunpack.c.l.b16 %v368
      %v821 = vunpack.c.l.b16 %v369
      %v822 = vpack.c.b16 %v791, %v790
      %v823 = vpack.c.b16 %v793, %v792
      %v824 = vpack.c.b16 %v795, %v794
      %v825 = vpack.c.b16 %v797, %v796
      %v826 = vpack.c.b16 %v799, %v798
      %v827 = vpack.c.b16 %v801, %v800
      %v828 = vpack.c.b16 %v803, %v802
      %v829 = vpack.c.b16 %v805, %v804
      %v830 = vpack.c.b16 %v807, %v806
      %v831 = vpack.c.b16 %v809, %v808
      %v832 = vpack.c.b16 %v811, %v810
      %v833 = vpack.c.b16 %v813, %v812
      %v834 = vpack.c.b16 %v815, %v814
      %v835 = vpack.c.b16 %v817, %v816
      %v836 = vpack.c.b16 %v819, %v818
      %v837 = vpack.c.b16 %v821, %v820
      %v870 = vunpack.c.l.b16 %v742
      %v871 = vunpack.c.l.b16 %v743
      %v872 = vunpack.c.l.b16 %v744
      %v873 = vunpack.c.l.b16 %v745
      %v874 = vunpack.c.l.b16 %v746
      %v875 = vunpack.c.l.b16 %v747
      %v876 = vunpack.c.l.b16 %v748
      %v877 = vunpack.c.l.b16 %v749
      %v878 = vunpack.c.l.b16 %v750
      %v879 = vunpack.c.l.b16 %v751
      %v880 = vunpack.c.l.b16 %v752
      %v881 = vunpack.c.l.b16 %v753
      %v882 = vunpack.c.l.b16 %v754
      %v883 = vunpack.c.l.b16 %v755
      %v884 = vunpack.c.l.b16 %v756
      %v885 = vunpack.c.l.b16 %v757
      %v886 = vpack.c.b16 %v871, %v870
      %v887 = vpack.c.b16 %v873, %v872
      %v888 = vpack.c.b16 %v875, %v874
      %v889 = vpack.c.b16 %v877, %v876
      %v890 = vpack.c.b16 %v879, %v878
      %v891 = vpack.c.b16 %v881, %v880
      %v892 = vpack.c.b16 %v883, %v882
      %v893 = vpack.c.b16 %v885, %v884
      %902 = vmatpush.bf16.msra.mxu0 %v893
      %903 = vmatpush.bf16.msra.mxu0 %v892
      %904 = vmatpush.bf16.msra.mxu0 %v891
      %905 = vmatpush.bf16.msra.mxu0 %v890
      %906 = vmatpush.bf16.msra.mxu0 %v889
      %907 = vmatpush.bf16.msra.mxu0 %v888
      %908 = vmatpush.bf16.msra.mxu0 %v887
      %909 = vmatpush.bf16.msra.mxu0 %v886
      %910 = vmatmul.bf16.gmra.mxu0 %v822
      %v911 = vpop.f32.mrf.mxu0
      %v912 = vadd.f32 0.0, %v911
      %v913 = vpop.f32.mrf.mxu0
      %v914 = vadd.f32 0.0, %v913
      %915 = vmatmul.bf16.gmra.mxu0 %v823
      %v916 = vpop.f32.mrf.mxu0
      %v917 = vadd.f32 0.0, %v916
      %v918 = vpop.f32.mrf.mxu0
      %v919 = vadd.f32 0.0, %v918
      %920 = vmatmul.bf16.gmra.mxu0 %v824
      %v921 = vpop.f32.mrf.mxu0
      %v922 = vadd.f32 0.0, %v921
      %v923 = vpop.f32.mrf.mxu0
      %v924 = vadd.f32 0.0, %v923
      %925 = vmatmul.bf16.gmra.mxu0 %v825
      %v926 = vpop.f32.mrf.mxu0
      %v927 = vadd.f32 0.0, %v926
      %v928 = vpop.f32.mrf.mxu0
      %v929 = vadd.f32 0.0, %v928
      %930 = vmatmul.bf16.gmra.mxu0 %v826
      %v931 = vpop.f32.mrf.mxu0
      %v932 = vadd.f32 0.0, %v931
      %v933 = vpop.f32.mrf.mxu0
      %v934 = vadd.f32 0.0, %v933
      %935 = vmatmul.bf16.gmra.mxu0 %v827
      %v936 = vpop.f32.mrf.mxu0
      %v937 = vadd.f32 0.0, %v936
      %v938 = vpop.f32.mrf.mxu0
      %v939 = vadd.f32 0.0, %v938
      %940 = vmatmul.bf16.gmra.mxu0 %v828
      %v941 = vpop.f32.mrf.mxu0
      %v942 = vadd.f32 0.0, %v941
      %v943 = vpop.f32.mrf.mxu0
      %v944 = vadd.f32 0.0, %v943
      %945 = vmatmul.bf16.gmra.mxu0 %v829
      %v946 = vpop.f32.mrf.mxu0
      %v947 = vadd.f32 0.0, %v946
      %v948 = vpop.f32.mrf.mxu0
      %v949 = vadd.f32 0.0, %v948
      %950 = vmatmul.bf16.gmra.mxu0 %v830
      %v951 = vpop.f32.mrf.mxu0
      %v952 = vadd.f32 0.0, %v951
      %v953 = vpop.f32.mrf.mxu0
      %v954 = vadd.f32 0.0, %v953
      %955 = vmatmul.bf16.gmra.mxu0 %v831
      %v956 = vpop.f32.mrf.mxu0
      %v957 = vadd.f32 0.0, %v956
      %v958 = vpop.f32.mrf.mxu0
      %v959 = vadd.f32 0.0, %v958
      %960 = vmatmul.bf16.gmra.mxu0 %v832
      %v961 = vpop.f32.mrf.mxu0
      %v962 = vadd.f32 0.0, %v961
      %v963 = vpop.f32.mrf.mxu0
      %v964 = vadd.f32 0.0, %v963
      %965 = vmatmul.bf16.gmra.mxu0 %v833
      %v966 = vpop.f32.mrf.mxu0
      %v967 = vadd.f32 0.0, %v966
      %v968 = vpop.f32.mrf.mxu0
      %v969 = vadd.f32 0.0, %v968
      %970 = vmatmul.bf16.gmra.mxu0 %v834
      %v971 = vpop.f32.mrf.mxu0
      %v972 = vadd.f32 0.0, %v971
      %v973 = vpop.f32.mrf.mxu0
      %v974 = vadd.f32 0.0, %v973
      %975 = vmatmul.bf16.gmra.mxu0 %v835
      %v976 = vpop.f32.mrf.mxu0
      %v977 = vadd.f32 0.0, %v976
      %v978 = vpop.f32.mrf.mxu0
      %v979 = vadd.f32 0.0, %v978
      %980 = vmatmul.bf16.gmra.mxu0 %v836
      %v981 = vpop.f32.mrf.mxu0
      %v982 = vadd.f32 0.0, %v981
      %v983 = vpop.f32.mrf.mxu0
      %v984 = vadd.f32 0.0, %v983
      %985 = vmatmul.bf16.gmra.mxu0 %v837
      %v986 = vpop.f32.mrf.mxu0
      %v987 = vadd.f32 0.0, %v986
      %v988 = vpop.f32.mrf.mxu0
      %v989 = vadd.f32 0.0, %v988
      %990 = vdwg.mxu0
      %v991 = vunpack.c.l.b16 %v385
      %v992 = vunpack.c.l.b16 %v394
      %v993 = vunpack.c.l.b16 %v407
      %v994 = vunpack.c.l.b16 %v416
      %v995 = vunpack.c.l.b16 %v429
      %v996 = vunpack.c.l.b16 %v438
      %v997 = vunpack.c.l.b16 %v451
      %v998 = vunpack.c.l.b16 %v460
      %v999 = vunpack.c.l.b16 %v473
      %v1000 = vunpack.c.l.b16 %v482
      %v1001 = vunpack.c.l.b16 %v495
      %v1002 = vunpack.c.l.b16 %v504
      %v1003 = vunpack.c.l.b16 %v517
      %v1004 = vunpack.c.l.b16 %v526
      %v1005 = vunpack.c.l.b16 %v539
      %v1006 = vunpack.c.l.b16 %v548
      %v1007 = vunpack.c.l.b16 %v561
      %v1008 = vunpack.c.l.b16 %v570
      %v1009 = vunpack.c.l.b16 %v583
      %v1010 = vunpack.c.l.b16 %v592
      %v1011 = vunpack.c.l.b16 %v605
      %v1012 = vunpack.c.l.b16 %v614
      %v1013 = vunpack.c.l.b16 %v627
      %v1014 = vunpack.c.l.b16 %v636
      %v1015 = vunpack.c.l.b16 %v649
      %v1016 = vunpack.c.l.b16 %v658
      %v1017 = vunpack.c.l.b16 %v671
      %v1018 = vunpack.c.l.b16 %v680
      %v1019 = vunpack.c.l.b16 %v693
      %v1020 = vunpack.c.l.b16 %v702
      %v1021 = vunpack.c.l.b16 %v715
      %v1022 = vunpack.c.l.b16 %v724
      %v1023 = vpack.c.b16 %v992, %v991
      %v1024 = vpack.c.b16 %v994, %v993
      %v1025 = vpack.c.b16 %v996, %v995
      %v1026 = vpack.c.b16 %v998, %v997
      %v1027 = vpack.c.b16 %v1000, %v999
      %v1028 = vpack.c.b16 %v1002, %v1001
      %v1029 = vpack.c.b16 %v1004, %v1003
      %v1030 = vpack.c.b16 %v1006, %v1005
      %v1031 = vpack.c.b16 %v1008, %v1007
      %v1032 = vpack.c.b16 %v1010, %v1009
      %v1033 = vpack.c.b16 %v1012, %v1011
      %v1034 = vpack.c.b16 %v1014, %v1013
      %v1035 = vpack.c.b16 %v1016, %v1015
      %v1036 = vpack.c.b16 %v1018, %v1017
      %v1037 = vpack.c.b16 %v1020, %v1019
      %v1038 = vpack.c.b16 %v1022, %v1021
      %v1071 = vunpack.c.l.b16 %v725
      %v1072 = vunpack.c.l.b16 %v726
      %v1073 = vunpack.c.l.b16 %v727
      %v1074 = vunpack.c.l.b16 %v728
      %v1075 = vunpack.c.l.b16 %v729
      %v1076 = vunpack.c.l.b16 %v730
      %v1077 = vunpack.c.l.b16 %v731
      %v1078 = vunpack.c.l.b16 %v732
      %v1079 = vunpack.c.l.b16 %v733
      %v1080 = vunpack.c.l.b16 %v734
      %v1081 = vunpack.c.l.b16 %v735
      %v1082 = vunpack.c.l.b16 %v736
      %v1083 = vunpack.c.l.b16 %v737
      %v1084 = vunpack.c.l.b16 %v738
      %v1085 = vunpack.c.l.b16 %v739
      %v1086 = vunpack.c.l.b16 %v740
      %v1087 = vpack.c.b16 %v1072, %v1071
      %v1088 = vpack.c.b16 %v1074, %v1073
      %v1089 = vpack.c.b16 %v1076, %v1075
      %v1090 = vpack.c.b16 %v1078, %v1077
      %v1091 = vpack.c.b16 %v1080, %v1079
      %v1092 = vpack.c.b16 %v1082, %v1081
      %v1093 = vpack.c.b16 %v1084, %v1083
      %v1094 = vpack.c.b16 %v1086, %v1085
      %1103 = vmatpush.bf16.msra.mxu0 %v1094
      %1104 = vmatpush.bf16.msra.mxu0 %v1093
      %1105 = vmatpush.bf16.msra.mxu0 %v1092
      %1106 = vmatpush.bf16.msra.mxu0 %v1091
      %1107 = vmatpush.bf16.msra.mxu0 %v1090
      %1108 = vmatpush.bf16.msra.mxu0 %v1089
      %1109 = vmatpush.bf16.msra.mxu0 %v1088
      %1110 = vmatpush.bf16.msra.mxu0 %v1087
      %1111 = vmatmul.bf16.gmra.mxu0 %v1023
      %v1112 = vpop.f32.mrf.mxu0
      %v1113 = vadd.f32 %v912, %v1112
      %v1114 = vpop.f32.mrf.mxu0
      %v1115 = vadd.f32 %v914, %v1114
      %1116 = vmatmul.bf16.gmra.mxu0 %v1024
      %v1117 = vpop.f32.mrf.mxu0
      %v1118 = vadd.f32 %v917, %v1117
      %v1119 = vpop.f32.mrf.mxu0
      %v1120 = vadd.f32 %v919, %v1119
      %1121 = vmatmul.bf16.gmra.mxu0 %v1025
      %v1122 = vpop.f32.mrf.mxu0
      %v1123 = vadd.f32 %v922, %v1122
      %v1124 = vpop.f32.mrf.mxu0
      %v1125 = vadd.f32 %v924, %v1124
      %1126 = vmatmul.bf16.gmra.mxu0 %v1026
      %v1127 = vpop.f32.mrf.mxu0
      %v1128 = vadd.f32 %v927, %v1127
      %v1129 = vpop.f32.mrf.mxu0
      %v1130 = vadd.f32 %v929, %v1129
      %1131 = vmatmul.bf16.gmra.mxu0 %v1027
      %v1132 = vpop.f32.mrf.mxu0
      %v1133 = vadd.f32 %v932, %v1132
      %v1134 = vpop.f32.mrf.mxu0
      %v1135 = vadd.f32 %v934, %v1134
      %1136 = vmatmul.bf16.gmra.mxu0 %v1028
      %v1137 = vpop.f32.mrf.mxu0
      %v1138 = vadd.f32 %v937, %v1137
      %v1139 = vpop.f32.mrf.mxu0
      %v1140 = vadd.f32 %v939, %v1139
      %1141 = vmatmul.bf16.gmra.mxu0 %v1029
      %v1142 = vpop.f32.mrf.mxu0
      %v1143 = vadd.f32 %v942, %v1142
      %v1144 = vpop.f32.mrf.mxu0
      %v1145 = vadd.f32 %v944, %v1144
      %1146 = vmatmul.bf16.gmra.mxu0 %v1030
      %v1147 = vpop.f32.mrf.mxu0
      %v1148 = vadd.f32 %v947, %v1147
      %v1149 = vpop.f32.mrf.mxu0
      %v1150 = vadd.f32 %v949, %v1149
      %1151 = vmatmul.bf16.gmra.mxu0 %v1031
      %v1152 = vpop.f32.mrf.mxu0
      %v1153 = vadd.f32 %v952, %v1152
      %v1154 = vpop.f32.mrf.mxu0
      %v1155 = vadd.f32 %v954, %v1154
      %1156 = vmatmul.bf16.gmra.mxu0 %v1032
      %v1157 = vpop.f32.mrf.mxu0
      %v1158 = vadd.f32 %v957, %v1157
      %v1159 = vpop.f32.mrf.mxu0
      %v1160 = vadd.f32 %v959, %v1159
      %1161 = vmatmul.bf16.gmra.mxu0 %v1033
      %v1162 = vpop.f32.mrf.mxu0
      %v1163 = vadd.f32 %v962, %v1162
      %v1164 = vpop.f32.mrf.mxu0
      %v1165 = vadd.f32 %v964, %v1164
      %1166 = vmatmul.bf16.gmra.mxu0 %v1034
      %v1167 = vpop.f32.mrf.mxu0
      %v1168 = vadd.f32 %v967, %v1167
      %v1169 = vpop.f32.mrf.mxu0
      %v1170 = vadd.f32 %v969, %v1169
      %1171 = vmatmul.bf16.gmra.mxu0 %v1035
      %v1172 = vpop.f32.mrf.mxu0
      %v1173 = vadd.f32 %v972, %v1172
      %v1174 = vpop.f32.mrf.mxu0
      %v1175 = vadd.f32 %v974, %v1174
      %1176 = vmatmul.bf16.gmra.mxu0 %v1036
      %v1177 = vpop.f32.mrf.mxu0
      %v1178 = vadd.f32 %v977, %v1177
      %v1179 = vpop.f32.mrf.mxu0
      %v1180 = vadd.f32 %v979, %v1179
      %1181 = vmatmul.bf16.gmra.mxu0 %v1037
      %v1182 = vpop.f32.mrf.mxu0
      %v1183 = vadd.f32 %v982, %v1182
      %v1184 = vpop.f32.mrf.mxu0
      %v1185 = vadd.f32 %v984, %v1184
      %1186 = vmatmul.bf16.gmra.mxu0 %v1038
      %v1187 = vpop.f32.mrf.mxu0
      %v1188 = vadd.f32 %v987, %v1187
      %v1189 = vpop.f32.mrf.mxu0
      %v1190 = vadd.f32 %v989, %v1189
      %1191 = vdwg.mxu0
      %v1192 = vld [vmem:[#allocation2 + $0x8] sm:$0xf]
      %v1193 = vld [vmem:[#allocation2 + $0xc] sm:$0xf]
      %v1194 = vld [vmem:[#allocation2 + $0x10] sm:$0x1]
      %v1195 = vld [vmem:[#allocation2 + $0x20] sm:$0xf]
      %v1196 = vld [vmem:[#allocation2 + $0x24] sm:$0xf]
      %v1197 = vld [vmem:[#allocation2 + $0x28] sm:$0x1]
      %v1198 = vld [vmem:[#allocation2 + $0x38] sm:$0xf]
      %v1199 = vld [vmem:[#allocation2 + $0x3c] sm:$0xf]
      %v1200 = vld [vmem:[#allocation2 + $0x40] sm:$0x1]
      %v1201 = vld [vmem:[#allocation2 + $0x50] sm:$0xf]
      %v1202 = vld [vmem:[#allocation2 + $0x54] sm:$0xf]
      %v1203 = vld [vmem:[#allocation2 + $0x58] sm:$0x1]
      %v1204 = vld [vmem:[#allocation2 + $0x68] sm:$0xf]
      %v1205 = vld [vmem:[#allocation2 + $0x6c] sm:$0xf]
      %v1206 = vld [vmem:[#allocation2 + $0x70] sm:$0x1]
      %v1207 = vld [vmem:[#allocation2 + $0x80] sm:$0xf]
      %v1208 = vld [vmem:[#allocation2 + $0x84] sm:$0xf]
      %v1209 = vld [vmem:[#allocation2 + $0x88] sm:$0x1]
      %v1210 = vld [vmem:[#allocation2 + $0x98] sm:$0xf]
      %v1211 = vld [vmem:[#allocation2 + $0x9c] sm:$0xf]
      %v1212 = vld [vmem:[#allocation2 + $0xa0] sm:$0x1]
      %v1213 = vld [vmem:[#allocation2 + $0xb0] sm:$0xf]
      %v1214 = vld [vmem:[#allocation2 + $0xb4] sm:$0xf]
      %v1215 = vld [vmem:[#allocation2 + $0xb8] sm:$0x1]
      %v1216 = vld [vmem:[#allocation2 + $0xc8] sm:$0xf]
      %v1217 = vld [vmem:[#allocation2 + $0xcc] sm:$0xf]
      %v1218 = vld [vmem:[#allocation2 + $0xd0] sm:$0x1]
      %v1219 = vld [vmem:[#allocation2 + $0xe0] sm:$0xf]
      %v1220 = vld [vmem:[#allocation2 + $0xe4] sm:$0xf]
      %v1221 = vld [vmem:[#allocation2 + $0xe8] sm:$0x1]
      %v1222 = vld [vmem:[#allocation2 + $0xf8] sm:$0xf]
      %v1223 = vld [vmem:[#allocation2 + $0xfc] sm:$0xf]
      %v1224 = vld [vmem:[#allocation2 + $0x100] sm:$0x1]
      %v1225 = vld [vmem:[#allocation2 + $0x110] sm:$0xf]
      %v1226 = vld [vmem:[#allocation2 + $0x114] sm:$0xf]
      %v1227 = vld [vmem:[#allocation2 + $0x118] sm:$0x1]
      %v1228 = vld [vmem:[#allocation2 + $0x128] sm:$0xf]
      %v1229 = vld [vmem:[#allocation2 + $0x12c] sm:$0xf]
      %v1230 = vld [vmem:[#allocation2 + $0x130] sm:$0x1]
      %v1231 = vld [vmem:[#allocation2 + $0x140] sm:$0xf]
      %v1232 = vld [vmem:[#allocation2 + $0x144] sm:$0xf]
      %v1233 = vld [vmem:[#allocation2 + $0x148] sm:$0x1]
      %v1234 = vld [vmem:[#allocation2 + $0x158] sm:$0xf]
      %v1235 = vld [vmem:[#allocation2 + $0x15c] sm:$0xf]
      %v1236 = vld [vmem:[#allocation2 + $0x160] sm:$0x1]
      %v1237 = vld [vmem:[#allocation2 + $0x170] sm:$0xf]
      %v1238 = vld [vmem:[#allocation2 + $0x174] sm:$0xf]
      %v1239 = vld [vmem:[#allocation2 + $0x178] sm:$0x1]
      %vm1240 = vsmask.f32 3328
      %vm1241 = vsmask.f32 7440
      %vm1242 = vmor %vm1240, %vm1241
      %v1244 = vshrl.u32 %v1192, 16
      %v1246 = vrot.slane %v1244, 4
      %v1247 = vshll.u32 %v1192, 16
      %v1249 = vrot.slane %v1247, 5
      %v1250 = vor.u32 %v1246, %v1249
      %v1251 = vrot.slane %v1250, 4
      %v1253 = vshll.u32 %v1193, 16
      %v1255 = vrot.slane %v1253, 5
      %v1256 = vsel %vm1242, %v1251, %v1255
      %v1257 = vshrl.u32 %v1193, 16
      %v1259 = vrot.slane %v1257, 4
      %v1260 = vor.u32 %v1259, %v1255
      %v1261 = vrot.slane %v1260, 4
      %v1263 = vshll.u32 %v1194, 16
      %v1265 = vrot.slane %v1263, 5
      %v1266 = vsel %vm1242, %v1261, %v1265
      %v1268 = vshrl.u32 %v1195, 16
      %v1270 = vrot.slane %v1268, 4
      %v1271 = vshll.u32 %v1195, 16
      %v1273 = vrot.slane %v1271, 5
      %v1274 = vor.u32 %v1270, %v1273
      %v1275 = vrot.slane %v1274, 4
      %v1277 = vshll.u32 %v1196, 16
      %v1279 = vrot.slane %v1277, 5
      %v1280 = vsel %vm1242, %v1275, %v1279
      %v1281 = vshrl.u32 %v1196, 16
      %v1283 = vrot.slane %v1281, 4
      %v1284 = vor.u32 %v1283, %v1279
      %v1285 = vrot.slane %v1284, 4
      %v1287 = vshll.u32 %v1197, 16
      %v1289 = vrot.slane %v1287, 5
      %v1290 = vsel %vm1242, %v1285, %v1289
      %v1292 = vshrl.u32 %v1198, 16
      %v1294 = vrot.slane %v1292, 4
      %v1295 = vshll.u32 %v1198, 16
      %v1297 = vrot.slane %v1295, 5
      %v1298 = vor.u32 %v1294, %v1297
      %v1299 = vrot.slane %v1298, 4
      %v1301 = vshll.u32 %v1199, 16
      %v1303 = vrot.slane %v1301, 5
      %v1304 = vsel %vm1242, %v1299, %v1303
      %v1305 = vshrl.u32 %v1199, 16
      %v1307 = vrot.slane %v1305, 4
      %v1308 = vor.u32 %v1307, %v1303
      %v1309 = vrot.slane %v1308, 4
      %v1311 = vshll.u32 %v1200, 16
      %v1313 = vrot.slane %v1311, 5
      %v1314 = vsel %vm1242, %v1309, %v1313
      %v1316 = vshrl.u32 %v1201, 16
      %v1318 = vrot.slane %v1316, 4
      %v1319 = vshll.u32 %v1201, 16
      %v1321 = vrot.slane %v1319, 5
      %v1322 = vor.u32 %v1318, %v1321
      %v1323 = vrot.slane %v1322, 4
      %v1325 = vshll.u32 %v1202, 16
      %v1327 = vrot.slane %v1325, 5
      %v1328 = vsel %vm1242, %v1323, %v1327
      %v1329 = vshrl.u32 %v1202, 16
      %v1331 = vrot.slane %v1329, 4
      %v1332 = vor.u32 %v1331, %v1327
      %v1333 = vrot.slane %v1332, 4
      %v1335 = vshll.u32 %v1203, 16
      %v1337 = vrot.slane %v1335, 5
      %v1338 = vsel %vm1242, %v1333, %v1337
      %v1340 = vshrl.u32 %v1204, 16
      %v1342 = vrot.slane %v1340, 4
      %v1343 = vshll.u32 %v1204, 16
      %v1345 = vrot.slane %v1343, 5
      %v1346 = vor.u32 %v1342, %v1345
      %v1347 = vrot.slane %v1346, 4
      %v1349 = vshll.u32 %v1205, 16
      %v1351 = vrot.slane %v1349, 5
      %v1352 = vsel %vm1242, %v1347, %v1351
      %v1353 = vshrl.u32 %v1205, 16
      %v1355 = vrot.slane %v1353, 4
      %v1356 = vor.u32 %v1355, %v1351
      %v1357 = vrot.slane %v1356, 4
      %v1359 = vshll.u32 %v1206, 16
      %v1361 = vrot.slane %v1359, 5
      %v1362 = vsel %vm1242, %v1357, %v1361
      %v1364 = vshrl.u32 %v1207, 16
      %v1366 = vrot.slane %v1364, 4
      %v1367 = vshll.u32 %v1207, 16
      %v1369 = vrot.slane %v1367, 5
      %v1370 = vor.u32 %v1366, %v1369
      %v1371 = vrot.slane %v1370, 4
      %v1373 = vshll.u32 %v1208, 16
      %v1375 = vrot.slane %v1373, 5
      %v1376 = vsel %vm1242, %v1371, %v1375
      %v1377 = vshrl.u32 %v1208, 16
      %v1379 = vrot.slane %v1377, 4
      %v1380 = vor.u32 %v1379, %v1375
      %v1381 = vrot.slane %v1380, 4
      %v1383 = vshll.u32 %v1209, 16
      %v1385 = vrot.slane %v1383, 5
      %v1386 = vsel %vm1242, %v1381, %v1385
      %v1388 = vshrl.u32 %v1210, 16
      %v1390 = vrot.slane %v1388, 4
      %v1391 = vshll.u32 %v1210, 16
      %v1393 = vrot.slane %v1391, 5
      %v1394 = vor.u32 %v1390, %v1393
      %v1395 = vrot.slane %v1394, 4
      %v1397 = vshll.u32 %v1211, 16
      %v1399 = vrot.slane %v1397, 5
      %v1400 = vsel %vm1242, %v1395, %v1399
      %v1401 = vshrl.u32 %v1211, 16
      %v1403 = vrot.slane %v1401, 4
      %v1404 = vor.u32 %v1403, %v1399
      %v1405 = vrot.slane %v1404, 4
      %v1407 = vshll.u32 %v1212, 16
      %v1409 = vrot.slane %v1407, 5
      %v1410 = vsel %vm1242, %v1405, %v1409
      %v1412 = vshrl.u32 %v1213, 16
      %v1414 = vrot.slane %v1412, 4
      %v1415 = vshll.u32 %v1213, 16
      %v1417 = vrot.slane %v1415, 5
      %v1418 = vor.u32 %v1414, %v1417
      %v1419 = vrot.slane %v1418, 4
      %v1421 = vshll.u32 %v1214, 16
      %v1423 = vrot.slane %v1421, 5
      %v1424 = vsel %vm1242, %v1419, %v1423
      %v1425 = vshrl.u32 %v1214, 16
      %v1427 = vrot.slane %v1425, 4
      %v1428 = vor.u32 %v1427, %v1423
      %v1429 = vrot.slane %v1428, 4
      %v1431 = vshll.u32 %v1215, 16
      %v1433 = vrot.slane %v1431, 5
      %v1434 = vsel %vm1242, %v1429, %v1433
      %v1436 = vshrl.u32 %v1216, 16
      %v1438 = vrot.slane %v1436, 4
      %v1439 = vshll.u32 %v1216, 16
      %v1441 = vrot.slane %v1439, 5
      %v1442 = vor.u32 %v1438, %v1441
      %v1443 = vrot.slane %v1442, 4
      %v1445 = vshll.u32 %v1217, 16
      %v1447 = vrot.slane %v1445, 5
      %v1448 = vsel %vm1242, %v1443, %v1447
      %v1449 = vshrl.u32 %v1217, 16
      %v1451 = vrot.slane %v1449, 4
      %v1452 = vor.u32 %v1451, %v1447
      %v1453 = vrot.slane %v1452, 4
      %v1455 = vshll.u32 %v1218, 16
      %v1457 = vrot.slane %v1455, 5
      %v1458 = vsel %vm1242, %v1453, %v1457
      %v1460 = vshrl.u32 %v1219, 16
      %v1462 = vrot.slane %v1460, 4
      %v1463 = vshll.u32 %v1219, 16
      %v1465 = vrot.slane %v1463, 5
      %v1466 = vor.u32 %v1462, %v1465
      %v1467 = vrot.slane %v1466, 4
      %v1469 = vshll.u32 %v1220, 16
      %v1471 = vrot.slane %v1469, 5
      %v1472 = vsel %vm1242, %v1467, %v1471
      %v1473 = vshrl.u32 %v1220, 16
      %v1475 = vrot.slane %v1473, 4
      %v1476 = vor.u32 %v1475, %v1471
      %v1477 = vrot.slane %v1476, 4
      %v1479 = vshll.u32 %v1221, 16
      %v1481 = vrot.slane %v1479, 5
      %v1482 = vsel %vm1242, %v1477, %v1481
      %v1484 = vshrl.u32 %v1222, 16
      %v1486 = vrot.slane %v1484, 4
      %v1487 = vshll.u32 %v1222, 16
      %v1489 = vrot.slane %v1487, 5
      %v1490 = vor.u32 %v1486, %v1489
      %v1491 = vrot.slane %v1490, 4
      %v1493 = vshll.u32 %v1223, 16
      %v1495 = vrot.slane %v1493, 5
      %v1496 = vsel %vm1242, %v1491, %v1495
      %v1497 = vshrl.u32 %v1223, 16
      %v1499 = vrot.slane %v1497, 4
      %v1500 = vor.u32 %v1499, %v1495
      %v1501 = vrot.slane %v1500, 4
      %v1503 = vshll.u32 %v1224, 16
      %v1505 = vrot.slane %v1503, 5
      %v1506 = vsel %vm1242, %v1501, %v1505
      %v1508 = vshrl.u32 %v1225, 16
      %v1510 = vrot.slane %v1508, 4
      %v1511 = vshll.u32 %v1225, 16
      %v1513 = vrot.slane %v1511, 5
      %v1514 = vor.u32 %v1510, %v1513
      %v1515 = vrot.slane %v1514, 4
      %v1517 = vshll.u32 %v1226, 16
      %v1519 = vrot.slane %v1517, 5
      %v1520 = vsel %vm1242, %v1515, %v1519
      %v1521 = vshrl.u32 %v1226, 16
      %v1523 = vrot.slane %v1521, 4
      %v1524 = vor.u32 %v1523, %v1519
      %v1525 = vrot.slane %v1524, 4
      %v1527 = vshll.u32 %v1227, 16
      %v1529 = vrot.slane %v1527, 5
      %v1530 = vsel %vm1242, %v1525, %v1529
      %v1532 = vshrl.u32 %v1228, 16
      %v1534 = vrot.slane %v1532, 4
      %v1535 = vshll.u32 %v1228, 16
      %v1537 = vrot.slane %v1535, 5
      %v1538 = vor.u32 %v1534, %v1537
      %v1539 = vrot.slane %v1538, 4
      %v1541 = vshll.u32 %v1229, 16
      %v1543 = vrot.slane %v1541, 5
      %v1544 = vsel %vm1242, %v1539, %v1543
      %v1545 = vshrl.u32 %v1229, 16
      %v1547 = vrot.slane %v1545, 4
      %v1548 = vor.u32 %v1547, %v1543
      %v1549 = vrot.slane %v1548, 4
      %v1551 = vshll.u32 %v1230, 16
      %v1553 = vrot.slane %v1551, 5
      %v1554 = vsel %vm1242, %v1549, %v1553
      %v1556 = vshrl.u32 %v1231, 16
      %v1558 = vrot.slane %v1556, 4
      %v1559 = vshll.u32 %v1231, 16
      %v1561 = vrot.slane %v1559, 5
      %v1562 = vor.u32 %v1558, %v1561
      %v1563 = vrot.slane %v1562, 4
      %v1565 = vshll.u32 %v1232, 16
      %v1567 = vrot.slane %v1565, 5
      %v1568 = vsel %vm1242, %v1563, %v1567
      %v1569 = vshrl.u32 %v1232, 16
      %v1571 = vrot.slane %v1569, 4
      %v1572 = vor.u32 %v1571, %v1567
      %v1573 = vrot.slane %v1572, 4
      %v1575 = vshll.u32 %v1233, 16
      %v1577 = vrot.slane %v1575, 5
      %v1578 = vsel %vm1242, %v1573, %v1577
      %v1580 = vshrl.u32 %v1234, 16
      %v1582 = vrot.slane %v1580, 4
      %v1583 = vshll.u32 %v1234, 16
      %v1585 = vrot.slane %v1583, 5
      %v1586 = vor.u32 %v1582, %v1585
      %v1587 = vrot.slane %v1586, 4
      %v1589 = vshll.u32 %v1235, 16
      %v1591 = vrot.slane %v1589, 5
      %v1592 = vsel %vm1242, %v1587, %v1591
      %v1593 = vshrl.u32 %v1235, 16
      %v1595 = vrot.slane %v1593, 4
      %v1596 = vor.u32 %v1595, %v1591
      %v1597 = vrot.slane %v1596, 4
      %v1599 = vshll.u32 %v1236, 16
      %v1601 = vrot.slane %v1599, 5
      %v1602 = vsel %vm1242, %v1597, %v1601
      %v1604 = vshrl.u32 %v1237, 16
      %v1606 = vrot.slane %v1604, 4
      %v1607 = vshll.u32 %v1237, 16
      %v1609 = vrot.slane %v1607, 5
      %v1610 = vor.u32 %v1606, %v1609
      %v1611 = vrot.slane %v1610, 4
      %v1613 = vshll.u32 %v1238, 16
      %v1615 = vrot.slane %v1613, 5
      %v1616 = vsel %vm1242, %v1611, %v1615
      %v1617 = vshrl.u32 %v1238, 16
      %v1619 = vrot.slane %v1617, 4
      %v1620 = vor.u32 %v1619, %v1615
      %v1621 = vrot.slane %v1620, 4
      %v1623 = vshll.u32 %v1239, 16
      %v1625 = vrot.slane %v1623, 5
      %v1626 = vsel %vm1242, %v1621, %v1625
      %s1627 = scalar_lea.vmem %s1, 128
      %v1628 = vld [vmem:[%s1627] sm:$0xf]
      %v1629 = vld [vmem:[%s1627 + $0x4] sm:$0xf]
      %v1630 = vld [vmem:[%s1627 + $0x8] sm:$0xf]
      %v1631 = vld [vmem:[%s1627 + $0xc] sm:$0xf]
      %v1632 = vld [vmem:[%s1627 + $0x10] sm:$0xf]
      %v1633 = vld [vmem:[%s1627 + $0x14] sm:$0xf]
      %v1634 = vld [vmem:[%s1627 + $0x18] sm:$0xf]
      %v1635 = vld [vmem:[%s1627 + $0x1c] sm:$0xf]
      %v1636 = vld [vmem:[%s1627 + $0x20] sm:$0xf]
      %v1637 = vld [vmem:[%s1627 + $0x24] sm:$0xf]
      %v1638 = vld [vmem:[%s1627 + $0x28] sm:$0xf]
      %v1639 = vld [vmem:[%s1627 + $0x2c] sm:$0xf]
      %v1640 = vld [vmem:[%s1627 + $0x30] sm:$0xf]
      %v1641 = vld [vmem:[%s1627 + $0x34] sm:$0xf]
      %v1642 = vld [vmem:[%s1627 + $0x38] sm:$0xf]
      %v1643 = vld [vmem:[%s1627 + $0x3c] sm:$0xf]
      %v1644 = vunpack.c.l.b16 %v1256
      %v1645 = vunpack.c.l.b16 %v1266
      %v1646 = vunpack.c.l.b16 %v1280
      %v1647 = vunpack.c.l.b16 %v1290
      %v1648 = vunpack.c.l.b16 %v1304
      %v1649 = vunpack.c.l.b16 %v1314
      %v1650 = vunpack.c.l.b16 %v1328
      %v1651 = vunpack.c.l.b16 %v1338
      %v1652 = vunpack.c.l.b16 %v1352
      %v1653 = vunpack.c.l.b16 %v1362
      %v1654 = vunpack.c.l.b16 %v1376
      %v1655 = vunpack.c.l.b16 %v1386
      %v1656 = vunpack.c.l.b16 %v1400
      %v1657 = vunpack.c.l.b16 %v1410
      %v1658 = vunpack.c.l.b16 %v1424
      %v1659 = vunpack.c.l.b16 %v1434
      %v1660 = vunpack.c.l.b16 %v1448
      %v1661 = vunpack.c.l.b16 %v1458
      %v1662 = vunpack.c.l.b16 %v1472
      %v1663 = vunpack.c.l.b16 %v1482
      %v1664 = vunpack.c.l.b16 %v1496
      %v1665 = vunpack.c.l.b16 %v1506
      %v1666 = vunpack.c.l.b16 %v1520
      %v1667 = vunpack.c.l.b16 %v1530
      %v1668 = vunpack.c.l.b16 %v1544
      %v1669 = vunpack.c.l.b16 %v1554
      %v1670 = vunpack.c.l.b16 %v1568
      %v1671 = vunpack.c.l.b16 %v1578
      %v1672 = vunpack.c.l.b16 %v1592
      %v1673 = vunpack.c.l.b16 %v1602
      %v1674 = vunpack.c.l.b16 %v1616
      %v1675 = vunpack.c.l.b16 %v1626
      %v1676 = vpack.c.b16 %v1645, %v1644
      %v1677 = vpack.c.b16 %v1647, %v1646
      %v1678 = vpack.c.b16 %v1649, %v1648
      %v1679 = vpack.c.b16 %v1651, %v1650
      %v1680 = vpack.c.b16 %v1653, %v1652
      %v1681 = vpack.c.b16 %v1655, %v1654
      %v1682 = vpack.c.b16 %v1657, %v1656
      %v1683 = vpack.c.b16 %v1659, %v1658
      %v1684 = vpack.c.b16 %v1661, %v1660
      %v1685 = vpack.c.b16 %v1663, %v1662
      %v1686 = vpack.c.b16 %v1665, %v1664
      %v1687 = vpack.c.b16 %v1667, %v1666
      %v1688 = vpack.c.b16 %v1669, %v1668
      %v1689 = vpack.c.b16 %v1671, %v1670
      %v1690 = vpack.c.b16 %v1673, %v1672
      %v1691 = vpack.c.b16 %v1675, %v1674
      %v1724 = vunpack.c.l.b16 %v1628
      %v1725 = vunpack.c.l.b16 %v1629
      %v1726 = vunpack.c.l.b16 %v1630
      %v1727 = vunpack.c.l.b16 %v1631
      %v1728 = vunpack.c.l.b16 %v1632
      %v1729 = vunpack.c.l.b16 %v1633
      %v1730 = vunpack.c.l.b16 %v1634
      %v1731 = vunpack.c.l.b16 %v1635
      %v1732 = vunpack.c.l.b16 %v1636
      %v1733 = vunpack.c.l.b16 %v1637
      %v1734 = vunpack.c.l.b16 %v1638
      %v1735 = vunpack.c.l.b16 %v1639
      %v1736 = vunpack.c.l.b16 %v1640
      %v1737 = vunpack.c.l.b16 %v1641
      %v1738 = vunpack.c.l.b16 %v1642
      %v1739 = vunpack.c.l.b16 %v1643
      %v1740 = vpack.c.b16 %v1725, %v1724
      %v1741 = vpack.c.b16 %v1727, %v1726
      %v1742 = vpack.c.b16 %v1729, %v1728
      %v1743 = vpack.c.b16 %v1731, %v1730
      %v1744 = vpack.c.b16 %v1733, %v1732
      %v1745 = vpack.c.b16 %v1735, %v1734
      %v1746 = vpack.c.b16 %v1737, %v1736
      %v1747 = vpack.c.b16 %v1739, %v1738
      %1756 = vmatpush.bf16.msra.mxu0 %v1747
      %1757 = vmatpush.bf16.msra.mxu0 %v1746
      %1758 = vmatpush.bf16.msra.mxu0 %v1745
      %1759 = vmatpush.bf16.msra.mxu0 %v1744
      %1760 = vmatpush.bf16.msra.mxu0 %v1743
      %1761 = vmatpush.bf16.msra.mxu0 %v1742
      %1762 = vmatpush.bf16.msra.mxu0 %v1741
      %1763 = vmatpush.bf16.msra.mxu0 %v1740
      %1764 = vmatmul.bf16.gmra.mxu0 %v1676
      %v1765 = vpop.f32.mrf.mxu0
      %v1766 = vadd.f32 0.0, %v1765
      %v1767 = vpop.f32.mrf.mxu0
      %v1768 = vadd.f32 0.0, %v1767
      %1769 = vmatmul.bf16.gmra.mxu0 %v1677
      %v1770 = vpop.f32.mrf.mxu0
      %v1771 = vadd.f32 0.0, %v1770
      %v1772 = vpop.f32.mrf.mxu0
      %v1773 = vadd.f32 0.0, %v1772
      %1774 = vmatmul.bf16.gmra.mxu0 %v1678
      %v1775 = vpop.f32.mrf.mxu0
      %v1776 = vadd.f32 0.0, %v1775
      %v1777 = vpop.f32.mrf.mxu0
      %v1778 = vadd.f32 0.0, %v1777
      %1779 = vmatmul.bf16.gmra.mxu0 %v1679
      %v1780 = vpop.f32.mrf.mxu0
      %v1781 = vadd.f32 0.0, %v1780
      %v1782 = vpop.f32.mrf.mxu0
      %v1783 = vadd.f32 0.0, %v1782
      %1784 = vmatmul.bf16.gmra.mxu0 %v1680
      %v1785 = vpop.f32.mrf.mxu0
      %v1786 = vadd.f32 0.0, %v1785
      %v1787 = vpop.f32.mrf.mxu0
      %v1788 = vadd.f32 0.0, %v1787
      %1789 = vmatmul.bf16.gmra.mxu0 %v1681
      %v1790 = vpop.f32.mrf.mxu0
      %v1791 = vadd.f32 0.0, %v1790
      %v1792 = vpop.f32.mrf.mxu0
      %v1793 = vadd.f32 0.0, %v1792
      %1794 = vmatmul.bf16.gmra.mxu0 %v1682
      %v1795 = vpop.f32.mrf.mxu0
      %v1796 = vadd.f32 0.0, %v1795
      %v1797 = vpop.f32.mrf.mxu0
      %v1798 = vadd.f32 0.0, %v1797
      %1799 = vmatmul.bf16.gmra.mxu0 %v1683
      %v1800 = vpop.f32.mrf.mxu0
      %v1801 = vadd.f32 0.0, %v1800
      %v1802 = vpop.f32.mrf.mxu0
      %v1803 = vadd.f32 0.0, %v1802
      %1804 = vmatmul.bf16.gmra.mxu0 %v1684
      %v1805 = vpop.f32.mrf.mxu0
      %v1806 = vadd.f32 0.0, %v1805
      %v1807 = vpop.f32.mrf.mxu0
      %v1808 = vadd.f32 0.0, %v1807
      %1809 = vmatmul.bf16.gmra.mxu0 %v1685
      %v1810 = vpop.f32.mrf.mxu0
      %v1811 = vadd.f32 0.0, %v1810
      %v1812 = vpop.f32.mrf.mxu0
      %v1813 = vadd.f32 0.0, %v1812
      %1814 = vmatmul.bf16.gmra.mxu0 %v1686
      %v1815 = vpop.f32.mrf.mxu0
      %v1816 = vadd.f32 0.0, %v1815
      %v1817 = vpop.f32.mrf.mxu0
      %v1818 = vadd.f32 0.0, %v1817
      %1819 = vmatmul.bf16.gmra.mxu0 %v1687
      %v1820 = vpop.f32.mrf.mxu0
      %v1821 = vadd.f32 0.0, %v1820
      %v1822 = vpop.f32.mrf.mxu0
      %v1823 = vadd.f32 0.0, %v1822
      %1824 = vmatmul.bf16.gmra.mxu0 %v1688
      %v1825 = vpop.f32.mrf.mxu0
      %v1826 = vadd.f32 0.0, %v1825
      %v1827 = vpop.f32.mrf.mxu0
      %v1828 = vadd.f32 0.0, %v1827
      %1829 = vmatmul.bf16.gmra.mxu0 %v1689
      %v1830 = vpop.f32.mrf.mxu0
      %v1831 = vadd.f32 0.0, %v1830
      %v1832 = vpop.f32.mrf.mxu0
      %v1833 = vadd.f32 0.0, %v1832
      %1834 = vmatmul.bf16.gmra.mxu0 %v1690
      %v1835 = vpop.f32.mrf.mxu0
      %v1836 = vadd.f32 0.0, %v1835
      %v1837 = vpop.f32.mrf.mxu0
      %v1838 = vadd.f32 0.0, %v1837
      %1839 = vmatmul.bf16.gmra.mxu0 %v1691
      %v1840 = vpop.f32.mrf.mxu0
      %v1841 = vadd.f32 0.0, %v1840
      %v1842 = vpop.f32.mrf.mxu0
      %v1843 = vadd.f32 0.0, %v1842
      %1844 = vdwg.mxu0
      %v1845 = vadd.f32 %v1113, %v1766
      %v1846 = vadd.f32 %v1115, %v1768
      %v1847 = vadd.f32 %v1118, %v1771
      %v1848 = vadd.f32 %v1120, %v1773
      %v1849 = vadd.f32 %v1123, %v1776
      %v1850 = vadd.f32 %v1125, %v1778
      %v1851 = vadd.f32 %v1128, %v1781
      %v1852 = vadd.f32 %v1130, %v1783
      %v1853 = vadd.f32 %v1133, %v1786
      %v1854 = vadd.f32 %v1135, %v1788
      %v1855 = vadd.f32 %v1138, %v1791
      %v1856 = vadd.f32 %v1140, %v1793
      %v1857 = vadd.f32 %v1143, %v1796
      %v1858 = vadd.f32 %v1145, %v1798
      %v1859 = vadd.f32 %v1148, %v1801
      %v1860 = vadd.f32 %v1150, %v1803
      %v1861 = vadd.f32 %v1153, %v1806
      %v1862 = vadd.f32 %v1155, %v1808
      %v1863 = vadd.f32 %v1158, %v1811
      %v1864 = vadd.f32 %v1160, %v1813
      %v1865 = vadd.f32 %v1163, %v1816
      %v1866 = vadd.f32 %v1165, %v1818
      %v1867 = vadd.f32 %v1168, %v1821
      %v1868 = vadd.f32 %v1170, %v1823
      %v1869 = vadd.f32 %v1173, %v1826
      %v1870 = vadd.f32 %v1175, %v1828
      %v1871 = vadd.f32 %v1178, %v1831
      %v1872 = vadd.f32 %v1180, %v1833
      %v1873 = vadd.f32 %v1183, %v1836
      %v1874 = vadd.f32 %v1185, %v1838
      %v1875 = vadd.f32 %v1188, %v1841
      %v1876 = vadd.f32 %v1190, %v1843
      %v1877 = vld [vmem:[%s289 + $0x4] sm:$0x8]
      %v1878 = vld [vmem:[%s289 + $0x8] sm:$0xf]
      %v1879 = vld [vmem:[%s289 + $0xc] sm:$0xf]
      %v1880 = vld [vmem:[%s289 + $0x1c] sm:$0x8]
      %v1881 = vld [vmem:[%s289 + $0x20] sm:$0xf]
      %v1882 = vld [vmem:[%s289 + $0x24] sm:$0xf]
      %v1883 = vld [vmem:[%s289 + $0x34] sm:$0x8]
      %v1884 = vld [vmem:[%s289 + $0x38] sm:$0xf]
      %v1885 = vld [vmem:[%s289 + $0x3c] sm:$0xf]
      %v1886 = vld [vmem:[%s289 + $0x4c] sm:$0x8]
      %v1887 = vld [vmem:[%s289 + $0x50] sm:$0xf]
      %v1888 = vld [vmem:[%s289 + $0x54] sm:$0xf]
      %v1889 = vld [vmem:[%s289 + $0x64] sm:$0x8]
      %v1890 = vld [vmem:[%s289 + $0x68] sm:$0xf]
      %v1891 = vld [vmem:[%s289 + $0x6c] sm:$0xf]
      %v1892 = vld [vmem:[%s289 + $0x7c] sm:$0x8]
      %v1893 = vld [vmem:[%s289 + $0x80] sm:$0xf]
      %v1894 = vld [vmem:[%s289 + $0x84] sm:$0xf]
      %v1895 = vld [vmem:[%s289 + $0x94] sm:$0x8]
      %v1896 = vld [vmem:[%s289 + $0x98] sm:$0xf]
      %v1897 = vld [vmem:[%s289 + $0x9c] sm:$0xf]
      %v1898 = vld [vmem:[%s289 + $0xac] sm:$0x8]
      %v1899 = vld [vmem:[%s289 + $0xb0] sm:$0xf]
      %v1900 = vld [vmem:[%s289 + $0xb4] sm:$0xf]
      %v1901 = vld [vmem:[%s289 + $0xc4] sm:$0x8]
      %v1902 = vld [vmem:[%s289 + $0xc8] sm:$0xf]
      %v1903 = vld [vmem:[%s289 + $0xcc] sm:$0xf]
      %v1904 = vld [vmem:[%s289 + $0xdc] sm:$0x8]
      %v1905 = vld [vmem:[%s289 + $0xe0] sm:$0xf]
      %v1906 = vld [vmem:[%s289 + $0xe4] sm:$0xf]
      %v1907 = vld [vmem:[%s289 + $0xf4] sm:$0x8]
      %v1908 = vld [vmem:[%s289 + $0xf8] sm:$0xf]
      %v1909 = vld [vmem:[%s289 + $0xfc] sm:$0xf]
      %v1910 = vld [vmem:[%s289 + $0x10c] sm:$0x8]
      %v1911 = vld [vmem:[%s289 + $0x110] sm:$0xf]
      %v1912 = vld [vmem:[%s289 + $0x114] sm:$0xf]
      %v1913 = vld [vmem:[%s289 + $0x124] sm:$0x8]
      %v1914 = vld [vmem:[%s289 + $0x128] sm:$0xf]
      %v1915 = vld [vmem:[%s289 + $0x12c] sm:$0xf]
      %v1916 = vld [vmem:[%s289 + $0x13c] sm:$0x8]
      %v1917 = vld [vmem:[%s289 + $0x140] sm:$0xf]
      %v1918 = vld [vmem:[%s289 + $0x144] sm:$0xf]
      %v1919 = vld [vmem:[%s289 + $0x154] sm:$0x8]
      %v1920 = vld [vmem:[%s289 + $0x158] sm:$0xf]
      %v1921 = vld [vmem:[%s289 + $0x15c] sm:$0xf]
      %v1922 = vld [vmem:[%s289 + $0x16c] sm:$0x8]
      %v1923 = vld [vmem:[%s289 + $0x170] sm:$0xf]
      %v1924 = vld [vmem:[%s289 + $0x174] sm:$0xf]
      %v1926 = vshrl.u32 %v1877, 16
      %v1928 = vrot.slane %v1926, 7
      %v1929 = vrot.slane %v1928, 4
      %v1931 = vshrl.u32 %v1878, 16
      %v1933 = vrot.slane %v1931, 7
      %v1934 = vshll.u32 %v1878, 16
      %v1936 = vor.u32 %v1933, %v1934
      %v1937 = vsel %vm372, %v1929, %v1936
      %v1938 = vrot.slane %v1933, 4
      %v1940 = vshrl.u32 %v1879, 16
      %v1942 = vrot.slane %v1940, 7
      %v1943 = vshll.u32 %v1879, 16
      %v1945 = vor.u32 %v1942, %v1943
      %v1946 = vsel %vm372, %v1938, %v1945
      %v1948 = vshrl.u32 %v1880, 16
      %v1950 = vrot.slane %v1948, 7
      %v1951 = vrot.slane %v1950, 4
      %v1953 = vshrl.u32 %v1881, 16
      %v1955 = vrot.slane %v1953, 7
      %v1956 = vshll.u32 %v1881, 16
      %v1958 = vor.u32 %v1955, %v1956
      %v1959 = vsel %vm372, %v1951, %v1958
      %v1960 = vrot.slane %v1955, 4
      %v1962 = vshrl.u32 %v1882, 16
      %v1964 = vrot.slane %v1962, 7
      %v1965 = vshll.u32 %v1882, 16
      %v1967 = vor.u32 %v1964, %v1965
      %v1968 = vsel %vm372, %v1960, %v1967
      %v1970 = vshrl.u32 %v1883, 16
      %v1972 = vrot.slane %v1970, 7
      %v1973 = vrot.slane %v1972, 4
      %v1975 = vshrl.u32 %v1884, 16
      %v1977 = vrot.slane %v1975, 7
      %v1978 = vshll.u32 %v1884, 16
      %v1980 = vor.u32 %v1977, %v1978
      %v1981 = vsel %vm372, %v1973, %v1980
      %v1982 = vrot.slane %v1977, 4
      %v1984 = vshrl.u32 %v1885, 16
      %v1986 = vrot.slane %v1984, 7
      %v1987 = vshll.u32 %v1885, 16
      %v1989 = vor.u32 %v1986, %v1987
      %v1990 = vsel %vm372, %v1982, %v1989
      %v1992 = vshrl.u32 %v1886, 16
      %v1994 = vrot.slane %v1992, 7
      %v1995 = vrot.slane %v1994, 4
      %v1997 = vshrl.u32 %v1887, 16
      %v1999 = vrot.slane %v1997, 7
      %v2000 = vshll.u32 %v1887, 16
      %v2002 = vor.u32 %v1999, %v2000
      %v2003 = vsel %vm372, %v1995, %v2002
      %v2004 = vrot.slane %v1999, 4
      %v2006 = vshrl.u32 %v1888, 16
      %v2008 = vrot.slane %v2006, 7
      %v2009 = vshll.u32 %v1888, 16
      %v2011 = vor.u32 %v2008, %v2009
      %v2012 = vsel %vm372, %v2004, %v2011
      %v2014 = vshrl.u32 %v1889, 16
      %v2016 = vrot.slane %v2014, 7
      %v2017 = vrot.slane %v2016, 4
      %v2019 = vshrl.u32 %v1890, 16
      %v2021 = vrot.slane %v2019, 7
      %v2022 = vshll.u32 %v1890, 16
      %v2024 = vor.u32 %v2021, %v2022
      %v2025 = vsel %vm372, %v2017, %v2024
      %v2026 = vrot.slane %v2021, 4
      %v2028 = vshrl.u32 %v1891, 16
      %v2030 = vrot.slane %v2028, 7
      %v2031 = vshll.u32 %v1891, 16
      %v2033 = vor.u32 %v2030, %v2031
      %v2034 = vsel %vm372, %v2026, %v2033
      %v2036 = vshrl.u32 %v1892, 16
      %v2038 = vrot.slane %v2036, 7
      %v2039 = vrot.slane %v2038, 4
      %v2041 = vshrl.u32 %v1893, 16
      %v2043 = vrot.slane %v2041, 7
      %v2044 = vshll.u32 %v1893, 16
      %v2046 = vor.u32 %v2043, %v2044
      %v2047 = vsel %vm372, %v2039, %v2046
      %v2048 = vrot.slane %v2043, 4
      %v2050 = vshrl.u32 %v1894, 16
      %v2052 = vrot.slane %v2050, 7
      %v2053 = vshll.u32 %v1894, 16
      %v2055 = vor.u32 %v2052, %v2053
      %v2056 = vsel %vm372, %v2048, %v2055
      %v2058 = vshrl.u32 %v1895, 16
      %v2060 = vrot.slane %v2058, 7
      %v2061 = vrot.slane %v2060, 4
      %v2063 = vshrl.u32 %v1896, 16
      %v2065 = vrot.slane %v2063, 7
      %v2066 = vshll.u32 %v1896, 16
      %v2068 = vor.u32 %v2065, %v2066
      %v2069 = vsel %vm372, %v2061, %v2068
      %v2070 = vrot.slane %v2065, 4
      %v2072 = vshrl.u32 %v1897, 16
      %v2074 = vrot.slane %v2072, 7
      %v2075 = vshll.u32 %v1897, 16
      %v2077 = vor.u32 %v2074, %v2075
      %v2078 = vsel %vm372, %v2070, %v2077
      %v2080 = vshrl.u32 %v1898, 16
      %v2082 = vrot.slane %v2080, 7
      %v2083 = vrot.slane %v2082, 4
      %v2085 = vshrl.u32 %v1899, 16
      %v2087 = vrot.slane %v2085, 7
      %v2088 = vshll.u32 %v1899, 16
      %v2090 = vor.u32 %v2087, %v2088
      %v2091 = vsel %vm372, %v2083, %v2090
      %v2092 = vrot.slane %v2087, 4
      %v2094 = vshrl.u32 %v1900, 16
      %v2096 = vrot.slane %v2094, 7
      %v2097 = vshll.u32 %v1900, 16
      %v2099 = vor.u32 %v2096, %v2097
      %v2100 = vsel %vm372, %v2092, %v2099
      %v2102 = vshrl.u32 %v1901, 16
      %v2104 = vrot.slane %v2102, 7
      %v2105 = vrot.slane %v2104, 4
      %v2107 = vshrl.u32 %v1902, 16
      %v2109 = vrot.slane %v2107, 7
      %v2110 = vshll.u32 %v1902, 16
      %v2112 = vor.u32 %v2109, %v2110
      %v2113 = vsel %vm372, %v2105, %v2112
      %v2114 = vrot.slane %v2109, 4
      %v2116 = vshrl.u32 %v1903, 16
      %v2118 = vrot.slane %v2116, 7
      %v2119 = vshll.u32 %v1903, 16
      %v2121 = vor.u32 %v2118, %v2119
      %v2122 = vsel %vm372, %v2114, %v2121
      %v2124 = vshrl.u32 %v1904, 16
      %v2126 = vrot.slane %v2124, 7
      %v2127 = vrot.slane %v2126, 4
      %v2129 = vshrl.u32 %v1905, 16
      %v2131 = vrot.slane %v2129, 7
      %v2132 = vshll.u32 %v1905, 16
      %v2134 = vor.u32 %v2131, %v2132
      %v2135 = vsel %vm372, %v2127, %v2134
      %v2136 = vrot.slane %v2131, 4
      %v2138 = vshrl.u32 %v1906, 16
      %v2140 = vrot.slane %v2138, 7
      %v2141 = vshll.u32 %v1906, 16
      %v2143 = vor.u32 %v2140, %v2141
      %v2144 = vsel %vm372, %v2136, %v2143
      %v2146 = vshrl.u32 %v1907, 16
      %v2148 = vrot.slane %v2146, 7
      %v2149 = vrot.slane %v2148, 4
      %v2151 = vshrl.u32 %v1908, 16
      %v2153 = vrot.slane %v2151, 7
      %v2154 = vshll.u32 %v1908, 16
      %v2156 = vor.u32 %v2153, %v2154
      %v2157 = vsel %vm372, %v2149, %v2156
      %v2158 = vrot.slane %v2153, 4
      %v2160 = vshrl.u32 %v1909, 16
      %v2162 = vrot.slane %v2160, 7
      %v2163 = vshll.u32 %v1909, 16
      %v2165 = vor.u32 %v2162, %v2163
      %v2166 = vsel %vm372, %v2158, %v2165
      %v2168 = vshrl.u32 %v1910, 16
      %v2170 = vrot.slane %v2168, 7
      %v2171 = vrot.slane %v2170, 4
      %v2173 = vshrl.u32 %v1911, 16
      %v2175 = vrot.slane %v2173, 7
      %v2176 = vshll.u32 %v1911, 16
      %v2178 = vor.u32 %v2175, %v2176
      %v2179 = vsel %vm372, %v2171, %v2178
      %v2180 = vrot.slane %v2175, 4
      %v2182 = vshrl.u32 %v1912, 16
      %v2184 = vrot.slane %v2182, 7
      %v2185 = vshll.u32 %v1912, 16
      %v2187 = vor.u32 %v2184, %v2185
      %v2188 = vsel %vm372, %v2180, %v2187
      %v2190 = vshrl.u32 %v1913, 16
      %v2192 = vrot.slane %v2190, 7
      %v2193 = vrot.slane %v2192, 4
      %v2195 = vshrl.u32 %v1914, 16
      %v2197 = vrot.slane %v2195, 7
      %v2198 = vshll.u32 %v1914, 16
      %v2200 = vor.u32 %v2197, %v2198
      %v2201 = vsel %vm372, %v2193, %v2200
      %v2202 = vrot.slane %v2197, 4
      %v2204 = vshrl.u32 %v1915, 16
      %v2206 = vrot.slane %v2204, 7
      %v2207 = vshll.u32 %v1915, 16
      %v2209 = vor.u32 %v2206, %v2207
      %v2210 = vsel %vm372, %v2202, %v2209
      %v2212 = vshrl.u32 %v1916, 16
      %v2214 = vrot.slane %v2212, 7
      %v2215 = vrot.slane %v2214, 4
      %v2217 = vshrl.u32 %v1917, 16
      %v2219 = vrot.slane %v2217, 7
      %v2220 = vshll.u32 %v1917, 16
      %v2222 = vor.u32 %v2219, %v2220
      %v2223 = vsel %vm372, %v2215, %v2222
      %v2224 = vrot.slane %v2219, 4
      %v2226 = vshrl.u32 %v1918, 16
      %v2228 = vrot.slane %v2226, 7
      %v2229 = vshll.u32 %v1918, 16
      %v2231 = vor.u32 %v2228, %v2229
      %v2232 = vsel %vm372, %v2224, %v2231
      %v2234 = vshrl.u32 %v1919, 16
      %v2236 = vrot.slane %v2234, 7
      %v2237 = vrot.slane %v2236, 4
      %v2239 = vshrl.u32 %v1920, 16
      %v2241 = vrot.slane %v2239, 7
      %v2242 = vshll.u32 %v1920, 16
      %v2244 = vor.u32 %v2241, %v2242
      %v2245 = vsel %vm372, %v2237, %v2244
      %v2246 = vrot.slane %v2241, 4
      %v2248 = vshrl.u32 %v1921, 16
      %v2250 = vrot.slane %v2248, 7
      %v2251 = vshll.u32 %v1921, 16
      %v2253 = vor.u32 %v2250, %v2251
      %v2254 = vsel %vm372, %v2246, %v2253
      %v2256 = vshrl.u32 %v1922, 16
      %v2258 = vrot.slane %v2256, 7
      %v2259 = vrot.slane %v2258, 4
      %v2261 = vshrl.u32 %v1923, 16
      %v2263 = vrot.slane %v2261, 7
      %v2264 = vshll.u32 %v1923, 16
      %v2266 = vor.u32 %v2263, %v2264
      %v2267 = vsel %vm372, %v2259, %v2266
      %v2268 = vrot.slane %v2263, 4
      %v2270 = vshrl.u32 %v1924, 16
      %v2272 = vrot.slane %v2270, 7
      %v2273 = vshll.u32 %v1924, 16
      %v2275 = vor.u32 %v2272, %v2273
      %v2276 = vsel %vm372, %v2268, %v2275
      %s2277 = scalar_lea.vmem %s1, 192
      %v2278 = vld [vmem:[%s2277] sm:$0xf]
      %v2279 = vld [vmem:[%s2277 + $0x4] sm:$0xf]
      %v2280 = vld [vmem:[%s2277 + $0x8] sm:$0xf]
      %v2281 = vld [vmem:[%s2277 + $0xc] sm:$0xf]
      %v2282 = vld [vmem:[%s2277 + $0x10] sm:$0xf]
      %v2283 = vld [vmem:[%s2277 + $0x14] sm:$0xf]
      %v2284 = vld [vmem:[%s2277 + $0x18] sm:$0xf]
      %v2285 = vld [vmem:[%s2277 + $0x1c] sm:$0xf]
      %v2286 = vld [vmem:[%s2277 + $0x20] sm:$0xf]
      %v2287 = vld [vmem:[%s2277 + $0x24] sm:$0xf]
      %v2288 = vld [vmem:[%s2277 + $0x28] sm:$0xf]
      %v2289 = vld [vmem:[%s2277 + $0x2c] sm:$0xf]
      %v2290 = vld [vmem:[%s2277 + $0x30] sm:$0xf]
      %v2291 = vld [vmem:[%s2277 + $0x34] sm:$0xf]
      %v2292 = vld [vmem:[%s2277 + $0x38] sm:$0xf]
      %v2293 = vld [vmem:[%s2277 + $0x3c] sm:$0xf]
      %v2294 = vunpack.c.l.b16 %v1937
      %v2295 = vunpack.c.l.b16 %v1946
      %v2296 = vunpack.c.l.b16 %v1959
      %v2297 = vunpack.c.l.b16 %v1968
      %v2298 = vunpack.c.l.b16 %v1981
      %v2299 = vunpack.c.l.b16 %v1990
      %v2300 = vunpack.c.l.b16 %v2003
      %v2301 = vunpack.c.l.b16 %v2012
      %v2302 = vunpack.c.l.b16 %v2025
      %v2303 = vunpack.c.l.b16 %v2034
      %v2304 = vunpack.c.l.b16 %v2047
      %v2305 = vunpack.c.l.b16 %v2056
      %v2306 = vunpack.c.l.b16 %v2069
      %v2307 = vunpack.c.l.b16 %v2078
      %v2308 = vunpack.c.l.b16 %v2091
      %v2309 = vunpack.c.l.b16 %v2100
      %v2310 = vunpack.c.l.b16 %v2113
      %v2311 = vunpack.c.l.b16 %v2122
      %v2312 = vunpack.c.l.b16 %v2135
      %v2313 = vunpack.c.l.b16 %v2144
      %v2314 = vunpack.c.l.b16 %v2157
      %v2315 = vunpack.c.l.b16 %v2166
      %v2316 = vunpack.c.l.b16 %v2179
      %v2317 = vunpack.c.l.b16 %v2188
      %v2318 = vunpack.c.l.b16 %v2201
      %v2319 = vunpack.c.l.b16 %v2210
      %v2320 = vunpack.c.l.b16 %v2223
      %v2321 = vunpack.c.l.b16 %v2232
      %v2322 = vunpack.c.l.b16 %v2245
      %v2323 = vunpack.c.l.b16 %v2254
      %v2324 = vunpack.c.l.b16 %v2267
      %v2325 = vunpack.c.l.b16 %v2276
      %v2326 = vpack.c.b16 %v2295, %v2294
      %v2327 = vpack.c.b16 %v2297, %v2296
      %v2328 = vpack.c.b16 %v2299, %v2298
      %v2329 = vpack.c.b16 %v2301, %v2300
      %v2330 = vpack.c.b16 %v2303, %v2302
      %v2331 = vpack.c.b16 %v2305, %v2304
      %v2332 = vpack.c.b16 %v2307, %v2306
      %v2333 = vpack.c.b16 %v2309, %v2308
      %v2334 = vpack.c.b16 %v2311, %v2310
      %v2335 = vpack.c.b16 %v2313, %v2312
      %v2336 = vpack.c.b16 %v2315, %v2314
      %v2337 = vpack.c.b16 %v2317, %v2316
      %v2338 = vpack.c.b16 %v2319, %v2318
      %v2339 = vpack.c.b16 %v2321, %v2320
      %v2340 = vpack.c.b16 %v2323, %v2322
      %v2341 = vpack.c.b16 %v2325, %v2324
      %v2374 = vunpack.c.l.b16 %v2278
      %v2375 = vunpack.c.l.b16 %v2279
      %v2376 = vunpack.c.l.b16 %v2280
      %v2377 = vunpack.c.l.b16 %v2281
      %v2378 = vunpack.c.l.b16 %v2282
      %v2379 = vunpack.c.l.b16 %v2283
      %v2380 = vunpack.c.l.b16 %v2284
      %v2381 = vunpack.c.l.b16 %v2285
      %v2382 = vunpack.c.l.b16 %v2286
      %v2383 = vunpack.c.l.b16 %v2287
      %v2384 = vunpack.c.l.b16 %v2288
      %v2385 = vunpack.c.l.b16 %v2289
      %v2386 = vunpack.c.l.b16 %v2290
      %v2387 = vunpack.c.l.b16 %v2291
      %v2388 = vunpack.c.l.b16 %v2292
      %v2389 = vunpack.c.l.b16 %v2293
      %v2390 = vpack.c.b16 %v2375, %v2374
      %v2391 = vpack.c.b16 %v2377, %v2376
      %v2392 = vpack.c.b16 %v2379, %v2378
      %v2393 = vpack.c.b16 %v2381, %v2380
      %v2394 = vpack.c.b16 %v2383, %v2382
      %v2395 = vpack.c.b16 %v2385, %v2384
      %v2396 = vpack.c.b16 %v2387, %v2386
      %v2397 = vpack.c.b16 %v2389, %v2388
      %2406 = vmatpush.bf16.msra.mxu0 %v2397
      %2407 = vmatpush.bf16.msra.mxu0 %v2396
      %2408 = vmatpush.bf16.msra.mxu0 %v2395
      %2409 = vmatpush.bf16.msra.mxu0 %v2394
      %2410 = vmatpush.bf16.msra.mxu0 %v2393
      %2411 = vmatpush.bf16.msra.mxu0 %v2392
      %2412 = vmatpush.bf16.msra.mxu0 %v2391
      %2413 = vmatpush.bf16.msra.mxu0 %v2390
      %2414 = vmatmul.bf16.gmra.mxu0 %v2326
      %v2415 = vpop.f32.mrf.mxu0
      %v2416 = vadd.f32 0.0, %v2415
      %v2417 = vpop.f32.mrf.mxu0
      %v2418 = vadd.f32 0.0, %v2417
      %2419 = vmatmul.bf16.gmra.mxu0 %v2327
      %v2420 = vpop.f32.mrf.mxu0
      %v2421 = vadd.f32 0.0, %v2420
      %v2422 = vpop.f32.mrf.mxu0
      %v2423 = vadd.f32 0.0, %v2422
      %2424 = vmatmul.bf16.gmra.mxu0 %v2328
      %v2425 = vpop.f32.mrf.mxu0
      %v2426 = vadd.f32 0.0, %v2425
      %v2427 = vpop.f32.mrf.mxu0
      %v2428 = vadd.f32 0.0, %v2427
      %2429 = vmatmul.bf16.gmra.mxu0 %v2329
      %v2430 = vpop.f32.mrf.mxu0
      %v2431 = vadd.f32 0.0, %v2430
      %v2432 = vpop.f32.mrf.mxu0
      %v2433 = vadd.f32 0.0, %v2432
      %2434 = vmatmul.bf16.gmra.mxu0 %v2330
      %v2435 = vpop.f32.mrf.mxu0
      %v2436 = vadd.f32 0.0, %v2435
      %v2437 = vpop.f32.mrf.mxu0
      %v2438 = vadd.f32 0.0, %v2437
      %2439 = vmatmul.bf16.gmra.mxu0 %v2331
      %v2440 = vpop.f32.mrf.mxu0
      %v2441 = vadd.f32 0.0, %v2440
      %v2442 = vpop.f32.mrf.mxu0
      %v2443 = vadd.f32 0.0, %v2442
      %2444 = vmatmul.bf16.gmra.mxu0 %v2332
      %v2445 = vpop.f32.mrf.mxu0
      %v2446 = vadd.f32 0.0, %v2445
      %v2447 = vpop.f32.mrf.mxu0
      %v2448 = vadd.f32 0.0, %v2447
      %2449 = vmatmul.bf16.gmra.mxu0 %v2333
      %v2450 = vpop.f32.mrf.mxu0
      %v2451 = vadd.f32 0.0, %v2450
      %v2452 = vpop.f32.mrf.mxu0
      %v2453 = vadd.f32 0.0, %v2452
      %2454 = vmatmul.bf16.gmra.mxu0 %v2334
      %v2455 = vpop.f32.mrf.mxu0
      %v2456 = vadd.f32 0.0, %v2455
      %v2457 = vpop.f32.mrf.mxu0
      %v2458 = vadd.f32 0.0, %v2457
      %2459 = vmatmul.bf16.gmra.mxu0 %v2335
      %v2460 = vpop.f32.mrf.mxu0
      %v2461 = vadd.f32 0.0, %v2460
      %v2462 = vpop.f32.mrf.mxu0
      %v2463 = vadd.f32 0.0, %v2462
      %2464 = vmatmul.bf16.gmra.mxu0 %v2336
      %v2465 = vpop.f32.mrf.mxu0
      %v2466 = vadd.f32 0.0, %v2465
      %v2467 = vpop.f32.mrf.mxu0
      %v2468 = vadd.f32 0.0, %v2467
      %2469 = vmatmul.bf16.gmra.mxu0 %v2337
      %v2470 = vpop.f32.mrf.mxu0
      %v2471 = vadd.f32 0.0, %v2470
      %v2472 = vpop.f32.mrf.mxu0
      %v2473 = vadd.f32 0.0, %v2472
      %2474 = vmatmul.bf16.gmra.mxu0 %v2338
      %v2475 = vpop.f32.mrf.mxu0
      %v2476 = vadd.f32 0.0, %v2475
      %v2477 = vpop.f32.mrf.mxu0
      %v2478 = vadd.f32 0.0, %v2477
      %2479 = vmatmul.bf16.gmra.mxu0 %v2339
      %v2480 = vpop.f32.mrf.mxu0
      %v2481 = vadd.f32 0.0, %v2480
      %v2482 = vpop.f32.mrf.mxu0
      %v2483 = vadd.f32 0.0, %v2482
      %2484 = vmatmul.bf16.gmra.mxu0 %v2340
      %v2485 = vpop.f32.mrf.mxu0
      %v2486 = vadd.f32 0.0, %v2485
      %v2487 = vpop.f32.mrf.mxu0
      %v2488 = vadd.f32 0.0, %v2487
      %2489 = vmatmul.bf16.gmra.mxu0 %v2341
      %v2490 = vpop.f32.mrf.mxu0
      %v2491 = vadd.f32 0.0, %v2490
      %v2492 = vpop.f32.mrf.mxu0
      %v2493 = vadd.f32 0.0, %v2492
      %2494 = vdwg.mxu0
      %v2495 = vadd.f32 %v1845, %v2416
      %v2496 = vadd.f32 %v1846, %v2418
      %v2497 = vadd.f32 %v1847, %v2421
      %v2498 = vadd.f32 %v1848, %v2423
      %v2499 = vadd.f32 %v1849, %v2426
      %v2500 = vadd.f32 %v1850, %v2428
      %v2501 = vadd.f32 %v1851, %v2431
      %v2502 = vadd.f32 %v1852, %v2433
      %v2503 = vadd.f32 %v1853, %v2436
      %v2504 = vadd.f32 %v1854, %v2438
      %v2505 = vadd.f32 %v1855, %v2441
      %v2506 = vadd.f32 %v1856, %v2443
      %v2507 = vadd.f32 %v1857, %v2446
      %v2508 = vadd.f32 %v1858, %v2448
      %v2509 = vadd.f32 %v1859, %v2451
      %v2510 = vadd.f32 %v1860, %v2453
      %v2511 = vadd.f32 %v1861, %v2456
      %v2512 = vadd.f32 %v1862, %v2458
      %v2513 = vadd.f32 %v1863, %v2461
      %v2514 = vadd.f32 %v1864, %v2463
      %v2515 = vadd.f32 %v1865, %v2466
      %v2516 = vadd.f32 %v1866, %v2468
      %v2517 = vadd.f32 %v1867, %v2471
      %v2518 = vadd.f32 %v1868, %v2473
      %v2519 = vadd.f32 %v1869, %v2476
      %v2520 = vadd.f32 %v1870, %v2478
      %v2521 = vadd.f32 %v1871, %v2481
      %v2522 = vadd.f32 %v1872, %v2483
      %v2523 = vadd.f32 %v1873, %v2486
      %v2524 = vadd.f32 %v1874, %v2488
      %v2525 = vadd.f32 %v1875, %v2491
      %v2526 = vadd.f32 %v1876, %v2493
      %s2527 = scalar_lea.vmem %s1, 256
      %v2528 = vld [vmem:[%s2527] sm:$0xf]
      %v2529 = vld [vmem:[%s2527 + $0x4] sm:$0xf]
      %v2530 = vld [vmem:[%s2527 + $0x8] sm:$0xf]
      %v2531 = vld [vmem:[%s2527 + $0xc] sm:$0xf]
      %v2532 = vld [vmem:[%s2527 + $0x10] sm:$0xf]
      %v2533 = vld [vmem:[%s2527 + $0x14] sm:$0xf]
      %v2534 = vld [vmem:[%s2527 + $0x18] sm:$0xf]
      %v2535 = vld [vmem:[%s2527 + $0x1c] sm:$0xf]
      %v2536 = vld [vmem:[%s2527 + $0x20] sm:$0xf]
      %v2537 = vld [vmem:[%s2527 + $0x24] sm:$0xf]
      %v2538 = vld [vmem:[%s2527 + $0x28] sm:$0xf]
      %v2539 = vld [vmem:[%s2527 + $0x2c] sm:$0xf]
      %v2540 = vld [vmem:[%s2527 + $0x30] sm:$0xf]
      %v2541 = vld [vmem:[%s2527 + $0x34] sm:$0xf]
      %v2542 = vld [vmem:[%s2527 + $0x38] sm:$0xf]
      %v2543 = vld [vmem:[%s2527 + $0x3c] sm:$0xf]
      %v2576 = vunpack.c.l.b16 %v1878
      %v2577 = vunpack.c.l.b16 %v1879
      %v2578 = vunpack.c.l.b16 %v1881
      %v2579 = vunpack.c.l.b16 %v1882
      %v2580 = vunpack.c.l.b16 %v1884
      %v2581 = vunpack.c.l.b16 %v1885
      %v2582 = vunpack.c.l.b16 %v1887
      %v2583 = vunpack.c.l.b16 %v1888
      %v2584 = vunpack.c.l.b16 %v1890
      %v2585 = vunpack.c.l.b16 %v1891
      %v2586 = vunpack.c.l.b16 %v1893
      %v2587 = vunpack.c.l.b16 %v1894
      %v2588 = vunpack.c.l.b16 %v1896
      %v2589 = vunpack.c.l.b16 %v1897
      %v2590 = vunpack.c.l.b16 %v1899
      %v2591 = vunpack.c.l.b16 %v1900
      %v2592 = vunpack.c.l.b16 %v1902
      %v2593 = vunpack.c.l.b16 %v1903
      %v2594 = vunpack.c.l.b16 %v1905
      %v2595 = vunpack.c.l.b16 %v1906
      %v2596 = vunpack.c.l.b16 %v1908
      %v2597 = vunpack.c.l.b16 %v1909
      %v2598 = vunpack.c.l.b16 %v1911
      %v2599 = vunpack.c.l.b16 %v1912
      %v2600 = vunpack.c.l.b16 %v1914
      %v2601 = vunpack.c.l.b16 %v1915
      %v2602 = vunpack.c.l.b16 %v1917
      %v2603 = vunpack.c.l.b16 %v1918
      %v2604 = vunpack.c.l.b16 %v1920
      %v2605 = vunpack.c.l.b16 %v1921
      %v2606 = vunpack.c.l.b16 %v1923
      %v2607 = vunpack.c.l.b16 %v1924
      %v2608 = vpack.c.b16 %v2577, %v2576
      %v2609 = vpack.c.b16 %v2579, %v2578
      %v2610 = vpack.c.b16 %v2581, %v2580
      %v2611 = vpack.c.b16 %v2583, %v2582
      %v2612 = vpack.c.b16 %v2585, %v2584
      %v2613 = vpack.c.b16 %v2587, %v2586
      %v2614 = vpack.c.b16 %v2589, %v2588
      %v2615 = vpack.c.b16 %v2591, %v2590
      %v2616 = vpack.c.b16 %v2593, %v2592
      %v2617 = vpack.c.b16 %v2595, %v2594
      %v2618 = vpack.c.b16 %v2597, %v2596
      %v2619 = vpack.c.b16 %v2599, %v2598
      %v2620 = vpack.c.b16 %v2601, %v2600
      %v2621 = vpack.c.b16 %v2603, %v2602
      %v2622 = vpack.c.b16 %v2605, %v2604
      %v2623 = vpack.c.b16 %v2607, %v2606
      %v2656 = vunpack.c.l.b16 %v2528
      %v2657 = vunpack.c.l.b16 %v2529
      %v2658 = vunpack.c.l.b16 %v2530
      %v2659 = vunpack.c.l.b16 %v2531
      %v2660 = vunpack.c.l.b16 %v2532
      %v2661 = vunpack.c.l.b16 %v2533
      %v2662 = vunpack.c.l.b16 %v2534
      %v2663 = vunpack.c.l.b16 %v2535
      %v2664 = vunpack.c.l.b16 %v2536
      %v2665 = vunpack.c.l.b16 %v2537
      %v2666 = vunpack.c.l.b16 %v2538
      %v2667 = vunpack.c.l.b16 %v2539
      %v2668 = vunpack.c.l.b16 %v2540
      %v2669 = vunpack.c.l.b16 %v2541
      %v2670 = vunpack.c.l.b16 %v2542
      %v2671 = vunpack.c.l.b16 %v2543
      %v2672 = vpack.c.b16 %v2657, %v2656
      %v2673 = vpack.c.b16 %v2659, %v2658
      %v2674 = vpack.c.b16 %v2661, %v2660
      %v2675 = vpack.c.b16 %v2663, %v2662
      %v2676 = vpack.c.b16 %v2665, %v2664
      %v2677 = vpack.c.b16 %v2667, %v2666
      %v2678 = vpack.c.b16 %v2669, %v2668
      %v2679 = vpack.c.b16 %v2671, %v2670
      %2688 = vmatpush.bf16.msra.mxu0 %v2679
      %2689 = vmatpush.bf16.msra.mxu0 %v2678
      %2690 = vmatpush.bf16.msra.mxu0 %v2677
      %2691 = vmatpush.bf16.msra.mxu0 %v2676
      %2692 = vmatpush.bf16.msra.mxu0 %v2675
      %2693 = vmatpush.bf16.msra.mxu0 %v2674
      %2694 = vmatpush.bf16.msra.mxu0 %v2673
      %2695 = vmatpush.bf16.msra.mxu0 %v2672
      %2696 = vmatmul.bf16.gmra.mxu0 %v2608
      %v2697 = vpop.f32.mrf.mxu0
      %v2698 = vadd.f32 0.0, %v2697
      %v2699 = vpop.f32.mrf.mxu0
      %v2700 = vadd.f32 0.0, %v2699
      %2701 = vmatmul.bf16.gmra.mxu0 %v2609
      %v2702 = vpop.f32.mrf.mxu0
      %v2703 = vadd.f32 0.0, %v2702
      %v2704 = vpop.f32.mrf.mxu0
      %v2705 = vadd.f32 0.0, %v2704
      %2706 = vmatmul.bf16.gmra.mxu0 %v2610
      %v2707 = vpop.f32.mrf.mxu0
      %v2708 = vadd.f32 0.0, %v2707
      %v2709 = vpop.f32.mrf.mxu0
      %v2710 = vadd.f32 0.0, %v2709
      %2711 = vmatmul.bf16.gmra.mxu0 %v2611
      %v2712 = vpop.f32.mrf.mxu0
      %v2713 = vadd.f32 0.0, %v2712
      %v2714 = vpop.f32.mrf.mxu0
      %v2715 = vadd.f32 0.0, %v2714
      %2716 = vmatmul.bf16.gmra.mxu0 %v2612
      %v2717 = vpop.f32.mrf.mxu0
      %v2718 = vadd.f32 0.0, %v2717
      %v2719 = vpop.f32.mrf.mxu0
      %v2720 = vadd.f32 0.0, %v2719
      %2721 = vmatmul.bf16.gmra.mxu0 %v2613
      %v2722 = vpop.f32.mrf.mxu0
      %v2723 = vadd.f32 0.0, %v2722
      %v2724 = vpop.f32.mrf.mxu0
      %v2725 = vadd.f32 0.0, %v2724
      %2726 = vmatmul.bf16.gmra.mxu0 %v2614
      %v2727 = vpop.f32.mrf.mxu0
      %v2728 = vadd.f32 0.0, %v2727
      %v2729 = vpop.f32.mrf.mxu0
      %v2730 = vadd.f32 0.0, %v2729
      %2731 = vmatmul.bf16.gmra.mxu0 %v2615
      %v2732 = vpop.f32.mrf.mxu0
      %v2733 = vadd.f32 0.0, %v2732
      %v2734 = vpop.f32.mrf.mxu0
      %v2735 = vadd.f32 0.0, %v2734
      %2736 = vmatmul.bf16.gmra.mxu0 %v2616
      %v2737 = vpop.f32.mrf.mxu0
      %v2738 = vadd.f32 0.0, %v2737
      %v2739 = vpop.f32.mrf.mxu0
      %v2740 = vadd.f32 0.0, %v2739
      %2741 = vmatmul.bf16.gmra.mxu0 %v2617
      %v2742 = vpop.f32.mrf.mxu0
      %v2743 = vadd.f32 0.0, %v2742
      %v2744 = vpop.f32.mrf.mxu0
      %v2745 = vadd.f32 0.0, %v2744
      %2746 = vmatmul.bf16.gmra.mxu0 %v2618
      %v2747 = vpop.f32.mrf.mxu0
      %v2748 = vadd.f32 0.0, %v2747
      %v2749 = vpop.f32.mrf.mxu0
      %v2750 = vadd.f32 0.0, %v2749
      %2751 = vmatmul.bf16.gmra.mxu0 %v2619
      %v2752 = vpop.f32.mrf.mxu0
      %v2753 = vadd.f32 0.0, %v2752
      %v2754 = vpop.f32.mrf.mxu0
      %v2755 = vadd.f32 0.0, %v2754
      %2756 = vmatmul.bf16.gmra.mxu0 %v2620
      %v2757 = vpop.f32.mrf.mxu0
      %v2758 = vadd.f32 0.0, %v2757
      %v2759 = vpop.f32.mrf.mxu0
      %v2760 = vadd.f32 0.0, %v2759
      %2761 = vmatmul.bf16.gmra.mxu0 %v2621
      %v2762 = vpop.f32.mrf.mxu0
      %v2763 = vadd.f32 0.0, %v2762
      %v2764 = vpop.f32.mrf.mxu0
      %v2765 = vadd.f32 0.0, %v2764
      %2766 = vmatmul.bf16.gmra.mxu0 %v2622
      %v2767 = vpop.f32.mrf.mxu0
      %v2768 = vadd.f32 0.0, %v2767
      %v2769 = vpop.f32.mrf.mxu0
      %v2770 = vadd.f32 0.0, %v2769
      %2771 = vmatmul.bf16.gmra.mxu0 %v2623
      %v2772 = vpop.f32.mrf.mxu0
      %v2773 = vadd.f32 0.0, %v2772
      %v2774 = vpop.f32.mrf.mxu0
      %v2775 = vadd.f32 0.0, %v2774
      %2776 = vdwg.mxu0
      %v2777 = vadd.f32 %v2495, %v2698
      %v2778 = vadd.f32 %v2496, %v2700
      %v2779 = vadd.f32 %v2497, %v2703
      %v2780 = vadd.f32 %v2498, %v2705
      %v2781 = vadd.f32 %v2499, %v2708
      %v2782 = vadd.f32 %v2500, %v2710
      %v2783 = vadd.f32 %v2501, %v2713
      %v2784 = vadd.f32 %v2502, %v2715
      %v2785 = vadd.f32 %v2503, %v2718
      %v2786 = vadd.f32 %v2504, %v2720
      %v2787 = vadd.f32 %v2505, %v2723
      %v2788 = vadd.f32 %v2506, %v2725
      %v2789 = vadd.f32 %v2507, %v2728
      %v2790 = vadd.f32 %v2508, %v2730
      %v2791 = vadd.f32 %v2509, %v2733
      %v2792 = vadd.f32 %v2510, %v2735
      %v2793 = vadd.f32 %v2511, %v2738
      %v2794 = vadd.f32 %v2512, %v2740
      %v2795 = vadd.f32 %v2513, %v2743
      %v2796 = vadd.f32 %v2514, %v2745
      %v2797 = vadd.f32 %v2515, %v2748
      %v2798 = vadd.f32 %v2516, %v2750
      %v2799 = vadd.f32 %v2517, %v2753
      %v2800 = vadd.f32 %v2518, %v2755
      %v2801 = vadd.f32 %v2519, %v2758
      %v2802 = vadd.f32 %v2520, %v2760
      %v2803 = vadd.f32 %v2521, %v2763
      %v2804 = vadd.f32 %v2522, %v2765
      %v2805 = vadd.f32 %v2523, %v2768
      %v2806 = vadd.f32 %v2524, %v2770
      %v2807 = vadd.f32 %v2525, %v2773
      %v2808 = vadd.f32 %v2526, %v2775
      %v2809 = vld [vmem:[%s289 + $0x8] sm:$0xf]
      %v2810 = vld [vmem:[%s289 + $0xc] sm:$0xf]
      %v2811 = vld [vmem:[%s289 + $0x10] sm:$0x1]
      %v2812 = vld [vmem:[%s289 + $0x20] sm:$0xf]
      %v2813 = vld [vmem:[%s289 + $0x24] sm:$0xf]
      %v2814 = vld [vmem:[%s289 + $0x28] sm:$0x1]
      %v2815 = vld [vmem:[%s289 + $0x38] sm:$0xf]
      %v2816 = vld [vmem:[%s289 + $0x3c] sm:$0xf]
      %v2817 = vld [vmem:[%s289 + $0x40] sm:$0x1]
      %v2818 = vld [vmem:[%s289 + $0x50] sm:$0xf]
      %v2819 = vld [vmem:[%s289 + $0x54] sm:$0xf]
      %v2820 = vld [vmem:[%s289 + $0x58] sm:$0x1]
      %v2821 = vld [vmem:[%s289 + $0x68] sm:$0xf]
      %v2822 = vld [vmem:[%s289 + $0x6c] sm:$0xf]
      %v2823 = vld [vmem:[%s289 + $0x70] sm:$0x1]
      %v2824 = vld [vmem:[%s289 + $0x80] sm:$0xf]
      %v2825 = vld [vmem:[%s289 + $0x84] sm:$0xf]
      %v2826 = vld [vmem:[%s289 + $0x88] sm:$0x1]
      %v2827 = vld [vmem:[%s289 + $0x98] sm:$0xf]
      %v2828 = vld [vmem:[%s289 + $0x9c] sm:$0xf]
      %v2829 = vld [vmem:[%s289 + $0xa0] sm:$0x1]
      %v2830 = vld [vmem:[%s289 + $0xb0] sm:$0xf]
      %v2831 = vld [vmem:[%s289 + $0xb4] sm:$0xf]
      %v2832 = vld [vmem:[%s289 + $0xb8] sm:$0x1]
      %v2833 = vld [vmem:[%s289 + $0xc8] sm:$0xf]
      %v2834 = vld [vmem:[%s289 + $0xcc] sm:$0xf]
      %v2835 = vld [vmem:[%s289 + $0xd0] sm:$0x1]
      %v2836 = vld [vmem:[%s289 + $0xe0] sm:$0xf]
      %v2837 = vld [vmem:[%s289 + $0xe4] sm:$0xf]
      %v2838 = vld [vmem:[%s289 + $0xe8] sm:$0x1]
      %v2839 = vld [vmem:[%s289 + $0xf8] sm:$0xf]
      %v2840 = vld [vmem:[%s289 + $0xfc] sm:$0xf]
      %v2841 = vld [vmem:[%s289 + $0x100] sm:$0x1]
      %v2842 = vld [vmem:[%s289 + $0x110] sm:$0xf]
      %v2843 = vld [vmem:[%s289 + $0x114] sm:$0xf]
      %v2844 = vld [vmem:[%s289 + $0x118] sm:$0x1]
      %v2845 = vld [vmem:[%s289 + $0x128] sm:$0xf]
      %v2846 = vld [vmem:[%s289 + $0x12c] sm:$0xf]
      %v2847 = vld [vmem:[%s289 + $0x130] sm:$0x1]
      %v2848 = vld [vmem:[%s289 + $0x140] sm:$0xf]
      %v2849 = vld [vmem:[%s289 + $0x144] sm:$0xf]
      %v2850 = vld [vmem:[%s289 + $0x148] sm:$0x1]
      %v2851 = vld [vmem:[%s289 + $0x158] sm:$0xf]
      %v2852 = vld [vmem:[%s289 + $0x15c] sm:$0xf]
      %v2853 = vld [vmem:[%s289 + $0x160] sm:$0x1]
      %v2854 = vld [vmem:[%s289 + $0x170] sm:$0xf]
      %v2855 = vld [vmem:[%s289 + $0x174] sm:$0xf]
      %v2856 = vld [vmem:[%s289 + $0x178] sm:$0x1]
      %v2858 = vshrl.u32 %v2809, 16
      %v2860 = vrot.slane %v2858, 4
      %v2861 = vshll.u32 %v2809, 16
      %v2863 = vrot.slane %v2861, 5
      %v2864 = vor.u32 %v2860, %v2863
      %v2865 = vrot.slane %v2864, 4
      %v2867 = vshll.u32 %v2810, 16
      %v2869 = vrot.slane %v2867, 5
      %v2870 = vsel %vm1242, %v2865, %v2869
      %v2871 = vshrl.u32 %v2810, 16
      %v2873 = vrot.slane %v2871, 4
      %v2874 = vor.u32 %v2873, %v2869
      %v2875 = vrot.slane %v2874, 4
      %v2877 = vshll.u32 %v2811, 16
      %v2879 = vrot.slane %v2877, 5
      %v2880 = vsel %vm1242, %v2875, %v2879
      %v2882 = vshrl.u32 %v2812, 16
      %v2884 = vrot.slane %v2882, 4
      %v2885 = vshll.u32 %v2812, 16
      %v2887 = vrot.slane %v2885, 5
      %v2888 = vor.u32 %v2884, %v2887
      %v2889 = vrot.slane %v2888, 4
      %v2891 = vshll.u32 %v2813, 16
      %v2893 = vrot.slane %v2891, 5
      %v2894 = vsel %vm1242, %v2889, %v2893
      %v2895 = vshrl.u32 %v2813, 16
      %v2897 = vrot.slane %v2895, 4
      %v2898 = vor.u32 %v2897, %v2893
      %v2899 = vrot.slane %v2898, 4
      %v2901 = vshll.u32 %v2814, 16
      %v2903 = vrot.slane %v2901, 5
      %v2904 = vsel %vm1242, %v2899, %v2903
      %v2906 = vshrl.u32 %v2815, 16
      %v2908 = vrot.slane %v2906, 4
      %v2909 = vshll.u32 %v2815, 16
      %v2911 = vrot.slane %v2909, 5
      %v2912 = vor.u32 %v2908, %v2911
      %v2913 = vrot.slane %v2912, 4
      %v2915 = vshll.u32 %v2816, 16
      %v2917 = vrot.slane %v2915, 5
      %v2918 = vsel %vm1242, %v2913, %v2917
      %v2919 = vshrl.u32 %v2816, 16
      %v2921 = vrot.slane %v2919, 4
      %v2922 = vor.u32 %v2921, %v2917
      %v2923 = vrot.slane %v2922, 4
      %v2925 = vshll.u32 %v2817, 16
      %v2927 = vrot.slane %v2925, 5
      %v2928 = vsel %vm1242, %v2923, %v2927
      %v2930 = vshrl.u32 %v2818, 16
      %v2932 = vrot.slane %v2930, 4
      %v2933 = vshll.u32 %v2818, 16
      %v2935 = vrot.slane %v2933, 5
      %v2936 = vor.u32 %v2932, %v2935
      %v2937 = vrot.slane %v2936, 4
      %v2939 = vshll.u32 %v2819, 16
      %v2941 = vrot.slane %v2939, 5
      %v2942 = vsel %vm1242, %v2937, %v2941
      %v2943 = vshrl.u32 %v2819, 16
      %v2945 = vrot.slane %v2943, 4
      %v2946 = vor.u32 %v2945, %v2941
      %v2947 = vrot.slane %v2946, 4
      %v2949 = vshll.u32 %v2820, 16
      %v2951 = vrot.slane %v2949, 5
      %v2952 = vsel %vm1242, %v2947, %v2951
      %v2954 = vshrl.u32 %v2821, 16
      %v2956 = vrot.slane %v2954, 4
      %v2957 = vshll.u32 %v2821, 16
      %v2959 = vrot.slane %v2957, 5
      %v2960 = vor.u32 %v2956, %v2959
      %v2961 = vrot.slane %v2960, 4
      %v2963 = vshll.u32 %v2822, 16
      %v2965 = vrot.slane %v2963, 5
      %v2966 = vsel %vm1242, %v2961, %v2965
      %v2967 = vshrl.u32 %v2822, 16
      %v2969 = vrot.slane %v2967, 4
      %v2970 = vor.u32 %v2969, %v2965
      %v2971 = vrot.slane %v2970, 4
      %v2973 = vshll.u32 %v2823, 16
      %v2975 = vrot.slane %v2973, 5
      %v2976 = vsel %vm1242, %v2971, %v2975
      %v2978 = vshrl.u32 %v2824, 16
      %v2980 = vrot.slane %v2978, 4
      %v2981 = vshll.u32 %v2824, 16
      %v2983 = vrot.slane %v2981, 5
      %v2984 = vor.u32 %v2980, %v2983
      %v2985 = vrot.slane %v2984, 4
      %v2987 = vshll.u32 %v2825, 16
      %v2989 = vrot.slane %v2987, 5
      %v2990 = vsel %vm1242, %v2985, %v2989
      %v2991 = vshrl.u32 %v2825, 16
      %v2993 = vrot.slane %v2991, 4
      %v2994 = vor.u32 %v2993, %v2989
      %v2995 = vrot.slane %v2994, 4
      %v2997 = vshll.u32 %v2826, 16
      %v2999 = vrot.slane %v2997, 5
      %v3000 = vsel %vm1242, %v2995, %v2999
      %v3002 = vshrl.u32 %v2827, 16
      %v3004 = vrot.slane %v3002, 4
      %v3005 = vshll.u32 %v2827, 16
      %v3007 = vrot.slane %v3005, 5
      %v3008 = vor.u32 %v3004, %v3007
      %v3009 = vrot.slane %v3008, 4
      %v3011 = vshll.u32 %v2828, 16
      %v3013 = vrot.slane %v3011, 5
      %v3014 = vsel %vm1242, %v3009, %v3013
      %v3015 = vshrl.u32 %v2828, 16
      %v3017 = vrot.slane %v3015, 4
      %v3018 = vor.u32 %v3017, %v3013
      %v3019 = vrot.slane %v3018, 4
      %v3021 = vshll.u32 %v2829, 16
      %v3023 = vrot.slane %v3021, 5
      %v3024 = vsel %vm1242, %v3019, %v3023
      %v3026 = vshrl.u32 %v2830, 16
      %v3028 = vrot.slane %v3026, 4
      %v3029 = vshll.u32 %v2830, 16
      %v3031 = vrot.slane %v3029, 5
      %v3032 = vor.u32 %v3028, %v3031
      %v3033 = vrot.slane %v3032, 4
      %v3035 = vshll.u32 %v2831, 16
      %v3037 = vrot.slane %v3035, 5
      %v3038 = vsel %vm1242, %v3033, %v3037
      %v3039 = vshrl.u32 %v2831, 16
      %v3041 = vrot.slane %v3039, 4
      %v3042 = vor.u32 %v3041, %v3037
      %v3043 = vrot.slane %v3042, 4
      %v3045 = vshll.u32 %v2832, 16
      %v3047 = vrot.slane %v3045, 5
      %v3048 = vsel %vm1242, %v3043, %v3047
      %v3050 = vshrl.u32 %v2833, 16
      %v3052 = vrot.slane %v3050, 4
      %v3053 = vshll.u32 %v2833, 16
      %v3055 = vrot.slane %v3053, 5
      %v3056 = vor.u32 %v3052, %v3055
      %v3057 = vrot.slane %v3056, 4
      %v3059 = vshll.u32 %v2834, 16
      %v3061 = vrot.slane %v3059, 5
      %v3062 = vsel %vm1242, %v3057, %v3061
      %v3063 = vshrl.u32 %v2834, 16
      %v3065 = vrot.slane %v3063, 4
      %v3066 = vor.u32 %v3065, %v3061
      %v3067 = vrot.slane %v3066, 4
      %v3069 = vshll.u32 %v2835, 16
      %v3071 = vrot.slane %v3069, 5
      %v3072 = vsel %vm1242, %v3067, %v3071
      %v3074 = vshrl.u32 %v2836, 16
      %v3076 = vrot.slane %v3074, 4
      %v3077 = vshll.u32 %v2836, 16
      %v3079 = vrot.slane %v3077, 5
      %v3080 = vor.u32 %v3076, %v3079
      %v3081 = vrot.slane %v3080, 4
      %v3083 = vshll.u32 %v2837, 16
      %v3085 = vrot.slane %v3083, 5
      %v3086 = vsel %vm1242, %v3081, %v3085
      %v3087 = vshrl.u32 %v2837, 16
      %v3089 = vrot.slane %v3087, 4
      %v3090 = vor.u32 %v3089, %v3085
      %v3091 = vrot.slane %v3090, 4
      %v3093 = vshll.u32 %v2838, 16
      %v3095 = vrot.slane %v3093, 5
      %v3096 = vsel %vm1242, %v3091, %v3095
      %v3098 = vshrl.u32 %v2839, 16
      %v3100 = vrot.slane %v3098, 4
      %v3101 = vshll.u32 %v2839, 16
      %v3103 = vrot.slane %v3101, 5
      %v3104 = vor.u32 %v3100, %v3103
      %v3105 = vrot.slane %v3104, 4
      %v3107 = vshll.u32 %v2840, 16
      %v3109 = vrot.slane %v3107, 5
      %v3110 = vsel %vm1242, %v3105, %v3109
      %v3111 = vshrl.u32 %v2840, 16
      %v3113 = vrot.slane %v3111, 4
      %v3114 = vor.u32 %v3113, %v3109
      %v3115 = vrot.slane %v3114, 4
      %v3117 = vshll.u32 %v2841, 16
      %v3119 = vrot.slane %v3117, 5
      %v3120 = vsel %vm1242, %v3115, %v3119
      %v3122 = vshrl.u32 %v2842, 16
      %v3124 = vrot.slane %v3122, 4
      %v3125 = vshll.u32 %v2842, 16
      %v3127 = vrot.slane %v3125, 5
      %v3128 = vor.u32 %v3124, %v3127
      %v3129 = vrot.slane %v3128, 4
      %v3131 = vshll.u32 %v2843, 16
      %v3133 = vrot.slane %v3131, 5
      %v3134 = vsel %vm1242, %v3129, %v3133
      %v3135 = vshrl.u32 %v2843, 16
      %v3137 = vrot.slane %v3135, 4
      %v3138 = vor.u32 %v3137, %v3133
      %v3139 = vrot.slane %v3138, 4
      %v3141 = vshll.u32 %v2844, 16
      %v3143 = vrot.slane %v3141, 5
      %v3144 = vsel %vm1242, %v3139, %v3143
      %v3146 = vshrl.u32 %v2845, 16
      %v3148 = vrot.slane %v3146, 4
      %v3149 = vshll.u32 %v2845, 16
      %v3151 = vrot.slane %v3149, 5
      %v3152 = vor.u32 %v3148, %v3151
      %v3153 = vrot.slane %v3152, 4
      %v3155 = vshll.u32 %v2846, 16
      %v3157 = vrot.slane %v3155, 5
      %v3158 = vsel %vm1242, %v3153, %v3157
      %v3159 = vshrl.u32 %v2846, 16
      %v3161 = vrot.slane %v3159, 4
      %v3162 = vor.u32 %v3161, %v3157
      %v3163 = vrot.slane %v3162, 4
      %v3165 = vshll.u32 %v2847, 16
      %v3167 = vrot.slane %v3165, 5
      %v3168 = vsel %vm1242, %v3163, %v3167
      %v3170 = vshrl.u32 %v2848, 16
      %v3172 = vrot.slane %v3170, 4
      %v3173 = vshll.u32 %v2848, 16
      %v3175 = vrot.slane %v3173, 5
      %v3176 = vor.u32 %v3172, %v3175
      %v3177 = vrot.slane %v3176, 4
      %v3179 = vshll.u32 %v2849, 16
      %v3181 = vrot.slane %v3179, 5
      %v3182 = vsel %vm1242, %v3177, %v3181
      %v3183 = vshrl.u32 %v2849, 16
      %v3185 = vrot.slane %v3183, 4
      %v3186 = vor.u32 %v3185, %v3181
      %v3187 = vrot.slane %v3186, 4
      %v3189 = vshll.u32 %v2850, 16
      %v3191 = vrot.slane %v3189, 5
      %v3192 = vsel %vm1242, %v3187, %v3191
      %v3194 = vshrl.u32 %v2851, 16
      %v3196 = vrot.slane %v3194, 4
      %v3197 = vshll.u32 %v2851, 16
      %v3199 = vrot.slane %v3197, 5
      %v3200 = vor.u32 %v3196, %v3199
      %v3201 = vrot.slane %v3200, 4
      %v3203 = vshll.u32 %v2852, 16
      %v3205 = vrot.slane %v3203, 5
      %v3206 = vsel %vm1242, %v3201, %v3205
      %v3207 = vshrl.u32 %v2852, 16
      %v3209 = vrot.slane %v3207, 4
      %v3210 = vor.u32 %v3209, %v3205
      %v3211 = vrot.slane %v3210, 4
      %v3213 = vshll.u32 %v2853, 16
      %v3215 = vrot.slane %v3213, 5
      %v3216 = vsel %vm1242, %v3211, %v3215
      %v3218 = vshrl.u32 %v2854, 16
      %v3220 = vrot.slane %v3218, 4
      %v3221 = vshll.u32 %v2854, 16
      %v3223 = vrot.slane %v3221, 5
      %v3224 = vor.u32 %v3220, %v3223
      %v3225 = vrot.slane %v3224, 4
      %v3227 = vshll.u32 %v2855, 16
      %v3229 = vrot.slane %v3227, 5
      %v3230 = vsel %vm1242, %v3225, %v3229
      %v3231 = vshrl.u32 %v2855, 16
      %v3233 = vrot.slane %v3231, 4
      %v3234 = vor.u32 %v3233, %v3229
      %v3235 = vrot.slane %v3234, 4
      %v3237 = vshll.u32 %v2856, 16
      %v3239 = vrot.slane %v3237, 5
      %v3240 = vsel %vm1242, %v3235, %v3239
      %s3241 = scalar_lea.vmem %s1, 320
      %v3242 = vld [vmem:[%s3241] sm:$0xf]
      %v3243 = vld [vmem:[%s3241 + $0x4] sm:$0xf]
      %v3244 = vld [vmem:[%s3241 + $0x8] sm:$0xf]
      %v3245 = vld [vmem:[%s3241 + $0xc] sm:$0xf]
      %v3246 = vld [vmem:[%s3241 + $0x10] sm:$0xf]
      %v3247 = vld [vmem:[%s3241 + $0x14] sm:$0xf]
      %v3248 = vld [vmem:[%s3241 + $0x18] sm:$0xf]
      %v3249 = vld [vmem:[%s3241 + $0x1c] sm:$0xf]
      %v3250 = vld [vmem:[%s3241 + $0x20] sm:$0xf]
      %v3251 = vld [vmem:[%s3241 + $0x24] sm:$0xf]
      %v3252 = vld [vmem:[%s3241 + $0x28] sm:$0xf]
      %v3253 = vld [vmem:[%s3241 + $0x2c] sm:$0xf]
      %v3254 = vld [vmem:[%s3241 + $0x30] sm:$0xf]
      %v3255 = vld [vmem:[%s3241 + $0x34] sm:$0xf]
      %v3256 = vld [vmem:[%s3241 + $0x38] sm:$0xf]
      %v3257 = vld [vmem:[%s3241 + $0x3c] sm:$0xf]
      %v3258 = vunpack.c.l.b16 %v2870
      %v3259 = vunpack.c.l.b16 %v2880
      %v3260 = vunpack.c.l.b16 %v2894
      %v3261 = vunpack.c.l.b16 %v2904
      %v3262 = vunpack.c.l.b16 %v2918
      %v3263 = vunpack.c.l.b16 %v2928
      %v3264 = vunpack.c.l.b16 %v2942
      %v3265 = vunpack.c.l.b16 %v2952
      %v3266 = vunpack.c.l.b16 %v2966
      %v3267 = vunpack.c.l.b16 %v2976
      %v3268 = vunpack.c.l.b16 %v2990
      %v3269 = vunpack.c.l.b16 %v3000
      %v3270 = vunpack.c.l.b16 %v3014
      %v3271 = vunpack.c.l.b16 %v3024
      %v3272 = vunpack.c.l.b16 %v3038
      %v3273 = vunpack.c.l.b16 %v3048
      %v3274 = vunpack.c.l.b16 %v3062
      %v3275 = vunpack.c.l.b16 %v3072
      %v3276 = vunpack.c.l.b16 %v3086
      %v3277 = vunpack.c.l.b16 %v3096
      %v3278 = vunpack.c.l.b16 %v3110
      %v3279 = vunpack.c.l.b16 %v3120
      %v3280 = vunpack.c.l.b16 %v3134
      %v3281 = vunpack.c.l.b16 %v3144
      %v3282 = vunpack.c.l.b16 %v3158
      %v3283 = vunpack.c.l.b16 %v3168
      %v3284 = vunpack.c.l.b16 %v3182
      %v3285 = vunpack.c.l.b16 %v3192
      %v3286 = vunpack.c.l.b16 %v3206
      %v3287 = vunpack.c.l.b16 %v3216
      %v3288 = vunpack.c.l.b16 %v3230
      %v3289 = vunpack.c.l.b16 %v3240
      %v3290 = vpack.c.b16 %v3259, %v3258
      %v3291 = vpack.c.b16 %v3261, %v3260
      %v3292 = vpack.c.b16 %v3263, %v3262
      %v3293 = vpack.c.b16 %v3265, %v3264
      %v3294 = vpack.c.b16 %v3267, %v3266
      %v3295 = vpack.c.b16 %v3269, %v3268
      %v3296 = vpack.c.b16 %v3271, %v3270
      %v3297 = vpack.c.b16 %v3273, %v3272
      %v3298 = vpack.c.b16 %v3275, %v3274
      %v3299 = vpack.c.b16 %v3277, %v3276
      %v3300 = vpack.c.b16 %v3279, %v3278
      %v3301 = vpack.c.b16 %v3281, %v3280
      %v3302 = vpack.c.b16 %v3283, %v3282
      %v3303 = vpack.c.b16 %v3285, %v3284
      %v3304 = vpack.c.b16 %v3287, %v3286
      %v3305 = vpack.c.b16 %v3289, %v3288
      %v3338 = vunpack.c.l.b16 %v3242
      %v3339 = vunpack.c.l.b16 %v3243
      %v3340 = vunpack.c.l.b16 %v3244
      %v3341 = vunpack.c.l.b16 %v3245
      %v3342 = vunpack.c.l.b16 %v3246
      %v3343 = vunpack.c.l.b16 %v3247
      %v3344 = vunpack.c.l.b16 %v3248
      %v3345 = vunpack.c.l.b16 %v3249
      %v3346 = vunpack.c.l.b16 %v3250
      %v3347 = vunpack.c.l.b16 %v3251
      %v3348 = vunpack.c.l.b16 %v3252
      %v3349 = vunpack.c.l.b16 %v3253
      %v3350 = vunpack.c.l.b16 %v3254
      %v3351 = vunpack.c.l.b16 %v3255
      %v3352 = vunpack.c.l.b16 %v3256
      %v3353 = vunpack.c.l.b16 %v3257
      %v3354 = vpack.c.b16 %v3339, %v3338
      %v3355 = vpack.c.b16 %v3341, %v3340
      %v3356 = vpack.c.b16 %v3343, %v3342
      %v3357 = vpack.c.b16 %v3345, %v3344
      %v3358 = vpack.c.b16 %v3347, %v3346
      %v3359 = vpack.c.b16 %v3349, %v3348
      %v3360 = vpack.c.b16 %v3351, %v3350
      %v3361 = vpack.c.b16 %v3353, %v3352
      %3370 = vmatpush.bf16.msra.mxu0 %v3361
      %3371 = vmatpush.bf16.msra.mxu0 %v3360
      %3372 = vmatpush.bf16.msra.mxu0 %v3359
      %3373 = vmatpush.bf16.msra.mxu0 %v3358
      %3374 = vmatpush.bf16.msra.mxu0 %v3357
      %3375 = vmatpush.bf16.msra.mxu0 %v3356
      %3376 = vmatpush.bf16.msra.mxu0 %v3355
      %3377 = vmatpush.bf16.msra.mxu0 %v3354
      %3378 = vmatmul.bf16.gmra.mxu0 %v3290
      %v3379 = vpop.f32.mrf.mxu0
      %v3380 = vadd.f32 0.0, %v3379
      %v3381 = vpop.f32.mrf.mxu0
      %v3382 = vadd.f32 0.0, %v3381
      %3383 = vmatmul.bf16.gmra.mxu0 %v3291
      %v3384 = vpop.f32.mrf.mxu0
      %v3385 = vadd.f32 0.0, %v3384
      %v3386 = vpop.f32.mrf.mxu0
      %v3387 = vadd.f32 0.0, %v3386
      %3388 = vmatmul.bf16.gmra.mxu0 %v3292
      %v3389 = vpop.f32.mrf.mxu0
      %v3390 = vadd.f32 0.0, %v3389
      %v3391 = vpop.f32.mrf.mxu0
      %v3392 = vadd.f32 0.0, %v3391
      %3393 = vmatmul.bf16.gmra.mxu0 %v3293
      %v3394 = vpop.f32.mrf.mxu0
      %v3395 = vadd.f32 0.0, %v3394
      %v3396 = vpop.f32.mrf.mxu0
      %v3397 = vadd.f32 0.0, %v3396
      %3398 = vmatmul.bf16.gmra.mxu0 %v3294
      %v3399 = vpop.f32.mrf.mxu0
      %v3400 = vadd.f32 0.0, %v3399
      %v3401 = vpop.f32.mrf.mxu0
      %v3402 = vadd.f32 0.0, %v3401
      %3403 = vmatmul.bf16.gmra.mxu0 %v3295
      %v3404 = vpop.f32.mrf.mxu0
      %v3405 = vadd.f32 0.0, %v3404
      %v3406 = vpop.f32.mrf.mxu0
      %v3407 = vadd.f32 0.0, %v3406
      %3408 = vmatmul.bf16.gmra.mxu0 %v3296
      %v3409 = vpop.f32.mrf.mxu0
      %v3410 = vadd.f32 0.0, %v3409
      %v3411 = vpop.f32.mrf.mxu0
      %v3412 = vadd.f32 0.0, %v3411
      %3413 = vmatmul.bf16.gmra.mxu0 %v3297
      %v3414 = vpop.f32.mrf.mxu0
      %v3415 = vadd.f32 0.0, %v3414
      %v3416 = vpop.f32.mrf.mxu0
      %v3417 = vadd.f32 0.0, %v3416
      %3418 = vmatmul.bf16.gmra.mxu0 %v3298
      %v3419 = vpop.f32.mrf.mxu0
      %v3420 = vadd.f32 0.0, %v3419
      %v3421 = vpop.f32.mrf.mxu0
      %v3422 = vadd.f32 0.0, %v3421
      %3423 = vmatmul.bf16.gmra.mxu0 %v3299
      %v3424 = vpop.f32.mrf.mxu0
      %v3425 = vadd.f32 0.0, %v3424
      %v3426 = vpop.f32.mrf.mxu0
      %v3427 = vadd.f32 0.0, %v3426
      %3428 = vmatmul.bf16.gmra.mxu0 %v3300
      %v3429 = vpop.f32.mrf.mxu0
      %v3430 = vadd.f32 0.0, %v3429
      %v3431 = vpop.f32.mrf.mxu0
      %v3432 = vadd.f32 0.0, %v3431
      %3433 = vmatmul.bf16.gmra.mxu0 %v3301
      %v3434 = vpop.f32.mrf.mxu0
      %v3435 = vadd.f32 0.0, %v3434
      %v3436 = vpop.f32.mrf.mxu0
      %v3437 = vadd.f32 0.0, %v3436
      %3438 = vmatmul.bf16.gmra.mxu0 %v3302
      %v3439 = vpop.f32.mrf.mxu0
      %v3440 = vadd.f32 0.0, %v3439
      %v3441 = vpop.f32.mrf.mxu0
      %v3442 = vadd.f32 0.0, %v3441
      %3443 = vmatmul.bf16.gmra.mxu0 %v3303
      %v3444 = vpop.f32.mrf.mxu0
      %v3445 = vadd.f32 0.0, %v3444
      %v3446 = vpop.f32.mrf.mxu0
      %v3447 = vadd.f32 0.0, %v3446
      %3448 = vmatmul.bf16.gmra.mxu0 %v3304
      %v3449 = vpop.f32.mrf.mxu0
      %v3450 = vadd.f32 0.0, %v3449
      %v3451 = vpop.f32.mrf.mxu0
      %v3452 = vadd.f32 0.0, %v3451
      %3453 = vmatmul.bf16.gmra.mxu0 %v3305
      %v3454 = vpop.f32.mrf.mxu0
      %v3455 = vadd.f32 0.0, %v3454
      %v3456 = vpop.f32.mrf.mxu0
      %v3457 = vadd.f32 0.0, %v3456
      %3458 = vdwg.mxu0
      %v3459 = vadd.f32 %v2777, %v3380
      %v3460 = vadd.f32 %v2778, %v3382
      %v3461 = vadd.f32 %v2779, %v3385
      %v3462 = vadd.f32 %v2780, %v3387
      %v3463 = vadd.f32 %v2781, %v3390
      %v3464 = vadd.f32 %v2782, %v3392
      %v3465 = vadd.f32 %v2783, %v3395
      %v3466 = vadd.f32 %v2784, %v3397
      %v3467 = vadd.f32 %v2785, %v3400
      %v3468 = vadd.f32 %v2786, %v3402
      %v3469 = vadd.f32 %v2787, %v3405
      %v3470 = vadd.f32 %v2788, %v3407
      %v3471 = vadd.f32 %v2789, %v3410
      %v3472 = vadd.f32 %v2790, %v3412
      %v3473 = vadd.f32 %v2791, %v3415
      %v3474 = vadd.f32 %v2792, %v3417
      %v3475 = vadd.f32 %v2793, %v3420
      %v3476 = vadd.f32 %v2794, %v3422
      %v3477 = vadd.f32 %v2795, %v3425
      %v3478 = vadd.f32 %v2796, %v3427
      %v3479 = vadd.f32 %v2797, %v3430
      %v3480 = vadd.f32 %v2798, %v3432
      %v3481 = vadd.f32 %v2799, %v3435
      %v3482 = vadd.f32 %v2800, %v3437
      %v3483 = vadd.f32 %v2801, %v3440
      %v3484 = vadd.f32 %v2802, %v3442
      %v3485 = vadd.f32 %v2803, %v3445
      %v3486 = vadd.f32 %v2804, %v3447
      %v3487 = vadd.f32 %v2805, %v3450
      %v3488 = vadd.f32 %v2806, %v3452
      %v3489 = vadd.f32 %v2807, %v3455
      %v3490 = vadd.f32 %v2808, %v3457
      %s3491 = scalar_lea.vmem [#allocation2], 48
      %v3492 = vld [vmem:[%s3491 + $0x4] sm:$0x8]
      %v3493 = vld [vmem:[%s3491 + $0x8] sm:$0xf]
      %v3494 = vld [vmem:[%s3491 + $0xc] sm:$0xf]
      %v3495 = vld [vmem:[%s3491 + $0x1c] sm:$0x8]
      %v3496 = vld [vmem:[%s3491 + $0x20] sm:$0xf]
      %v3497 = vld [vmem:[%s3491 + $0x24] sm:$0xf]
      %v3498 = vld [vmem:[%s3491 + $0x34] sm:$0x8]
      %v3499 = vld [vmem:[%s3491 + $0x38] sm:$0xf]
      %v3500 = vld [vmem:[%s3491 + $0x3c] sm:$0xf]
      %v3501 = vld [vmem:[%s3491 + $0x4c] sm:$0x8]
      %v3502 = vld [vmem:[%s3491 + $0x50] sm:$0xf]
      %v3503 = vld [vmem:[%s3491 + $0x54] sm:$0xf]
      %v3504 = vld [vmem:[%s3491 + $0x64] sm:$0x8]
      %v3505 = vld [vmem:[%s3491 + $0x68] sm:$0xf]
      %v3506 = vld [vmem:[%s3491 + $0x6c] sm:$0xf]
      %v3507 = vld [vmem:[%s3491 + $0x7c] sm:$0x8]
      %v3508 = vld [vmem:[%s3491 + $0x80] sm:$0xf]
      %v3509 = vld [vmem:[%s3491 + $0x84] sm:$0xf]
      %v3510 = vld [vmem:[%s3491 + $0x94] sm:$0x8]
      %v3511 = vld [vmem:[%s3491 + $0x98] sm:$0xf]
      %v3512 = vld [vmem:[%s3491 + $0x9c] sm:$0xf]
      %v3513 = vld [vmem:[%s3491 + $0xac] sm:$0x8]
      %v3514 = vld [vmem:[%s3491 + $0xb0] sm:$0xf]
      %v3515 = vld [vmem:[%s3491 + $0xb4] sm:$0xf]
      %v3516 = vld [vmem:[%s3491 + $0xc4] sm:$0x8]
      %v3517 = vld [vmem:[%s3491 + $0xc8] sm:$0xf]
      %v3518 = vld [vmem:[%s3491 + $0xcc] sm:$0xf]
      %v3519 = vld [vmem:[%s3491 + $0xdc] sm:$0x8]
      %v3520 = vld [vmem:[%s3491 + $0xe0] sm:$0xf]
      %v3521 = vld [vmem:[%s3491 + $0xe4] sm:$0xf]
      %v3522 = vld [vmem:[%s3491 + $0xf4] sm:$0x8]
      %v3523 = vld [vmem:[%s3491 + $0xf8] sm:$0xf]
      %v3524 = vld [vmem:[%s3491 + $0xfc] sm:$0xf]
      %v3525 = vld [vmem:[%s3491 + $0x10c] sm:$0x8]
      %v3526 = vld [vmem:[%s3491 + $0x110] sm:$0xf]
      %v3527 = vld [vmem:[%s3491 + $0x114] sm:$0xf]
      %v3528 = vld [vmem:[%s3491 + $0x124] sm:$0x8]
      %v3529 = vld [vmem:[%s3491 + $0x128] sm:$0xf]
      %v3530 = vld [vmem:[%s3491 + $0x12c] sm:$0xf]
      %v3531 = vld [vmem:[%s3491 + $0x13c] sm:$0x8]
      %v3532 = vld [vmem:[%s3491 + $0x140] sm:$0xf]
      %v3533 = vld [vmem:[%s3491 + $0x144] sm:$0xf]
      %v3534 = vld [vmem:[%s3491 + $0x154] sm:$0x8]
      %v3535 = vld [vmem:[%s3491 + $0x158] sm:$0xf]
      %v3536 = vld [vmem:[%s3491 + $0x15c] sm:$0xf]
      %v3537 = vld [vmem:[%s3491 + $0x16c] sm:$0x8]
      %v3538 = vld [vmem:[%s3491 + $0x170] sm:$0xf]
      %v3539 = vld [vmem:[%s3491 + $0x174] sm:$0xf]
      %v3541 = vshrl.u32 %v3492, 16
      %v3543 = vrot.slane %v3541, 7
      %v3544 = vrot.slane %v3543, 4
      %v3546 = vshrl.u32 %v3493, 16
      %v3548 = vrot.slane %v3546, 7
      %v3549 = vshll.u32 %v3493, 16
      %v3551 = vor.u32 %v3548, %v3549
      %v3552 = vsel %vm372, %v3544, %v3551
      %v3553 = vrot.slane %v3548, 4
      %v3555 = vshrl.u32 %v3494, 16
      %v3557 = vrot.slane %v3555, 7
      %v3558 = vshll.u32 %v3494, 16
      %v3560 = vor.u32 %v3557, %v3558
      %v3561 = vsel %vm372, %v3553, %v3560
      %v3563 = vshrl.u32 %v3495, 16
      %v3565 = vrot.slane %v3563, 7
      %v3566 = vrot.slane %v3565, 4
      %v3568 = vshrl.u32 %v3496, 16
      %v3570 = vrot.slane %v3568, 7
      %v3571 = vshll.u32 %v3496, 16
      %v3573 = vor.u32 %v3570, %v3571
      %v3574 = vsel %vm372, %v3566, %v3573
      %v3575 = vrot.slane %v3570, 4
      %v3577 = vshrl.u32 %v3497, 16
      %v3579 = vrot.slane %v3577, 7
      %v3580 = vshll.u32 %v3497, 16
      %v3582 = vor.u32 %v3579, %v3580
      %v3583 = vsel %vm372, %v3575, %v3582
      %v3585 = vshrl.u32 %v3498, 16
      %v3587 = vrot.slane %v3585, 7
      %v3588 = vrot.slane %v3587, 4
      %v3590 = vshrl.u32 %v3499, 16
      %v3592 = vrot.slane %v3590, 7
      %v3593 = vshll.u32 %v3499, 16
      %v3595 = vor.u32 %v3592, %v3593
      %v3596 = vsel %vm372, %v3588, %v3595
      %v3597 = vrot.slane %v3592, 4
      %v3599 = vshrl.u32 %v3500, 16
      %v3601 = vrot.slane %v3599, 7
      %v3602 = vshll.u32 %v3500, 16
      %v3604 = vor.u32 %v3601, %v3602
      %v3605 = vsel %vm372, %v3597, %v3604
      %v3607 = vshrl.u32 %v3501, 16
      %v3609 = vrot.slane %v3607, 7
      %v3610 = vrot.slane %v3609, 4
      %v3612 = vshrl.u32 %v3502, 16
      %v3614 = vrot.slane %v3612, 7
      %v3615 = vshll.u32 %v3502, 16
      %v3617 = vor.u32 %v3614, %v3615
      %v3618 = vsel %vm372, %v3610, %v3617
      %v3619 = vrot.slane %v3614, 4
      %v3621 = vshrl.u32 %v3503, 16
      %v3623 = vrot.slane %v3621, 7
      %v3624 = vshll.u32 %v3503, 16
      %v3626 = vor.u32 %v3623, %v3624
      %v3627 = vsel %vm372, %v3619, %v3626
      %v3629 = vshrl.u32 %v3504, 16
      %v3631 = vrot.slane %v3629, 7
      %v3632 = vrot.slane %v3631, 4
      %v3634 = vshrl.u32 %v3505, 16
      %v3636 = vrot.slane %v3634, 7
      %v3637 = vshll.u32 %v3505, 16
      %v3639 = vor.u32 %v3636, %v3637
      %v3640 = vsel %vm372, %v3632, %v3639
      %v3641 = vrot.slane %v3636, 4
      %v3643 = vshrl.u32 %v3506, 16
      %v3645 = vrot.slane %v3643, 7
      %v3646 = vshll.u32 %v3506, 16
      %v3648 = vor.u32 %v3645, %v3646
      %v3649 = vsel %vm372, %v3641, %v3648
      %v3651 = vshrl.u32 %v3507, 16
      %v3653 = vrot.slane %v3651, 7
      %v3654 = vrot.slane %v3653, 4
      %v3656 = vshrl.u32 %v3508, 16
      %v3658 = vrot.slane %v3656, 7
      %v3659 = vshll.u32 %v3508, 16
      %v3661 = vor.u32 %v3658, %v3659
      %v3662 = vsel %vm372, %v3654, %v3661
      %v3663 = vrot.slane %v3658, 4
      %v3665 = vshrl.u32 %v3509, 16
      %v3667 = vrot.slane %v3665, 7
      %v3668 = vshll.u32 %v3509, 16
      %v3670 = vor.u32 %v3667, %v3668
      %v3671 = vsel %vm372, %v3663, %v3670
      %v3673 = vshrl.u32 %v3510, 16
      %v3675 = vrot.slane %v3673, 7
      %v3676 = vrot.slane %v3675, 4
      %v3678 = vshrl.u32 %v3511, 16
      %v3680 = vrot.slane %v3678, 7
      %v3681 = vshll.u32 %v3511, 16
      %v3683 = vor.u32 %v3680, %v3681
      %v3684 = vsel %vm372, %v3676, %v3683
      %v3685 = vrot.slane %v3680, 4
      %v3687 = vshrl.u32 %v3512, 16
      %v3689 = vrot.slane %v3687, 7
      %v3690 = vshll.u32 %v3512, 16
      %v3692 = vor.u32 %v3689, %v3690
      %v3693 = vsel %vm372, %v3685, %v3692
      %v3695 = vshrl.u32 %v3513, 16
      %v3697 = vrot.slane %v3695, 7
      %v3698 = vrot.slane %v3697, 4
      %v3700 = vshrl.u32 %v3514, 16
      %v3702 = vrot.slane %v3700, 7
      %v3703 = vshll.u32 %v3514, 16
      %v3705 = vor.u32 %v3702, %v3703
      %v3706 = vsel %vm372, %v3698, %v3705
      %v3707 = vrot.slane %v3702, 4
      %v3709 = vshrl.u32 %v3515, 16
      %v3711 = vrot.slane %v3709, 7
      %v3712 = vshll.u32 %v3515, 16
      %v3714 = vor.u32 %v3711, %v3712
      %v3715 = vsel %vm372, %v3707, %v3714
      %v3717 = vshrl.u32 %v3516, 16
      %v3719 = vrot.slane %v3717, 7
      %v3720 = vrot.slane %v3719, 4
      %v3722 = vshrl.u32 %v3517, 16
      %v3724 = vrot.slane %v3722, 7
      %v3725 = vshll.u32 %v3517, 16
      %v3727 = vor.u32 %v3724, %v3725
      %v3728 = vsel %vm372, %v3720, %v3727
      %v3729 = vrot.slane %v3724, 4
      %v3731 = vshrl.u32 %v3518, 16
      %v3733 = vrot.slane %v3731, 7
      %v3734 = vshll.u32 %v3518, 16
      %v3736 = vor.u32 %v3733, %v3734
      %v3737 = vsel %vm372, %v3729, %v3736
      %v3739 = vshrl.u32 %v3519, 16
      %v3741 = vrot.slane %v3739, 7
      %v3742 = vrot.slane %v3741, 4
      %v3744 = vshrl.u32 %v3520, 16
      %v3746 = vrot.slane %v3744, 7
      %v3747 = vshll.u32 %v3520, 16
      %v3749 = vor.u32 %v3746, %v3747
      %v3750 = vsel %vm372, %v3742, %v3749
      %v3751 = vrot.slane %v3746, 4
      %v3753 = vshrl.u32 %v3521, 16
      %v3755 = vrot.slane %v3753, 7
      %v3756 = vshll.u32 %v3521, 16
      %v3758 = vor.u32 %v3755, %v3756
      %v3759 = vsel %vm372, %v3751, %v3758
      %v3761 = vshrl.u32 %v3522, 16
      %v3763 = vrot.slane %v3761, 7
      %v3764 = vrot.slane %v3763, 4
      %v3766 = vshrl.u32 %v3523, 16
      %v3768 = vrot.slane %v3766, 7
      %v3769 = vshll.u32 %v3523, 16
      %v3771 = vor.u32 %v3768, %v3769
      %v3772 = vsel %vm372, %v3764, %v3771
      %v3773 = vrot.slane %v3768, 4
      %v3775 = vshrl.u32 %v3524, 16
      %v3777 = vrot.slane %v3775, 7
      %v3778 = vshll.u32 %v3524, 16
      %v3780 = vor.u32 %v3777, %v3778
      %v3781 = vsel %vm372, %v3773, %v3780
      %v3783 = vshrl.u32 %v3525, 16
      %v3785 = vrot.slane %v3783, 7
      %v3786 = vrot.slane %v3785, 4
      %v3788 = vshrl.u32 %v3526, 16
      %v3790 = vrot.slane %v3788, 7
      %v3791 = vshll.u32 %v3526, 16
      %v3793 = vor.u32 %v3790, %v3791
      %v3794 = vsel %vm372, %v3786, %v3793
      %v3795 = vrot.slane %v3790, 4
      %v3797 = vshrl.u32 %v3527, 16
      %v3799 = vrot.slane %v3797, 7
      %v3800 = vshll.u32 %v3527, 16
      %v3802 = vor.u32 %v3799, %v3800
      %v3803 = vsel %vm372, %v3795, %v3802
      %v3805 = vshrl.u32 %v3528, 16
      %v3807 = vrot.slane %v3805, 7
      %v3808 = vrot.slane %v3807, 4
      %v3810 = vshrl.u32 %v3529, 16
      %v3812 = vrot.slane %v3810, 7
      %v3813 = vshll.u32 %v3529, 16
      %v3815 = vor.u32 %v3812, %v3813
      %v3816 = vsel %vm372, %v3808, %v3815
      %v3817 = vrot.slane %v3812, 4
      %v3819 = vshrl.u32 %v3530, 16
      %v3821 = vrot.slane %v3819, 7
      %v3822 = vshll.u32 %v3530, 16
      %v3824 = vor.u32 %v3821, %v3822
      %v3825 = vsel %vm372, %v3817, %v3824
      %v3827 = vshrl.u32 %v3531, 16
      %v3829 = vrot.slane %v3827, 7
      %v3830 = vrot.slane %v3829, 4
      %v3832 = vshrl.u32 %v3532, 16
      %v3834 = vrot.slane %v3832, 7
      %v3835 = vshll.u32 %v3532, 16
      %v3837 = vor.u32 %v3834, %v3835
      %v3838 = vsel %vm372, %v3830, %v3837
      %v3839 = vrot.slane %v3834, 4
      %v3841 = vshrl.u32 %v3533, 16
      %v3843 = vrot.slane %v3841, 7
      %v3844 = vshll.u32 %v3533, 16
      %v3846 = vor.u32 %v3843, %v3844
      %v3847 = vsel %vm372, %v3839, %v3846
      %v3849 = vshrl.u32 %v3534, 16
      %v3851 = vrot.slane %v3849, 7
      %v3852 = vrot.slane %v3851, 4
      %v3854 = vshrl.u32 %v3535, 16
      %v3856 = vrot.slane %v3854, 7
      %v3857 = vshll.u32 %v3535, 16
      %v3859 = vor.u32 %v3856, %v3857
      %v3860 = vsel %vm372, %v3852, %v3859
      %v3861 = vrot.slane %v3856, 4
      %v3863 = vshrl.u32 %v3536, 16
      %v3865 = vrot.slane %v3863, 7
      %v3866 = vshll.u32 %v3536, 16
      %v3868 = vor.u32 %v3865, %v3866
      %v3869 = vsel %vm372, %v3861, %v3868
      %v3871 = vshrl.u32 %v3537, 16
      %v3873 = vrot.slane %v3871, 7
      %v3874 = vrot.slane %v3873, 4
      %v3876 = vshrl.u32 %v3538, 16
      %v3878 = vrot.slane %v3876, 7
      %v3879 = vshll.u32 %v3538, 16
      %v3881 = vor.u32 %v3878, %v3879
      %v3882 = vsel %vm372, %v3874, %v3881
      %v3883 = vrot.slane %v3878, 4
      %v3885 = vshrl.u32 %v3539, 16
      %v3887 = vrot.slane %v3885, 7
      %v3888 = vshll.u32 %v3539, 16
      %v3890 = vor.u32 %v3887, %v3888
      %v3891 = vsel %vm372, %v3883, %v3890
      %s3892 = scalar_lea.vmem %s1, 384
      %v3893 = vld [vmem:[%s3892] sm:$0xf]
      %v3894 = vld [vmem:[%s3892 + $0x4] sm:$0xf]
      %v3895 = vld [vmem:[%s3892 + $0x8] sm:$0xf]
      %v3896 = vld [vmem:[%s3892 + $0xc] sm:$0xf]
      %v3897 = vld [vmem:[%s3892 + $0x10] sm:$0xf]
      %v3898 = vld [vmem:[%s3892 + $0x14] sm:$0xf]
      %v3899 = vld [vmem:[%s3892 + $0x18] sm:$0xf]
      %v3900 = vld [vmem:[%s3892 + $0x1c] sm:$0xf]
      %v3901 = vld [vmem:[%s3892 + $0x20] sm:$0xf]
      %v3902 = vld [vmem:[%s3892 + $0x24] sm:$0xf]
      %v3903 = vld [vmem:[%s3892 + $0x28] sm:$0xf]
      %v3904 = vld [vmem:[%s3892 + $0x2c] sm:$0xf]
      %v3905 = vld [vmem:[%s3892 + $0x30] sm:$0xf]
      %v3906 = vld [vmem:[%s3892 + $0x34] sm:$0xf]
      %v3907 = vld [vmem:[%s3892 + $0x38] sm:$0xf]
      %v3908 = vld [vmem:[%s3892 + $0x3c] sm:$0xf]
      %v3909 = vunpack.c.l.b16 %v3552
      %v3910 = vunpack.c.l.b16 %v3561
      %v3911 = vunpack.c.l.b16 %v3574
      %v3912 = vunpack.c.l.b16 %v3583
      %v3913 = vunpack.c.l.b16 %v3596
      %v3914 = vunpack.c.l.b16 %v3605
      %v3915 = vunpack.c.l.b16 %v3618
      %v3916 = vunpack.c.l.b16 %v3627
      %v3917 = vunpack.c.l.b16 %v3640
      %v3918 = vunpack.c.l.b16 %v3649
      %v3919 = vunpack.c.l.b16 %v3662
      %v3920 = vunpack.c.l.b16 %v3671
      %v3921 = vunpack.c.l.b16 %v3684
      %v3922 = vunpack.c.l.b16 %v3693
      %v3923 = vunpack.c.l.b16 %v3706
      %v3924 = vunpack.c.l.b16 %v3715
      %v3925 = vunpack.c.l.b16 %v3728
      %v3926 = vunpack.c.l.b16 %v3737
      %v3927 = vunpack.c.l.b16 %v3750
      %v3928 = vunpack.c.l.b16 %v3759
      %v3929 = vunpack.c.l.b16 %v3772
      %v3930 = vunpack.c.l.b16 %v3781
      %v3931 = vunpack.c.l.b16 %v3794
      %v3932 = vunpack.c.l.b16 %v3803
      %v3933 = vunpack.c.l.b16 %v3816
      %v3934 = vunpack.c.l.b16 %v3825
      %v3935 = vunpack.c.l.b16 %v3838
      %v3936 = vunpack.c.l.b16 %v3847
      %v3937 = vunpack.c.l.b16 %v3860
      %v3938 = vunpack.c.l.b16 %v3869
      %v3939 = vunpack.c.l.b16 %v3882
      %v3940 = vunpack.c.l.b16 %v3891
      %v3941 = vpack.c.b16 %v3910, %v3909
      %v3942 = vpack.c.b16 %v3912, %v3911
      %v3943 = vpack.c.b16 %v3914, %v3913
      %v3944 = vpack.c.b16 %v3916, %v3915
      %v3945 = vpack.c.b16 %v3918, %v3917
      %v3946 = vpack.c.b16 %v3920, %v3919
      %v3947 = vpack.c.b16 %v3922, %v3921
      %v3948 = vpack.c.b16 %v3924, %v3923
      %v3949 = vpack.c.b16 %v3926, %v3925
      %v3950 = vpack.c.b16 %v3928, %v3927
      %v3951 = vpack.c.b16 %v3930, %v3929
      %v3952 = vpack.c.b16 %v3932, %v3931
      %v3953 = vpack.c.b16 %v3934, %v3933
      %v3954 = vpack.c.b16 %v3936, %v3935
      %v3955 = vpack.c.b16 %v3938, %v3937
      %v3956 = vpack.c.b16 %v3940, %v3939
      %v3989 = vunpack.c.l.b16 %v3893
      %v3990 = vunpack.c.l.b16 %v3894
      %v3991 = vunpack.c.l.b16 %v3895
      %v3992 = vunpack.c.l.b16 %v3896
      %v3993 = vunpack.c.l.b16 %v3897
      %v3994 = vunpack.c.l.b16 %v3898
      %v3995 = vunpack.c.l.b16 %v3899
      %v3996 = vunpack.c.l.b16 %v3900
      %v3997 = vunpack.c.l.b16 %v3901
      %v3998 = vunpack.c.l.b16 %v3902
      %v3999 = vunpack.c.l.b16 %v3903
      %v4000 = vunpack.c.l.b16 %v3904
      %v4001 = vunpack.c.l.b16 %v3905
      %v4002 = vunpack.c.l.b16 %v3906
      %v4003 = vunpack.c.l.b16 %v3907
      %v4004 = vunpack.c.l.b16 %v3908
      %v4005 = vpack.c.b16 %v3990, %v3989
      %v4006 = vpack.c.b16 %v3992, %v3991
      %v4007 = vpack.c.b16 %v3994, %v3993
      %v4008 = vpack.c.b16 %v3996, %v3995
      %v4009 = vpack.c.b16 %v3998, %v3997
      %v4010 = vpack.c.b16 %v4000, %v3999
      %v4011 = vpack.c.b16 %v4002, %v4001
      %v4012 = vpack.c.b16 %v4004, %v4003
      %4021 = vmatpush.bf16.msra.mxu0 %v4012
      %4022 = vmatpush.bf16.msra.mxu0 %v4011
      %4023 = vmatpush.bf16.msra.mxu0 %v4010
      %4024 = vmatpush.bf16.msra.mxu0 %v4009
      %4025 = vmatpush.bf16.msra.mxu0 %v4008
      %4026 = vmatpush.bf16.msra.mxu0 %v4007
      %4027 = vmatpush.bf16.msra.mxu0 %v4006
      %4028 = vmatpush.bf16.msra.mxu0 %v4005
      %4029 = vmatmul.bf16.gmra.mxu0 %v3941
      %v4030 = vpop.f32.mrf.mxu0
      %v4031 = vadd.f32 0.0, %v4030
      %v4032 = vpop.f32.mrf.mxu0
      %v4033 = vadd.f32 0.0, %v4032
      %4034 = vmatmul.bf16.gmra.mxu0 %v3942
      %v4035 = vpop.f32.mrf.mxu0
      %v4036 = vadd.f32 0.0, %v4035
      %v4037 = vpop.f32.mrf.mxu0
      %v4038 = vadd.f32 0.0, %v4037
      %4039 = vmatmul.bf16.gmra.mxu0 %v3943
      %v4040 = vpop.f32.mrf.mxu0
      %v4041 = vadd.f32 0.0, %v4040
      %v4042 = vpop.f32.mrf.mxu0
      %v4043 = vadd.f32 0.0, %v4042
      %4044 = vmatmul.bf16.gmra.mxu0 %v3944
      %v4045 = vpop.f32.mrf.mxu0
      %v4046 = vadd.f32 0.0, %v4045
      %v4047 = vpop.f32.mrf.mxu0
      %v4048 = vadd.f32 0.0, %v4047
      %4049 = vmatmul.bf16.gmra.mxu0 %v3945
      %v4050 = vpop.f32.mrf.mxu0
      %v4051 = vadd.f32 0.0, %v4050
      %v4052 = vpop.f32.mrf.mxu0
      %v4053 = vadd.f32 0.0, %v4052
      %4054 = vmatmul.bf16.gmra.mxu0 %v3946
      %v4055 = vpop.f32.mrf.mxu0
      %v4056 = vadd.f32 0.0, %v4055
      %v4057 = vpop.f32.mrf.mxu0
      %v4058 = vadd.f32 0.0, %v4057
      %4059 = vmatmul.bf16.gmra.mxu0 %v3947
      %v4060 = vpop.f32.mrf.mxu0
      %v4061 = vadd.f32 0.0, %v4060
      %v4062 = vpop.f32.mrf.mxu0
      %v4063 = vadd.f32 0.0, %v4062
      %4064 = vmatmul.bf16.gmra.mxu0 %v3948
      %v4065 = vpop.f32.mrf.mxu0
      %v4066 = vadd.f32 0.0, %v4065
      %v4067 = vpop.f32.mrf.mxu0
      %v4068 = vadd.f32 0.0, %v4067
      %4069 = vmatmul.bf16.gmra.mxu0 %v3949
      %v4070 = vpop.f32.mrf.mxu0
      %v4071 = vadd.f32 0.0, %v4070
      %v4072 = vpop.f32.mrf.mxu0
      %v4073 = vadd.f32 0.0, %v4072
      %4074 = vmatmul.bf16.gmra.mxu0 %v3950
      %v4075 = vpop.f32.mrf.mxu0
      %v4076 = vadd.f32 0.0, %v4075
      %v4077 = vpop.f32.mrf.mxu0
      %v4078 = vadd.f32 0.0, %v4077
      %4079 = vmatmul.bf16.gmra.mxu0 %v3951
      %v4080 = vpop.f32.mrf.mxu0
      %v4081 = vadd.f32 0.0, %v4080
      %v4082 = vpop.f32.mrf.mxu0
      %v4083 = vadd.f32 0.0, %v4082
      %4084 = vmatmul.bf16.gmra.mxu0 %v3952
      %v4085 = vpop.f32.mrf.mxu0
      %v4086 = vadd.f32 0.0, %v4085
      %v4087 = vpop.f32.mrf.mxu0
      %v4088 = vadd.f32 0.0, %v4087
      %4089 = vmatmul.bf16.gmra.mxu0 %v3953
      %v4090 = vpop.f32.mrf.mxu0
      %v4091 = vadd.f32 0.0, %v4090
      %v4092 = vpop.f32.mrf.mxu0
      %v4093 = vadd.f32 0.0, %v4092
      %4094 = vmatmul.bf16.gmra.mxu0 %v3954
      %v4095 = vpop.f32.mrf.mxu0
      %v4096 = vadd.f32 0.0, %v4095
      %v4097 = vpop.f32.mrf.mxu0
      %v4098 = vadd.f32 0.0, %v4097
      %4099 = vmatmul.bf16.gmra.mxu0 %v3955
      %v4100 = vpop.f32.mrf.mxu0
      %v4101 = vadd.f32 0.0, %v4100
      %v4102 = vpop.f32.mrf.mxu0
      %v4103 = vadd.f32 0.0, %v4102
      %4104 = vmatmul.bf16.gmra.mxu0 %v3956
      %v4105 = vpop.f32.mrf.mxu0
      %v4106 = vadd.f32 0.0, %v4105
      %v4107 = vpop.f32.mrf.mxu0
      %v4108 = vadd.f32 0.0, %v4107
      %4109 = vdwg.mxu0
      %v4110 = vadd.f32 %v3459, %v4031
      %v4111 = vadd.f32 %v3460, %v4033
      %v4112 = vadd.f32 %v3461, %v4036
      %v4113 = vadd.f32 %v3462, %v4038
      %v4114 = vadd.f32 %v3463, %v4041
      %v4115 = vadd.f32 %v3464, %v4043
      %v4116 = vadd.f32 %v3465, %v4046
      %v4117 = vadd.f32 %v3466, %v4048
      %v4118 = vadd.f32 %v3467, %v4051
      %v4119 = vadd.f32 %v3468, %v4053
      %v4120 = vadd.f32 %v3469, %v4056
      %v4121 = vadd.f32 %v3470, %v4058
      %v4122 = vadd.f32 %v3471, %v4061
      %v4123 = vadd.f32 %v3472, %v4063
      %v4124 = vadd.f32 %v3473, %v4066
      %v4125 = vadd.f32 %v3474, %v4068
      %v4126 = vadd.f32 %v3475, %v4071
      %v4127 = vadd.f32 %v3476, %v4073
      %v4128 = vadd.f32 %v3477, %v4076
      %v4129 = vadd.f32 %v3478, %v4078
      %v4130 = vadd.f32 %v3479, %v4081
      %v4131 = vadd.f32 %v3480, %v4083
      %v4132 = vadd.f32 %v3481, %v4086
      %v4133 = vadd.f32 %v3482, %v4088
      %v4134 = vadd.f32 %v3483, %v4091
      %v4135 = vadd.f32 %v3484, %v4093
      %v4136 = vadd.f32 %v3485, %v4096
      %v4137 = vadd.f32 %v3486, %v4098
      %v4138 = vadd.f32 %v3487, %v4101
      %v4139 = vadd.f32 %v3488, %v4103
      %v4140 = vadd.f32 %v3489, %v4106
      %v4141 = vadd.f32 %v3490, %v4108
      %s4142 = scalar_lea.vmem %s1, 448
      %v4143 = vld [vmem:[%s4142] sm:$0xf]
      %v4144 = vld [vmem:[%s4142 + $0x4] sm:$0xf]
      %v4145 = vld [vmem:[%s4142 + $0x8] sm:$0xf]
      %v4146 = vld [vmem:[%s4142 + $0xc] sm:$0xf]
      %v4147 = vld [vmem:[%s4142 + $0x10] sm:$0xf]
      %v4148 = vld [vmem:[%s4142 + $0x14] sm:$0xf]
      %v4149 = vld [vmem:[%s4142 + $0x18] sm:$0xf]
      %v4150 = vld [vmem:[%s4142 + $0x1c] sm:$0xf]
      %v4151 = vld [vmem:[%s4142 + $0x20] sm:$0xf]
      %v4152 = vld [vmem:[%s4142 + $0x24] sm:$0xf]
      %v4153 = vld [vmem:[%s4142 + $0x28] sm:$0xf]
      %v4154 = vld [vmem:[%s4142 + $0x2c] sm:$0xf]
      %v4155 = vld [vmem:[%s4142 + $0x30] sm:$0xf]
      %v4156 = vld [vmem:[%s4142 + $0x34] sm:$0xf]
      %v4157 = vld [vmem:[%s4142 + $0x38] sm:$0xf]
      %v4158 = vld [vmem:[%s4142 + $0x3c] sm:$0xf]
      %v4191 = vunpack.c.l.b16 %v3493
      %v4192 = vunpack.c.l.b16 %v3494
      %v4193 = vunpack.c.l.b16 %v3496
      %v4194 = vunpack.c.l.b16 %v3497
      %v4195 = vunpack.c.l.b16 %v3499
      %v4196 = vunpack.c.l.b16 %v3500
      %v4197 = vunpack.c.l.b16 %v3502
      %v4198 = vunpack.c.l.b16 %v3503
      %v4199 = vunpack.c.l.b16 %v3505
      %v4200 = vunpack.c.l.b16 %v3506
      %v4201 = vunpack.c.l.b16 %v3508
      %v4202 = vunpack.c.l.b16 %v3509
      %v4203 = vunpack.c.l.b16 %v3511
      %v4204 = vunpack.c.l.b16 %v3512
      %v4205 = vunpack.c.l.b16 %v3514
      %v4206 = vunpack.c.l.b16 %v3515
      %v4207 = vunpack.c.l.b16 %v3517
      %v4208 = vunpack.c.l.b16 %v3518
      %v4209 = vunpack.c.l.b16 %v3520
      %v4210 = vunpack.c.l.b16 %v3521
      %v4211 = vunpack.c.l.b16 %v3523
      %v4212 = vunpack.c.l.b16 %v3524
      %v4213 = vunpack.c.l.b16 %v3526
      %v4214 = vunpack.c.l.b16 %v3527
      %v4215 = vunpack.c.l.b16 %v3529
      %v4216 = vunpack.c.l.b16 %v3530
      %v4217 = vunpack.c.l.b16 %v3532
      %v4218 = vunpack.c.l.b16 %v3533
      %v4219 = vunpack.c.l.b16 %v3535
      %v4220 = vunpack.c.l.b16 %v3536
      %v4221 = vunpack.c.l.b16 %v3538
      %v4222 = vunpack.c.l.b16 %v3539
      %v4223 = vpack.c.b16 %v4192, %v4191
      %v4224 = vpack.c.b16 %v4194, %v4193
      %v4225 = vpack.c.b16 %v4196, %v4195
      %v4226 = vpack.c.b16 %v4198, %v4197
      %v4227 = vpack.c.b16 %v4200, %v4199
      %v4228 = vpack.c.b16 %v4202, %v4201
      %v4229 = vpack.c.b16 %v4204, %v4203
      %v4230 = vpack.c.b16 %v4206, %v4205
      %v4231 = vpack.c.b16 %v4208, %v4207
      %v4232 = vpack.c.b16 %v4210, %v4209
      %v4233 = vpack.c.b16 %v4212, %v4211
      %v4234 = vpack.c.b16 %v4214, %v4213
      %v4235 = vpack.c.b16 %v4216, %v4215
      %v4236 = vpack.c.b16 %v4218, %v4217
      %v4237 = vpack.c.b16 %v4220, %v4219
      %v4238 = vpack.c.b16 %v4222, %v4221
      %v4271 = vunpack.c.l.b16 %v4143
      %v4272 = vunpack.c.l.b16 %v4144
      %v4273 = vunpack.c.l.b16 %v4145
      %v4274 = vunpack.c.l.b16 %v4146
      %v4275 = vunpack.c.l.b16 %v4147
      %v4276 = vunpack.c.l.b16 %v4148
      %v4277 = vunpack.c.l.b16 %v4149
      %v4278 = vunpack.c.l.b16 %v4150
      %v4279 = vunpack.c.l.b16 %v4151
      %v4280 = vunpack.c.l.b16 %v4152
      %v4281 = vunpack.c.l.b16 %v4153
      %v4282 = vunpack.c.l.b16 %v4154
      %v4283 = vunpack.c.l.b16 %v4155
      %v4284 = vunpack.c.l.b16 %v4156
      %v4285 = vunpack.c.l.b16 %v4157
      %v4286 = vunpack.c.l.b16 %v4158
      %v4287 = vpack.c.b16 %v4272, %v4271
      %v4288 = vpack.c.b16 %v4274, %v4273
      %v4289 = vpack.c.b16 %v4276, %v4275
      %v4290 = vpack.c.b16 %v4278, %v4277
      %v4291 = vpack.c.b16 %v4280, %v4279
      %v4292 = vpack.c.b16 %v4282, %v4281
      %v4293 = vpack.c.b16 %v4284, %v4283
      %v4294 = vpack.c.b16 %v4286, %v4285
      %4303 = vmatpush.bf16.msra.mxu0 %v4294
      %4304 = vmatpush.bf16.msra.mxu0 %v4293
      %4305 = vmatpush.bf16.msra.mxu0 %v4292
      %4306 = vmatpush.bf16.msra.mxu0 %v4291
      %4307 = vmatpush.bf16.msra.mxu0 %v4290
      %4308 = vmatpush.bf16.msra.mxu0 %v4289
      %4309 = vmatpush.bf16.msra.mxu0 %v4288
      %4310 = vmatpush.bf16.msra.mxu0 %v4287
      %4311 = vmatmul.bf16.gmra.mxu0 %v4223
      %v4312 = vpop.f32.mrf.mxu0
      %v4313 = vadd.f32 0.0, %v4312
      %v4314 = vpop.f32.mrf.mxu0
      %v4315 = vadd.f32 0.0, %v4314
      %4316 = vmatmul.bf16.gmra.mxu0 %v4224
      %v4317 = vpop.f32.mrf.mxu0
      %v4318 = vadd.f32 0.0, %v4317
      %v4319 = vpop.f32.mrf.mxu0
      %v4320 = vadd.f32 0.0, %v4319
      %4321 = vmatmul.bf16.gmra.mxu0 %v4225
      %v4322 = vpop.f32.mrf.mxu0
      %v4323 = vadd.f32 0.0, %v4322
      %v4324 = vpop.f32.mrf.mxu0
      %v4325 = vadd.f32 0.0, %v4324
      %4326 = vmatmul.bf16.gmra.mxu0 %v4226
      %v4327 = vpop.f32.mrf.mxu0
      %v4328 = vadd.f32 0.0, %v4327
      %v4329 = vpop.f32.mrf.mxu0
      %v4330 = vadd.f32 0.0, %v4329
      %4331 = vmatmul.bf16.gmra.mxu0 %v4227
      %v4332 = vpop.f32.mrf.mxu0
      %v4333 = vadd.f32 0.0, %v4332
      %v4334 = vpop.f32.mrf.mxu0
      %v4335 = vadd.f32 0.0, %v4334
      %4336 = vmatmul.bf16.gmra.mxu0 %v4228
      %v4337 = vpop.f32.mrf.mxu0
      %v4338 = vadd.f32 0.0, %v4337
      %v4339 = vpop.f32.mrf.mxu0
      %v4340 = vadd.f32 0.0, %v4339
      %4341 = vmatmul.bf16.gmra.mxu0 %v4229
      %v4342 = vpop.f32.mrf.mxu0
      %v4343 = vadd.f32 0.0, %v4342
      %v4344 = vpop.f32.mrf.mxu0
      %v4345 = vadd.f32 0.0, %v4344
      %4346 = vmatmul.bf16.gmra.mxu0 %v4230
      %v4347 = vpop.f32.mrf.mxu0
      %v4348 = vadd.f32 0.0, %v4347
      %v4349 = vpop.f32.mrf.mxu0
      %v4350 = vadd.f32 0.0, %v4349
      %4351 = vmatmul.bf16.gmra.mxu0 %v4231
      %v4352 = vpop.f32.mrf.mxu0
      %v4353 = vadd.f32 0.0, %v4352
      %v4354 = vpop.f32.mrf.mxu0
      %v4355 = vadd.f32 0.0, %v4354
      %4356 = vmatmul.bf16.gmra.mxu0 %v4232
      %v4357 = vpop.f32.mrf.mxu0
      %v4358 = vadd.f32 0.0, %v4357
      %v4359 = vpop.f32.mrf.mxu0
      %v4360 = vadd.f32 0.0, %v4359
      %4361 = vmatmul.bf16.gmra.mxu0 %v4233
      %v4362 = vpop.f32.mrf.mxu0
      %v4363 = vadd.f32 0.0, %v4362
      %v4364 = vpop.f32.mrf.mxu0
      %v4365 = vadd.f32 0.0, %v4364
      %4366 = vmatmul.bf16.gmra.mxu0 %v4234
      %v4367 = vpop.f32.mrf.mxu0
      %v4368 = vadd.f32 0.0, %v4367
      %v4369 = vpop.f32.mrf.mxu0
      %v4370 = vadd.f32 0.0, %v4369
      %4371 = vmatmul.bf16.gmra.mxu0 %v4235
      %v4372 = vpop.f32.mrf.mxu0
      %v4373 = vadd.f32 0.0, %v4372
      %v4374 = vpop.f32.mrf.mxu0
      %v4375 = vadd.f32 0.0, %v4374
      %4376 = vmatmul.bf16.gmra.mxu0 %v4236
      %v4377 = vpop.f32.mrf.mxu0
      %v4378 = vadd.f32 0.0, %v4377
      %v4379 = vpop.f32.mrf.mxu0
      %v4380 = vadd.f32 0.0, %v4379
      %4381 = vmatmul.bf16.gmra.mxu0 %v4237
      %v4382 = vpop.f32.mrf.mxu0
      %v4383 = vadd.f32 0.0, %v4382
      %v4384 = vpop.f32.mrf.mxu0
      %v4385 = vadd.f32 0.0, %v4384
      %4386 = vmatmul.bf16.gmra.mxu0 %v4238
      %v4387 = vpop.f32.mrf.mxu0
      %v4388 = vadd.f32 0.0, %v4387
      %v4389 = vpop.f32.mrf.mxu0
      %v4390 = vadd.f32 0.0, %v4389
      %4391 = vdwg.mxu0
      %v4392 = vadd.f32 %v4110, %v4313
      %v4393 = vadd.f32 %v4111, %v4315
      %v4394 = vadd.f32 %v4112, %v4318
      %v4395 = vadd.f32 %v4113, %v4320
      %v4396 = vadd.f32 %v4114, %v4323
      %v4397 = vadd.f32 %v4115, %v4325
      %v4398 = vadd.f32 %v4116, %v4328
      %v4399 = vadd.f32 %v4117, %v4330
      %v4400 = vadd.f32 %v4118, %v4333
      %v4401 = vadd.f32 %v4119, %v4335
      %v4402 = vadd.f32 %v4120, %v4338
      %v4403 = vadd.f32 %v4121, %v4340
      %v4404 = vadd.f32 %v4122, %v4343
      %v4405 = vadd.f32 %v4123, %v4345
      %v4406 = vadd.f32 %v4124, %v4348
      %v4407 = vadd.f32 %v4125, %v4350
      %v4408 = vadd.f32 %v4126, %v4353
      %v4409 = vadd.f32 %v4127, %v4355
      %v4410 = vadd.f32 %v4128, %v4358
      %v4411 = vadd.f32 %v4129, %v4360
      %v4412 = vadd.f32 %v4130, %v4363
      %v4413 = vadd.f32 %v4131, %v4365
      %v4414 = vadd.f32 %v4132, %v4368
      %v4415 = vadd.f32 %v4133, %v4370
      %v4416 = vadd.f32 %v4134, %v4373
      %v4417 = vadd.f32 %v4135, %v4375
      %v4418 = vadd.f32 %v4136, %v4378
      %v4419 = vadd.f32 %v4137, %v4380
      %v4420 = vadd.f32 %v4138, %v4383
      %v4421 = vadd.f32 %v4139, %v4385
      %v4422 = vadd.f32 %v4140, %v4388
      %v4423 = vadd.f32 %v4141, %v4390
      %v4424 = vld [vmem:[%s3491 + $0x8] sm:$0xf]
      %v4425 = vld [vmem:[%s3491 + $0xc] sm:$0xf]
      %v4426 = vld [vmem:[%s3491 + $0x10] sm:$0x1]
      %v4427 = vld [vmem:[%s3491 + $0x20] sm:$0xf]
      %v4428 = vld [vmem:[%s3491 + $0x24] sm:$0xf]
      %v4429 = vld [vmem:[%s3491 + $0x28] sm:$0x1]
      %v4430 = vld [vmem:[%s3491 + $0x38] sm:$0xf]
      %v4431 = vld [vmem:[%s3491 + $0x3c] sm:$0xf]
      %v4432 = vld [vmem:[%s3491 + $0x40] sm:$0x1]
      %v4433 = vld [vmem:[%s3491 + $0x50] sm:$0xf]
      %v4434 = vld [vmem:[%s3491 + $0x54] sm:$0xf]
      %v4435 = vld [vmem:[%s3491 + $0x58] sm:$0x1]
      %v4436 = vld [vmem:[%s3491 + $0x68] sm:$0xf]
      %v4437 = vld [vmem:[%s3491 + $0x6c] sm:$0xf]
      %v4438 = vld [vmem:[%s3491 + $0x70] sm:$0x1]
      %v4439 = vld [vmem:[%s3491 + $0x80] sm:$0xf]
      %v4440 = vld [vmem:[%s3491 + $0x84] sm:$0xf]
      %v4441 = vld [vmem:[%s3491 + $0x88] sm:$0x1]
      %v4442 = vld [vmem:[%s3491 + $0x98] sm:$0xf]
      %v4443 = vld [vmem:[%s3491 + $0x9c] sm:$0xf]
      %v4444 = vld [vmem:[%s3491 + $0xa0] sm:$0x1]
      %v4445 = vld [vmem:[%s3491 + $0xb0] sm:$0xf]
      %v4446 = vld [vmem:[%s3491 + $0xb4] sm:$0xf]
      %v4447 = vld [vmem:[%s3491 + $0xb8] sm:$0x1]
      %v4448 = vld [vmem:[%s3491 + $0xc8] sm:$0xf]
      %v4449 = vld [vmem:[%s3491 + $0xcc] sm:$0xf]
      %v4450 = vld [vmem:[%s3491 + $0xd0] sm:$0x1]
      %v4451 = vld [vmem:[%s3491 + $0xe0] sm:$0xf]
      %v4452 = vld [vmem:[%s3491 + $0xe4] sm:$0xf]
      %v4453 = vld [vmem:[%s3491 + $0xe8] sm:$0x1]
      %v4454 = vld [vmem:[%s3491 + $0xf8] sm:$0xf]
      %v4455 = vld [vmem:[%s3491 + $0xfc] sm:$0xf]
      %v4456 = vld [vmem:[%s3491 + $0x100] sm:$0x1]
      %v4457 = vld [vmem:[%s3491 + $0x110] sm:$0xf]
      %v4458 = vld [vmem:[%s3491 + $0x114] sm:$0xf]
      %v4459 = vld [vmem:[%s3491 + $0x118] sm:$0x1]
      %v4460 = vld [vmem:[%s3491 + $0x128] sm:$0xf]
      %v4461 = vld [vmem:[%s3491 + $0x12c] sm:$0xf]
      %v4462 = vld [vmem:[%s3491 + $0x130] sm:$0x1]
      %v4463 = vld [vmem:[%s3491 + $0x140] sm:$0xf]
      %v4464 = vld [vmem:[%s3491 + $0x144] sm:$0xf]
      %v4465 = vld [vmem:[%s3491 + $0x148] sm:$0x1]
      %v4466 = vld [vmem:[%s3491 + $0x158] sm:$0xf]
      %v4467 = vld [vmem:[%s3491 + $0x15c] sm:$0xf]
      %v4468 = vld [vmem:[%s3491 + $0x160] sm:$0x1]
      %v4469 = vld [vmem:[%s3491 + $0x170] sm:$0xf]
      %v4470 = vld [vmem:[%s3491 + $0x174] sm:$0xf]
      %v4471 = vld [vmem:[%s3491 + $0x178] sm:$0x1]
      %v4473 = vshrl.u32 %v4424, 16
      %v4475 = vrot.slane %v4473, 4
      %v4476 = vshll.u32 %v4424, 16
      %v4478 = vrot.slane %v4476, 5
      %v4479 = vor.u32 %v4475, %v4478
      %v4480 = vrot.slane %v4479, 4
      %v4482 = vshll.u32 %v4425, 16
      %v4484 = vrot.slane %v4482, 5
      %v4485 = vsel %vm1242, %v4480, %v4484
      %v4486 = vshrl.u32 %v4425, 16
      %v4488 = vrot.slane %v4486, 4
      %v4489 = vor.u32 %v4488, %v4484
      %v4490 = vrot.slane %v4489, 4
      %v4492 = vshll.u32 %v4426, 16
      %v4494 = vrot.slane %v4492, 5
      %v4495 = vsel %vm1242, %v4490, %v4494
      %v4497 = vshrl.u32 %v4427, 16
      %v4499 = vrot.slane %v4497, 4
      %v4500 = vshll.u32 %v4427, 16
      %v4502 = vrot.slane %v4500, 5
      %v4503 = vor.u32 %v4499, %v4502
      %v4504 = vrot.slane %v4503, 4
      %v4506 = vshll.u32 %v4428, 16
      %v4508 = vrot.slane %v4506, 5
      %v4509 = vsel %vm1242, %v4504, %v4508
      %v4510 = vshrl.u32 %v4428, 16
      %v4512 = vrot.slane %v4510, 4
      %v4513 = vor.u32 %v4512, %v4508
      %v4514 = vrot.slane %v4513, 4
      %v4516 = vshll.u32 %v4429, 16
      %v4518 = vrot.slane %v4516, 5
      %v4519 = vsel %vm1242, %v4514, %v4518
      %v4521 = vshrl.u32 %v4430, 16
      %v4523 = vrot.slane %v4521, 4
      %v4524 = vshll.u32 %v4430, 16
      %v4526 = vrot.slane %v4524, 5
      %v4527 = vor.u32 %v4523, %v4526
      %v4528 = vrot.slane %v4527, 4
      %v4530 = vshll.u32 %v4431, 16
      %v4532 = vrot.slane %v4530, 5
      %v4533 = vsel %vm1242, %v4528, %v4532
      %v4534 = vshrl.u32 %v4431, 16
      %v4536 = vrot.slane %v4534, 4
      %v4537 = vor.u32 %v4536, %v4532
      %v4538 = vrot.slane %v4537, 4
      %v4540 = vshll.u32 %v4432, 16
      %v4542 = vrot.slane %v4540, 5
      %v4543 = vsel %vm1242, %v4538, %v4542
      %v4545 = vshrl.u32 %v4433, 16
      %v4547 = vrot.slane %v4545, 4
      %v4548 = vshll.u32 %v4433, 16
      %v4550 = vrot.slane %v4548, 5
      %v4551 = vor.u32 %v4547, %v4550
      %v4552 = vrot.slane %v4551, 4
      %v4554 = vshll.u32 %v4434, 16
      %v4556 = vrot.slane %v4554, 5
      %v4557 = vsel %vm1242, %v4552, %v4556
      %v4558 = vshrl.u32 %v4434, 16
      %v4560 = vrot.slane %v4558, 4
      %v4561 = vor.u32 %v4560, %v4556
      %v4562 = vrot.slane %v4561, 4
      %v4564 = vshll.u32 %v4435, 16
      %v4566 = vrot.slane %v4564, 5
      %v4567 = vsel %vm1242, %v4562, %v4566
      %v4569 = vshrl.u32 %v4436, 16
      %v4571 = vrot.slane %v4569, 4
      %v4572 = vshll.u32 %v4436, 16
      %v4574 = vrot.slane %v4572, 5
      %v4575 = vor.u32 %v4571, %v4574
      %v4576 = vrot.slane %v4575, 4
      %v4578 = vshll.u32 %v4437, 16
      %v4580 = vrot.slane %v4578, 5
      %v4581 = vsel %vm1242, %v4576, %v4580
      %v4582 = vshrl.u32 %v4437, 16
      %v4584 = vrot.slane %v4582, 4
      %v4585 = vor.u32 %v4584, %v4580
      %v4586 = vrot.slane %v4585, 4
      %v4588 = vshll.u32 %v4438, 16
      %v4590 = vrot.slane %v4588, 5
      %v4591 = vsel %vm1242, %v4586, %v4590
      %v4593 = vshrl.u32 %v4439, 16
      %v4595 = vrot.slane %v4593, 4
      %v4596 = vshll.u32 %v4439, 16
      %v4598 = vrot.slane %v4596, 5
      %v4599 = vor.u32 %v4595, %v4598
      %v4600 = vrot.slane %v4599, 4
      %v4602 = vshll.u32 %v4440, 16
      %v4604 = vrot.slane %v4602, 5
      %v4605 = vsel %vm1242, %v4600, %v4604
      %v4606 = vshrl.u32 %v4440, 16
      %v4608 = vrot.slane %v4606, 4
      %v4609 = vor.u32 %v4608, %v4604
      %v4610 = vrot.slane %v4609, 4
      %v4612 = vshll.u32 %v4441, 16
      %v4614 = vrot.slane %v4612, 5
      %v4615 = vsel %vm1242, %v4610, %v4614
      %v4617 = vshrl.u32 %v4442, 16
      %v4619 = vrot.slane %v4617, 4
      %v4620 = vshll.u32 %v4442, 16
      %v4622 = vrot.slane %v4620, 5
      %v4623 = vor.u32 %v4619, %v4622
      %v4624 = vrot.slane %v4623, 4
      %v4626 = vshll.u32 %v4443, 16
      %v4628 = vrot.slane %v4626, 5
      %v4629 = vsel %vm1242, %v4624, %v4628
      %v4630 = vshrl.u32 %v4443, 16
      %v4632 = vrot.slane %v4630, 4
      %v4633 = vor.u32 %v4632, %v4628
      %v4634 = vrot.slane %v4633, 4
      %v4636 = vshll.u32 %v4444, 16
      %v4638 = vrot.slane %v4636, 5
      %v4639 = vsel %vm1242, %v4634, %v4638
      %v4641 = vshrl.u32 %v4445, 16
      %v4643 = vrot.slane %v4641, 4
      %v4644 = vshll.u32 %v4445, 16
      %v4646 = vrot.slane %v4644, 5
      %v4647 = vor.u32 %v4643, %v4646
      %v4648 = vrot.slane %v4647, 4
      %v4650 = vshll.u32 %v4446, 16
      %v4652 = vrot.slane %v4650, 5
      %v4653 = vsel %vm1242, %v4648, %v4652
      %v4654 = vshrl.u32 %v4446, 16
      %v4656 = vrot.slane %v4654, 4
      %v4657 = vor.u32 %v4656, %v4652
      %v4658 = vrot.slane %v4657, 4
      %v4660 = vshll.u32 %v4447, 16
      %v4662 = vrot.slane %v4660, 5
      %v4663 = vsel %vm1242, %v4658, %v4662
      %v4665 = vshrl.u32 %v4448, 16
      %v4667 = vrot.slane %v4665, 4
      %v4668 = vshll.u32 %v4448, 16
      %v4670 = vrot.slane %v4668, 5
      %v4671 = vor.u32 %v4667, %v4670
      %v4672 = vrot.slane %v4671, 4
      %v4674 = vshll.u32 %v4449, 16
      %v4676 = vrot.slane %v4674, 5
      %v4677 = vsel %vm1242, %v4672, %v4676
      %v4678 = vshrl.u32 %v4449, 16
      %v4680 = vrot.slane %v4678, 4
      %v4681 = vor.u32 %v4680, %v4676
      %v4682 = vrot.slane %v4681, 4
      %v4684 = vshll.u32 %v4450, 16
      %v4686 = vrot.slane %v4684, 5
      %v4687 = vsel %vm1242, %v4682, %v4686
      %v4689 = vshrl.u32 %v4451, 16
      %v4691 = vrot.slane %v4689, 4
      %v4692 = vshll.u32 %v4451, 16
      %v4694 = vrot.slane %v4692, 5
      %v4695 = vor.u32 %v4691, %v4694
      %v4696 = vrot.slane %v4695, 4
      %v4698 = vshll.u32 %v4452, 16
      %v4700 = vrot.slane %v4698, 5
      %v4701 = vsel %vm1242, %v4696, %v4700
      %v4702 = vshrl.u32 %v4452, 16
      %v4704 = vrot.slane %v4702, 4
      %v4705 = vor.u32 %v4704, %v4700
      %v4706 = vrot.slane %v4705, 4
      %v4708 = vshll.u32 %v4453, 16
      %v4710 = vrot.slane %v4708, 5
      %v4711 = vsel %vm1242, %v4706, %v4710
      %v4713 = vshrl.u32 %v4454, 16
      %v4715 = vrot.slane %v4713, 4
      %v4716 = vshll.u32 %v4454, 16
      %v4718 = vrot.slane %v4716, 5
      %v4719 = vor.u32 %v4715, %v4718
      %v4720 = vrot.slane %v4719, 4
      %v4722 = vshll.u32 %v4455, 16
      %v4724 = vrot.slane %v4722, 5
      %v4725 = vsel %vm1242, %v4720, %v4724
      %v4726 = vshrl.u32 %v4455, 16
      %v4728 = vrot.slane %v4726, 4
      %v4729 = vor.u32 %v4728, %v4724
      %v4730 = vrot.slane %v4729, 4
      %v4732 = vshll.u32 %v4456, 16
      %v4734 = vrot.slane %v4732, 5
      %v4735 = vsel %vm1242, %v4730, %v4734
      %v4737 = vshrl.u32 %v4457, 16
      %v4739 = vrot.slane %v4737, 4
      %v4740 = vshll.u32 %v4457, 16
      %v4742 = vrot.slane %v4740, 5
      %v4743 = vor.u32 %v4739, %v4742
      %v4744 = vrot.slane %v4743, 4
      %v4746 = vshll.u32 %v4458, 16
      %v4748 = vrot.slane %v4746, 5
      %v4749 = vsel %vm1242, %v4744, %v4748
      %v4750 = vshrl.u32 %v4458, 16
      %v4752 = vrot.slane %v4750, 4
      %v4753 = vor.u32 %v4752, %v4748
      %v4754 = vrot.slane %v4753, 4
      %v4756 = vshll.u32 %v4459, 16
      %v4758 = vrot.slane %v4756, 5
      %v4759 = vsel %vm1242, %v4754, %v4758
      %v4761 = vshrl.u32 %v4460, 16
      %v4763 = vrot.slane %v4761, 4
      %v4764 = vshll.u32 %v4460, 16
      %v4766 = vrot.slane %v4764, 5
      %v4767 = vor.u32 %v4763, %v4766
      %v4768 = vrot.slane %v4767, 4
      %v4770 = vshll.u32 %v4461, 16
      %v4772 = vrot.slane %v4770, 5
      %v4773 = vsel %vm1242, %v4768, %v4772
      %v4774 = vshrl.u32 %v4461, 16
      %v4776 = vrot.slane %v4774, 4
      %v4777 = vor.u32 %v4776, %v4772
      %v4778 = vrot.slane %v4777, 4
      %v4780 = vshll.u32 %v4462, 16
      %v4782 = vrot.slane %v4780, 5
      %v4783 = vsel %vm1242, %v4778, %v4782
      %v4785 = vshrl.u32 %v4463, 16
      %v4787 = vrot.slane %v4785, 4
      %v4788 = vshll.u32 %v4463, 16
      %v4790 = vrot.slane %v4788, 5
      %v4791 = vor.u32 %v4787, %v4790
      %v4792 = vrot.slane %v4791, 4
      %v4794 = vshll.u32 %v4464, 16
      %v4796 = vrot.slane %v4794, 5
      %v4797 = vsel %vm1242, %v4792, %v4796
      %v4798 = vshrl.u32 %v4464, 16
      %v4800 = vrot.slane %v4798, 4
      %v4801 = vor.u32 %v4800, %v4796
      %v4802 = vrot.slane %v4801, 4
      %v4804 = vshll.u32 %v4465, 16
      %v4806 = vrot.slane %v4804, 5
      %v4807 = vsel %vm1242, %v4802, %v4806
      %v4809 = vshrl.u32 %v4466, 16
      %v4811 = vrot.slane %v4809, 4
      %v4812 = vshll.u32 %v4466, 16
      %v4814 = vrot.slane %v4812, 5
      %v4815 = vor.u32 %v4811, %v4814
      %v4816 = vrot.slane %v4815, 4
      %v4818 = vshll.u32 %v4467, 16
      %v4820 = vrot.slane %v4818, 5
      %v4821 = vsel %vm1242, %v4816, %v4820
      %v4822 = vshrl.u32 %v4467, 16
      %v4824 = vrot.slane %v4822, 4
      %v4825 = vor.u32 %v4824, %v4820
      %v4826 = vrot.slane %v4825, 4
      %v4828 = vshll.u32 %v4468, 16
      %v4830 = vrot.slane %v4828, 5
      %v4831 = vsel %vm1242, %v4826, %v4830
      %v4833 = vshrl.u32 %v4469, 16
      %v4835 = vrot.slane %v4833, 4
      %v4836 = vshll.u32 %v4469, 16
      %v4838 = vrot.slane %v4836, 5
      %v4839 = vor.u32 %v4835, %v4838
      %v4840 = vrot.slane %v4839, 4
      %v4842 = vshll.u32 %v4470, 16
      %v4844 = vrot.slane %v4842, 5
      %v4845 = vsel %vm1242, %v4840, %v4844
      %v4846 = vshrl.u32 %v4470, 16
      %v4848 = vrot.slane %v4846, 4
      %v4849 = vor.u32 %v4848, %v4844
      %v4850 = vrot.slane %v4849, 4
      %v4852 = vshll.u32 %v4471, 16
      %v4854 = vrot.slane %v4852, 5
      %v4855 = vsel %vm1242, %v4850, %v4854
      %s4856 = scalar_lea.vmem %s1, 512
      %v4857 = vld [vmem:[%s4856] sm:$0xf]
      %v4858 = vld [vmem:[%s4856 + $0x4] sm:$0xf]
      %v4859 = vld [vmem:[%s4856 + $0x8] sm:$0xf]
      %v4860 = vld [vmem:[%s4856 + $0xc] sm:$0xf]
      %v4861 = vld [vmem:[%s4856 + $0x10] sm:$0xf]
      %v4862 = vld [vmem:[%s4856 + $0x14] sm:$0xf]
      %v4863 = vld [vmem:[%s4856 + $0x18] sm:$0xf]
      %v4864 = vld [vmem:[%s4856 + $0x1c] sm:$0xf]
      %v4865 = vld [vmem:[%s4856 + $0x20] sm:$0xf]
      %v4866 = vld [vmem:[%s4856 + $0x24] sm:$0xf]
      %v4867 = vld [vmem:[%s4856 + $0x28] sm:$0xf]
      %v4868 = vld [vmem:[%s4856 + $0x2c] sm:$0xf]
      %v4869 = vld [vmem:[%s4856 + $0x30] sm:$0xf]
      %v4870 = vld [vmem:[%s4856 + $0x34] sm:$0xf]
      %v4871 = vld [vmem:[%s4856 + $0x38] sm:$0xf]
      %v4872 = vld [vmem:[%s4856 + $0x3c] sm:$0xf]
      %v4873 = vunpack.c.l.b16 %v4485
      %v4874 = vunpack.c.l.b16 %v4495
      %v4875 = vunpack.c.l.b16 %v4509
      %v4876 = vunpack.c.l.b16 %v4519
      %v4877 = vunpack.c.l.b16 %v4533
      %v4878 = vunpack.c.l.b16 %v4543
      %v4879 = vunpack.c.l.b16 %v4557
      %v4880 = vunpack.c.l.b16 %v4567
      %v4881 = vunpack.c.l.b16 %v4581
      %v4882 = vunpack.c.l.b16 %v4591
      %v4883 = vunpack.c.l.b16 %v4605
      %v4884 = vunpack.c.l.b16 %v4615
      %v4885 = vunpack.c.l.b16 %v4629
      %v4886 = vunpack.c.l.b16 %v4639
      %v4887 = vunpack.c.l.b16 %v4653
      %v4888 = vunpack.c.l.b16 %v4663
      %v4889 = vunpack.c.l.b16 %v4677
      %v4890 = vunpack.c.l.b16 %v4687
      %v4891 = vunpack.c.l.b16 %v4701
      %v4892 = vunpack.c.l.b16 %v4711
      %v4893 = vunpack.c.l.b16 %v4725
      %v4894 = vunpack.c.l.b16 %v4735
      %v4895 = vunpack.c.l.b16 %v4749
      %v4896 = vunpack.c.l.b16 %v4759
      %v4897 = vunpack.c.l.b16 %v4773
      %v4898 = vunpack.c.l.b16 %v4783
      %v4899 = vunpack.c.l.b16 %v4797
      %v4900 = vunpack.c.l.b16 %v4807
      %v4901 = vunpack.c.l.b16 %v4821
      %v4902 = vunpack.c.l.b16 %v4831
      %v4903 = vunpack.c.l.b16 %v4845
      %v4904 = vunpack.c.l.b16 %v4855
      %v4905 = vpack.c.b16 %v4874, %v4873
      %v4906 = vpack.c.b16 %v4876, %v4875
      %v4907 = vpack.c.b16 %v4878, %v4877
      %v4908 = vpack.c.b16 %v4880, %v4879
      %v4909 = vpack.c.b16 %v4882, %v4881
      %v4910 = vpack.c.b16 %v4884, %v4883
      %v4911 = vpack.c.b16 %v4886, %v4885
      %v4912 = vpack.c.b16 %v4888, %v4887
      %v4913 = vpack.c.b16 %v4890, %v4889
      %v4914 = vpack.c.b16 %v4892, %v4891
      %v4915 = vpack.c.b16 %v4894, %v4893
      %v4916 = vpack.c.b16 %v4896, %v4895
      %v4917 = vpack.c.b16 %v4898, %v4897
      %v4918 = vpack.c.b16 %v4900, %v4899
      %v4919 = vpack.c.b16 %v4902, %v4901
      %v4920 = vpack.c.b16 %v4904, %v4903
      %v4953 = vunpack.c.l.b16 %v4857
      %v4954 = vunpack.c.l.b16 %v4858
      %v4955 = vunpack.c.l.b16 %v4859
      %v4956 = vunpack.c.l.b16 %v4860
      %v4957 = vunpack.c.l.b16 %v4861
      %v4958 = vunpack.c.l.b16 %v4862
      %v4959 = vunpack.c.l.b16 %v4863
      %v4960 = vunpack.c.l.b16 %v4864
      %v4961 = vunpack.c.l.b16 %v4865
      %v4962 = vunpack.c.l.b16 %v4866
      %v4963 = vunpack.c.l.b16 %v4867
      %v4964 = vunpack.c.l.b16 %v4868
      %v4965 = vunpack.c.l.b16 %v4869
      %v4966 = vunpack.c.l.b16 %v4870
      %v4967 = vunpack.c.l.b16 %v4871
      %v4968 = vunpack.c.l.b16 %v4872
      %v4969 = vpack.c.b16 %v4954, %v4953
      %v4970 = vpack.c.b16 %v4956, %v4955
      %v4971 = vpack.c.b16 %v4958, %v4957
      %v4972 = vpack.c.b16 %v4960, %v4959
      %v4973 = vpack.c.b16 %v4962, %v4961
      %v4974 = vpack.c.b16 %v4964, %v4963
      %v4975 = vpack.c.b16 %v4966, %v4965
      %v4976 = vpack.c.b16 %v4968, %v4967
      %4985 = vmatpush.bf16.msra.mxu0 %v4976
      %4986 = vmatpush.bf16.msra.mxu0 %v4975
      %4987 = vmatpush.bf16.msra.mxu0 %v4974
      %4988 = vmatpush.bf16.msra.mxu0 %v4973
      %4989 = vmatpush.bf16.msra.mxu0 %v4972
      %4990 = vmatpush.bf16.msra.mxu0 %v4971
      %4991 = vmatpush.bf16.msra.mxu0 %v4970
      %4992 = vmatpush.bf16.msra.mxu0 %v4969
      %4993 = vmatmul.bf16.gmra.mxu0 %v4905
      %v4994 = vpop.f32.mrf.mxu0
      %v4995 = vadd.f32 0.0, %v4994
      %v4996 = vpop.f32.mrf.mxu0
      %v4997 = vadd.f32 0.0, %v4996
      %4998 = vmatmul.bf16.gmra.mxu0 %v4906
      %v4999 = vpop.f32.mrf.mxu0
      %v5000 = vadd.f32 0.0, %v4999
      %v5001 = vpop.f32.mrf.mxu0
      %v5002 = vadd.f32 0.0, %v5001
      %5003 = vmatmul.bf16.gmra.mxu0 %v4907
      %v5004 = vpop.f32.mrf.mxu0
      %v5005 = vadd.f32 0.0, %v5004
      %v5006 = vpop.f32.mrf.mxu0
      %v5007 = vadd.f32 0.0, %v5006
      %5008 = vmatmul.bf16.gmra.mxu0 %v4908
      %v5009 = vpop.f32.mrf.mxu0
      %v5010 = vadd.f32 0.0, %v5009
      %v5011 = vpop.f32.mrf.mxu0
      %v5012 = vadd.f32 0.0, %v5011
      %5013 = vmatmul.bf16.gmra.mxu0 %v4909
      %v5014 = vpop.f32.mrf.mxu0
      %v5015 = vadd.f32 0.0, %v5014
      %v5016 = vpop.f32.mrf.mxu0
      %v5017 = vadd.f32 0.0, %v5016
      %5018 = vmatmul.bf16.gmra.mxu0 %v4910
      %v5019 = vpop.f32.mrf.mxu0
      %v5020 = vadd.f32 0.0, %v5019
      %v5021 = vpop.f32.mrf.mxu0
      %v5022 = vadd.f32 0.0, %v5021
      %5023 = vmatmul.bf16.gmra.mxu0 %v4911
      %v5024 = vpop.f32.mrf.mxu0
      %v5025 = vadd.f32 0.0, %v5024
      %v5026 = vpop.f32.mrf.mxu0
      %v5027 = vadd.f32 0.0, %v5026
      %5028 = vmatmul.bf16.gmra.mxu0 %v4912
      %v5029 = vpop.f32.mrf.mxu0
      %v5030 = vadd.f32 0.0, %v5029
      %v5031 = vpop.f32.mrf.mxu0
      %v5032 = vadd.f32 0.0, %v5031
      %5033 = vmatmul.bf16.gmra.mxu0 %v4913
      %v5034 = vpop.f32.mrf.mxu0
      %v5035 = vadd.f32 0.0, %v5034
      %v5036 = vpop.f32.mrf.mxu0
      %v5037 = vadd.f32 0.0, %v5036
      %5038 = vmatmul.bf16.gmra.mxu0 %v4914
      %v5039 = vpop.f32.mrf.mxu0
      %v5040 = vadd.f32 0.0, %v5039
      %v5041 = vpop.f32.mrf.mxu0
      %v5042 = vadd.f32 0.0, %v5041
      %5043 = vmatmul.bf16.gmra.mxu0 %v4915
      %v5044 = vpop.f32.mrf.mxu0
      %v5045 = vadd.f32 0.0, %v5044
      %v5046 = vpop.f32.mrf.mxu0
      %v5047 = vadd.f32 0.0, %v5046
      %5048 = vmatmul.bf16.gmra.mxu0 %v4916
      %v5049 = vpop.f32.mrf.mxu0
      %v5050 = vadd.f32 0.0, %v5049
      %v5051 = vpop.f32.mrf.mxu0
      %v5052 = vadd.f32 0.0, %v5051
      %5053 = vmatmul.bf16.gmra.mxu0 %v4917
      %v5054 = vpop.f32.mrf.mxu0
      %v5055 = vadd.f32 0.0, %v5054
      %v5056 = vpop.f32.mrf.mxu0
      %v5057 = vadd.f32 0.0, %v5056
      %5058 = vmatmul.bf16.gmra.mxu0 %v4918
      %v5059 = vpop.f32.mrf.mxu0
      %v5060 = vadd.f32 0.0, %v5059
      %v5061 = vpop.f32.mrf.mxu0
      %v5062 = vadd.f32 0.0, %v5061
      %5063 = vmatmul.bf16.gmra.mxu0 %v4919
      %v5064 = vpop.f32.mrf.mxu0
      %v5065 = vadd.f32 0.0, %v5064
      %v5066 = vpop.f32.mrf.mxu0
      %v5067 = vadd.f32 0.0, %v5066
      %5068 = vmatmul.bf16.gmra.mxu0 %v4920
      %v5069 = vpop.f32.mrf.mxu0
      %v5070 = vadd.f32 0.0, %v5069
      %v5071 = vpop.f32.mrf.mxu0
      %v5072 = vadd.f32 0.0, %v5071
      %5073 = vdwg.mxu0
      %v5074 = vadd.f32 %v4392, %v4995
      %v5075 = vadd.f32 %v4393, %v4997
      %v5076 = vadd.f32 %v4394, %v5000
      %v5077 = vadd.f32 %v4395, %v5002
      %v5078 = vadd.f32 %v4396, %v5005
      %v5079 = vadd.f32 %v4397, %v5007
      %v5080 = vadd.f32 %v4398, %v5010
      %v5081 = vadd.f32 %v4399, %v5012
      %v5082 = vadd.f32 %v4400, %v5015
      %v5083 = vadd.f32 %v4401, %v5017
      %v5084 = vadd.f32 %v4402, %v5020
      %v5085 = vadd.f32 %v4403, %v5022
      %v5086 = vadd.f32 %v4404, %v5025
      %v5087 = vadd.f32 %v4405, %v5027
      %v5088 = vadd.f32 %v4406, %v5030
      %v5089 = vadd.f32 %v4407, %v5032
      %v5090 = vadd.f32 %v4408, %v5035
      %v5091 = vadd.f32 %v4409, %v5037
      %v5092 = vadd.f32 %v4410, %v5040
      %v5093 = vadd.f32 %v4411, %v5042
      %v5094 = vadd.f32 %v4412, %v5045
      %v5095 = vadd.f32 %v4413, %v5047
      %v5096 = vadd.f32 %v4414, %v5050
      %v5097 = vadd.f32 %v4415, %v5052
      %v5098 = vadd.f32 %v4416, %v5055
      %v5099 = vadd.f32 %v4417, %v5057
      %v5100 = vadd.f32 %v4418, %v5060
      %v5101 = vadd.f32 %v4419, %v5062
      %v5102 = vadd.f32 %v4420, %v5065
      %v5103 = vadd.f32 %v4421, %v5067
      %v5104 = vadd.f32 %v4422, %v5070
      %v5105 = vadd.f32 %v4423, %v5072
      %v5106 = vld [vmem:[%s2] sm:$0x1]
      %v5108 = vperm.slane %v5106, 0
      %v5110 = vadd.f32 %v5074, %v5108
      %v5111 = vadd.f32 %v5075, %v5108
      %v5112 = vadd.f32 %v5076, %v5108
      %v5113 = vadd.f32 %v5077, %v5108
      %v5114 = vadd.f32 %v5078, %v5108
      %v5115 = vadd.f32 %v5079, %v5108
      %v5116 = vadd.f32 %v5080, %v5108
      %v5117 = vadd.f32 %v5081, %v5108
      %v5118 = vadd.f32 %v5082, %v5108
      %v5119 = vadd.f32 %v5083, %v5108
      %v5120 = vadd.f32 %v5084, %v5108
      %v5121 = vadd.f32 %v5085, %v5108
      %v5122 = vadd.f32 %v5086, %v5108
      %v5123 = vadd.f32 %v5087, %v5108
      %v5124 = vadd.f32 %v5088, %v5108
      %v5125 = vadd.f32 %v5089, %v5108
      %v5126 = vadd.f32 %v5090, %v5108
      %v5127 = vadd.f32 %v5091, %v5108
      %v5128 = vadd.f32 %v5092, %v5108
      %v5129 = vadd.f32 %v5093, %v5108
      %v5130 = vadd.f32 %v5094, %v5108
      %v5131 = vadd.f32 %v5095, %v5108
      %v5132 = vadd.f32 %v5096, %v5108
      %v5133 = vadd.f32 %v5097, %v5108
      %v5134 = vadd.f32 %v5098, %v5108
      %v5135 = vadd.f32 %v5099, %v5108
      %v5136 = vadd.f32 %v5100, %v5108
      %v5137 = vadd.f32 %v5101, %v5108
      %v5138 = vadd.f32 %v5102, %v5108
      %v5139 = vadd.f32 %v5103, %v5108
      %v5140 = vadd.f32 %v5104, %v5108
      %v5141 = vadd.f32 %v5105, %v5108
      %v5142 = vmax.f32 %v5110, 0.0
      %v5143 = vmax.f32 %v5111, 0.0
      %v5144 = vmax.f32 %v5112, 0.0
      %v5145 = vmax.f32 %v5113, 0.0
      %v5146 = vmax.f32 %v5114, 0.0
      %v5147 = vmax.f32 %v5115, 0.0
      %v5148 = vmax.f32 %v5116, 0.0
      %v5149 = vmax.f32 %v5117, 0.0
      %v5150 = vmax.f32 %v5118, 0.0
      %v5151 = vmax.f32 %v5119, 0.0
      %v5152 = vmax.f32 %v5120, 0.0
      %v5153 = vmax.f32 %v5121, 0.0
      %v5154 = vmax.f32 %v5122, 0.0
      %v5155 = vmax.f32 %v5123, 0.0
      %v5156 = vmax.f32 %v5124, 0.0
      %v5157 = vmax.f32 %v5125, 0.0
      %v5158 = vmax.f32 %v5126, 0.0
      %v5159 = vmax.f32 %v5127, 0.0
      %v5160 = vmax.f32 %v5128, 0.0
      %v5161 = vmax.f32 %v5129, 0.0
      %v5162 = vmax.f32 %v5130, 0.0
      %v5163 = vmax.f32 %v5131, 0.0
      %v5164 = vmax.f32 %v5132, 0.0
      %v5165 = vmax.f32 %v5133, 0.0
      %v5166 = vmax.f32 %v5134, 0.0
      %v5167 = vmax.f32 %v5135, 0.0
      %v5168 = vmax.f32 %v5136, 0.0
      %v5169 = vmax.f32 %v5137, 0.0
      %v5170 = vmax.f32 %v5138, 0.0
      %v5171 = vmax.f32 %v5139, 0.0
      %v5172 = vmax.f32 %v5140, 0.0
      %v5173 = vmax.f32 %v5141, 0.0
      %v5174 = vmax.f32 %v5142, %v5144
      %v5175 = vmax.f32 %v5143, %v5145
      %v5176 = vmax.f32 %v5146, %v5148
      %v5177 = vmax.f32 %v5147, %v5149
      %v5178 = vmax.f32 %v5150, %v5152
      %v5179 = vmax.f32 %v5151, %v5153
      %v5180 = vmax.f32 %v5154, %v5156
      %v5181 = vmax.f32 %v5155, %v5157
      %v5182 = vmax.f32 %v5158, %v5160
      %v5183 = vmax.f32 %v5159, %v5161
      %v5184 = vmax.f32 %v5162, %v5164
      %v5185 = vmax.f32 %v5163, %v5165
      %v5186 = vmax.f32 %v5166, %v5168
      %v5187 = vmax.f32 %v5167, %v5169
      %v5188 = vmax.f32 %v5170, %v5172
      %v5189 = vmax.f32 %v5171, %v5173
      %5190 = vst [vmem:[#allocation3] sm:$0xff] %v5174
      %5191 = vst [vmem:[#allocation3 + $0x8] sm:$0xff] %v5175
      %5192 = vst [vmem:[#allocation3 + $0x10] sm:$0xff] %v5176
      %5193 = vst [vmem:[#allocation3 + $0x18] sm:$0xff] %v5177
      %5194 = vst [vmem:[#allocation3 + $0x20] sm:$0xff] %v5178
      %5195 = vst [vmem:[#allocation3 + $0x28] sm:$0xff] %v5179
      %5196 = vst [vmem:[#allocation3 + $0x30] sm:$0xff] %v5180
      %5197 = vst [vmem:[#allocation3 + $0x38] sm:$0xff] %v5181
      %5198 = vst [vmem:[#allocation3 + $0x40] sm:$0xff] %v5182
      %5199 = vst [vmem:[#allocation3 + $0x48] sm:$0xff] %v5183
      %5200 = vst [vmem:[#allocation3 + $0x50] sm:$0xff] %v5184
      %5201 = vst [vmem:[#allocation3 + $0x58] sm:$0xff] %v5185
      %5202 = vst [vmem:[#allocation3 + $0x60] sm:$0xff] %v5186
      %5203 = vst [vmem:[#allocation3 + $0x68] sm:$0xff] %v5187
      %5204 = vst [vmem:[#allocation3 + $0x70] sm:$0xff] %v5188
      %5205 = vst [vmem:[#allocation3 + $0x78] sm:$0xff] %v5189
      %v5206 = vld [vmem:[#allocation3] ss:$2 sm:$0xff]
      %s5207 = scalar_lea.vmem [#allocation3], 16
      %v5208 = vld [vmem:[%s5207] ss:$2 sm:$0xff]
      %s5209 = scalar_lea.vmem [#allocation3], 32
      %v5210 = vld [vmem:[%s5209] ss:$2 sm:$0xff]
      %s5211 = scalar_lea.vmem [#allocation3], 48
      %v5212 = vld [vmem:[%s5211] ss:$2 sm:$0xff]
      %s5213 = scalar_lea.vmem [#allocation3], 64
      %v5214 = vld [vmem:[%s5213] ss:$2 sm:$0xff]
      %s5215 = scalar_lea.vmem [#allocation3], 80
      %v5216 = vld [vmem:[%s5215] ss:$2 sm:$0xff]
      %s5217 = scalar_lea.vmem [#allocation3], 96
      %v5218 = vld [vmem:[%s5217] ss:$2 sm:$0xff]
      %s5219 = scalar_lea.vmem [#allocation3], 112
      %v5220 = vld [vmem:[%s5219] ss:$2 sm:$0xff]
      %s5221 = scalar_lea.vmem [#allocation3], 1
      %v5222 = vld [vmem:[%s5221] ss:$2 sm:$0xff]
      %s5223 = scalar_lea.vmem [#allocation3], 17
      %v5224 = vld [vmem:[%s5223] ss:$2 sm:$0xff]
      %s5225 = scalar_lea.vmem [#allocation3], 33
      %v5226 = vld [vmem:[%s5225] ss:$2 sm:$0xff]
      %s5227 = scalar_lea.vmem [#allocation3], 49
      %v5228 = vld [vmem:[%s5227] ss:$2 sm:$0xff]
      %s5229 = scalar_lea.vmem [#allocation3], 65
      %v5230 = vld [vmem:[%s5229] ss:$2 sm:$0xff]
      %s5231 = scalar_lea.vmem [#allocation3], 81
      %v5232 = vld [vmem:[%s5231] ss:$2 sm:$0xff]
      %s5233 = scalar_lea.vmem [#allocation3], 97
      %v5234 = vld [vmem:[%s5233] ss:$2 sm:$0xff]
      %s5235 = scalar_lea.vmem [#allocation3], 113
      %v5236 = vld [vmem:[%s5235] ss:$2 sm:$0xff]
      %v5237 = vmax.f32 %v5206, %v5222
      %v5238 = vmax.f32 %v5208, %v5224
      %v5239 = vmax.f32 %v5210, %v5226
      %v5240 = vmax.f32 %v5212, %v5228
      %v5241 = vmax.f32 %v5214, %v5230
      %v5242 = vmax.f32 %v5216, %v5232
      %v5243 = vmax.f32 %v5218, %v5234
      %v5244 = vmax.f32 %v5220, %v5236
      %5245 = vst [vmem:[%s170] sm:$0xff] %v5237
      %5246 = vst [vmem:[%s170 + $0x8] sm:$0xff] %v5238
      %5247 = vst [vmem:[%s170 + $0x10] sm:$0xff] %v5239
      %5248 = vst [vmem:[%s170 + $0x18] sm:$0xff] %v5240
      %5249 = vst [vmem:[%s170 + $0x20] sm:$0xff] %v5241
      %5250 = vst [vmem:[%s170 + $0x28] sm:$0xff] %v5242
      %5251 = vst [vmem:[%s170 + $0x30] sm:$0xff] %v5243
      %5252 = vst [vmem:[%s170 + $0x38] sm:$0xff] %v5244
      %p5253 = scmp.lt.s32.totalorder %s14, 3
      %s5254 = scalar_select %p5253, %s14, 3
      %s5255 = smul.addr %s5254, 8
      %s5256 = smul.addr %s5255, 8
      %s5257 = scalar_lea.vmem %s3, %s5256
      // Predicated region
      $region33: #{encoder_forward.3} parent=31 // pred_check
        %p5258 = pneg %p100
      $region34: #{encoder_forward.3} parent=31 // pred_check_branch
        %5260 = sbr.rel (%p5258) target = $region36
      $region35: #{encoder_forward.3} parent=31 // pred_region
        _
      $region36: #{encoder_forward.3} parent=31 // pred_fallthru
        _
    $region32: #{encoder_forward.3} parent=5 // pred_fallthru
      _
    %p5261 = scmp.le.s32.totalorder 2, %s9
    // Predicated region
    $region37: #{encoder_forward.3} parent=5 // pred_check
      %p5262 = pneg %p5261
    $region38: #{encoder_forward.3} parent=5 // pred_check_branch
      %5264 = sbr.rel (%p5262) target = $region40
    $region39: #{encoder_forward.3} parent=5 // pred_region
      %s5265 = ssub.s32 %s9, 2
      // Predicated region
      $region41: #{encoder_forward.3} parent=39 // pred_check
        %p5266 = pneg %p106
      $region42: #{encoder_forward.3} parent=39 // pred_check_branch
        %5268 = sbr.rel (%p5266) target = $region44
      $region43: #{encoder_forward.3} parent=39 // pred_region
        %p5269 = scmp.lt.s32.totalorder %s15, 3
        %s5270 = scalar_select %p5269, %s15, 3
        %s5271 = smul.addr %s5270, 8
        %s5272 = smul.addr %s5271, 8
        %s5273 = scalar_lea.vmem %s3, %s5272
      $region44: #{encoder_forward.3} parent=39 // pred_fallthru
        _
    $region40: #{encoder_forward.3} parent=5 // pred_fallthru
      _
  $region6: #{encoder_forward.3} parent=0 // loop_footer
    %s13 = sadd.s32 1, %s9
  $region7: #{encoder_forward.3} parent=0 // loop_footer_branch
    %8 = sbr.rel target = $region3
  $region8: #{encoder_forward.3} parent=0 // loop_exit
    _

</llo_original>
